<compile_context>
chip_gen: v5e
topology: v5e:2x2
jax: 0.10.0
libtpu: 0.0.40
codegen_flags: <defaults>
</compile_context>

<pallas_src>
import functools

import jax
import jax.numpy as jnp
from jax.experimental import pallas as pl
from jax.experimental.pallas import tpu as pltpu


def _round_up(v, m):
    return ((v + m - 1) // m) * m


# ------------------------------ fused kernel -------------------------------
def _dan_kernel(num_layers, x_ref, *refs):
    """refs = (w1, b1, w2, b2, ..., wN, bN, o_ref). Last weight/bias are lane-padded."""
    o_ref = refs[-1]
    wb = refs[:-1]

    x = x_ref[...].astype(jnp.float32)               # (TB, L, D)
    D = x.shape[-1]

    # ---- weighted pooling over the sequence axis ----
    last = x[:, :, D - 1]                            # (TB, L)   static lane extract
    s = jnp.sum(last, axis=-1, keepdims=True)        # (TB, 1)
    s_inv = pl.reciprocal(s, approx=True)            # EUP slot (free vs. VALU divide)
    weight = last * s_inv                            # (TB, L) == x[:,:,-1] * (1/sum)

    if D >= 128:
        # Large feature dim: contraction on the MXU instead of VPU+XLU.
        y = jnp.einsum("bl,bld->bd", weight, x,
                       preferred_element_type=jnp.float32)
    else:
        # Tiny D (e.g. 16): MXU would be mostly padding; keep VPU broadcast-mul
        # + sublane reduce.
        y = jnp.sum(x * weight[:, :, None], axis=1)  # (TB, D) f32

    # ---- MLP: Linear (+ReLU) stack, no ReLU after the final Linear ----
    for i in range(num_layers):
        w = wb[2 * i][...]                           # (din, dout)  bf16
        b = wb[2 * i + 1][...]                       # (1, dout)    bf16
        y = jnp.dot(y.astype(w.dtype), w,
                    preferred_element_type=jnp.float32) + b.astype(jnp.float32)
        if i < num_layers - 1:
            y = jnp.maximum(y, 0.0)

    o_ref[...] = y.astype(o_ref.dtype)               # (TB, OUT_PAD) lane-dense store


# ------------------------------ tile sizing --------------------------------
def _choose_block_b(B, L, D, out_pad, weight_bytes,
                    vmem_tile_budget=24 * 1024 * 1024):
    """Batch tile: >=128 rows to fill the MXU M dim, shrunk if VMEM-tight.

    VMEM accounting includes (sublane=8, lane=128) padding of the trailing
    (L, D) slab (D=16 -> 8x lane padding) and 2x double-buffering on the
    pipelined x / output tiles. Budget of 24 MiB leaves headroom on v7x
    (64 MiB physical) and fits under the 32 MiB scoped limit we request.
    """
    per_row_x = _round_up(L, 8) * _round_up(D, 128) * 4      # padded f32 bytes / row
    per_row_out = out_pad * 4
    tb = 128
    while tb > 8 and (2 * tb * (per_row_x + per_row_out) + weight_bytes) > vmem_tile_budget:
        tb //= 2
    tb = max(tb, 8)
    return min(tb, _round_up(B, 8))


# ------------------------------ wrapper -------------------------------------
def dan_forward(x, pos, layers, *, block_b=None):
    """x: (B, L, D) f32; pos: unused (matches PyTorch forward); layers: [(w, b), ...]."""
    del pos  # unused by DAN.forward
    B, L, D = x.shape
    out_dim = layers[-1][0].shape[1]
    out_pad = max(128, _round_up(out_dim, 128))

    # Lane-dense output: zero-pad the final Linear to OUT_PAD columns so the
    # kernel's store is a full-lane vst; real columns are sliced out below.
    w_last, b_last = layers[-1]
    w_last_p = jnp.pad(w_last, ((0, 0), (0, out_pad - out_dim)))
    b_last_p = jnp.pad(b_last, ((0, 0), (0, out_pad - out_dim)))
    layers_p = list(layers[:-1]) + [(w_last_p, b_last_p)]

    flat = []
    for (w, b) in layers_p:
        flat.append(w)
        flat.append(b)
    weight_bytes = sum(int(a.size) * a.dtype.itemsize for a in flat)

    if block_b is None:
        block_b = _choose_block_b(B, L, D, out_pad, weight_bytes)
    grid = (pl.cdiv(B, block_b),)

    in_specs = [pl.BlockSpec((block_b, L, D), lambda i: (i, 0, 0))]
    # Params: full-array blocks with a constant index_map -> fetched once,
    # stay resident in VMEM across all grid steps.
    for a in flat:
        in_specs.append(pl.BlockSpec(tuple(a.shape), lambda i: (0, 0)))

    kernel = functools.partial(_dan_kernel, len(layers_p))
    out_padded = pl.pallas_call(
        kernel,
        out_shape=jax.ShapeDtypeStruct((B, out_pad), jnp.float32),
        grid=grid,
        in_specs=in_specs,
        out_specs=pl.BlockSpec((block_b, out_pad), lambda i: (i, 0)),
        compiler_params=pltpu.CompilerParams(
            dimension_semantics=("parallel",),          # megacore-shard the batch axis
            vmem_limit_bytes=32 * 1024 * 1024,          # safe on v5e/v6e/v7x
        ),
    )(x, *flat)
    return out_padded[:, :out_dim]


# ---------------------------- parameter init -------------------------------
def init_linear(key, din, dout, dtype=jnp.bfloat16):
    k1, k2 = jax.random.split(key)
    bound = 1.0 / (din ** 0.5)
    w = jax.random.uniform(k1, (din, dout), jnp.float32, -bound, bound)
    b = jax.random.uniform(k2, (1, dout), jnp.float32, -bound, bound)
    return w.astype(dtype), b.astype(dtype)


def init_dan(key, input_dim, hidden_dim, output_dim=1, num_layers=2,
             dtype=jnp.bfloat16):
    """Mirror DAN.__init__ layer structure; returns list of (w, b)."""
    if num_layers == 1:
        return [init_linear(key, input_dim, output_dim, dtype)]
    keys = jax.random.split(key, num_layers)
    layers = [init_linear(keys[0], input_dim, hidden_dim, dtype)]
    for i in range(1, num_layers - 1):
        layers.append(init_linear(keys[i], hidden_dim, hidden_dim, dtype))
    layers.append(init_linear(keys[num_layers - 1], hidden_dim, output_dim, dtype))
    return layers


# ----------------------------- pure-JAX reference ---------------------------
def dan_reference(x, pos, layers):
    del pos
    last = x[:, :, -1]
    mean = 1.0 / jnp.sum(last, axis=-1)
    weight = last * mean[:, None]
    y = jnp.einsum("bl,bld->bd", weight, x)
    n = len(layers)
    for i, (w, b) in enumerate(layers):
        y = y @ w.astype(jnp.float32) + b.astype(jnp.float32)
        if i < n - 1:
            y = jnp.maximum(y, 0.0)
    return y


# ---------------------------------- main ------------------------------------
if __name__ == "__main__":
    B, L, D = 256, 8, 16        # batch, sequence length, input_dim
    hidden = 32
    out_dim = 1
    num_layers = 3

    key = jax.random.PRNGKey(0)
    k_param, k_x, k_last, k_pos = jax.random.split(key, 4)

    layers = init_dan(k_param, D, hidden, out_dim, num_layers, dtype=jnp.bfloat16)

    # inputs: keep the last feature channel positive so 1/sum is well-conditioned
    # (matches the PyTorch reference's implicit assumption; no epsilon added to
    # preserve forward semantics).
    x = jax.random.normal(k_x, (B, L, D), jnp.float32)
    x = x.at[:, :, -1].set(jax.random.uniform(k_last, (B, L), jnp.float32, 0.5, 1.5))
    pos = jax.random.randint(k_pos, (B,), 0, L)     # unused by forward (as in PyTorch)

    fwd = jax.jit(lambda x_, pos_: dan_forward(x_, pos_, layers))
    out = jax.block_until_ready(fwd(x, pos))

    assert out.shape == (B, out_dim) and out.dtype == jnp.float32
    ref = dan_reference(x, pos, layers)
    # Tolerance covers bf16 activation cast at the MXU dots + approx reciprocal.
    assert jnp.allclose(out, ref, atol=3e-2, rtol=3e-2), (
        float(jnp.max(jnp.abs(out - ref))))
    print("KERNEL_OK")
</pallas_src>

<mosaic_0001>
module attributes {stable_mosaic.version = 11 : i64} {
  func.func @_dan_kernel(%arg0: i32, %arg1: memref<128x8x16xf32, #tpu.memory_space<vmem>>, %arg2: memref<16x32xbf16, #tpu.memory_space<vmem>>, %arg3: memref<1x32xbf16, #tpu.memory_space<vmem>>, %arg4: memref<32x32xbf16, #tpu.memory_space<vmem>>, %arg5: memref<1x32xbf16, #tpu.memory_space<vmem>>, %arg6: memref<32x128xbf16, #tpu.memory_space<vmem>>, %arg7: memref<1x128xbf16, #tpu.memory_space<vmem>>, %arg8: memref<128x128xf32, #tpu.memory_space<vmem>>) attributes {dimension_semantics = [#tpu.dimension_semantics<parallel>], iteration_bounds = array<i64: 2>, scalar_prefetch = 0 : i64, scratch_operands = 0 : i64, tpu.core_type = #tpu.core_type<tc>, window_params = [{transform_indices = @transform_0, window_bounds = array<i64: 128, 8, 16>}, {pipeline_mode = #tpu.pipeline_mode<synchronous>, transform_indices = @transform_1, window_bounds = array<i64: 16, 32>}, {pipeline_mode = #tpu.pipeline_mode<synchronous>, transform_indices = @transform_2, window_bounds = array<i64: 1, 32>}, {pipeline_mode = #tpu.pipeline_mode<synchronous>, transform_indices = @transform_3, window_bounds = array<i64: 32, 32>}, {pipeline_mode = #tpu.pipeline_mode<synchronous>, transform_indices = @transform_4, window_bounds = array<i64: 1, 32>}, {pipeline_mode = #tpu.pipeline_mode<synchronous>, transform_indices = @transform_5, window_bounds = array<i64: 32, 128>}, {pipeline_mode = #tpu.pipeline_mode<synchronous>, transform_indices = @transform_6, window_bounds = array<i64: 1, 128>}, {transform_indices = @transform_7, window_bounds = array<i64: 128, 128>}]} {
    %c0 = arith.constant 0 : index
    %c0_0 = arith.constant 0 : index
    %c0_1 = arith.constant 0 : index
    %0 = vector.load %arg1[%c0, %c0_0, %c0_1] : memref<128x8x16xf32, #tpu.memory_space<vmem>>, vector<128x8x16xf32>
    %1 = vector.extract_strided_slice %0 {offsets = [0, 0, 15], sizes = [128, 8, 1], strides = [1, 1, 1]} : vector<128x8x16xf32> to vector<128x8x1xf32>
    %2 = vector.shape_cast %1 : vector<128x8x1xf32> to vector<128x8xf32>
    %cst = arith.constant dense<0.000000e+00> : vector<128xf32>
    %3 = vector.multi_reduction <add>, %2, %cst [1] : vector<128x8xf32> to vector<128xf32>
    %4 = vector.shape_cast %3 : vector<128xf32> to vector<128x1xf32>
    %5 = tpu.reciprocal %4 {approx = true} : vector<128x1xf32> -> vector<128x1xf32>
    %6 = vector.broadcast %5 : vector<128x1xf32> to vector<128x8xf32>
    %7 = arith.mulf %2, %6 : vector<128x8xf32>
    %8 = vector.shape_cast %7 : vector<128x8xf32> to vector<128x8x1xf32>
    %9 = vector.broadcast %8 : vector<128x8x1xf32> to vector<128x8x16xf32>
    %10 = arith.mulf %0, %9 : vector<128x8x16xf32>
    %cst_2 = arith.constant dense<0.000000e+00> : vector<128x16xf32>
    %11 = vector.multi_reduction <add>, %10, %cst_2 [1] : vector<128x8x16xf32> to vector<128x16xf32>
    %c0_3 = arith.constant 0 : index
    %c0_4 = arith.constant 0 : index
    %12 = vector.load %arg2[%c0_3, %c0_4] : memref<16x32xbf16, #tpu.memory_space<vmem>>, vector<16x32xbf16>
    %c0_5 = arith.constant 0 : index
    %c0_6 = arith.constant 0 : index
    %13 = vector.load %arg3[%c0_5, %c0_6] : memref<1x32xbf16, #tpu.memory_space<vmem>>, vector<1x32xbf16>
    %14 = arith.truncf %11 : vector<128x16xf32> to vector<128x16xbf16>
    %cst_7 = arith.constant dense<0.000000e+00> : vector<128x32xf32>
    %15 = tpu.matmul %14, %12, %cst_7 {dimension_numbers = #tpu.dot_dimension_numbers<[1], [0], [0], [1], [0, 0, 1, 1], [], []>} : vector<128x16xbf16>, vector<16x32xbf16>, vector<128x32xf32> -> vector<128x32xf32>
    %16 = arith.extf %13 : vector<1x32xbf16> to vector<1x32xf32>
    %17 = vector.broadcast %16 : vector<1x32xf32> to vector<128x32xf32>
    %18 = arith.addf %15, %17 : vector<128x32xf32>
    %cst_8 = arith.constant 0.000000e+00 : f32
    %19 = vector.broadcast %cst_8 : f32 to vector<128x32xf32>
    %20 = arith.maximumf %18, %19 : vector<128x32xf32>
    %c0_9 = arith.constant 0 : index
    %c0_10 = arith.constant 0 : index
    %21 = vector.load %arg4[%c0_9, %c0_10] : memref<32x32xbf16, #tpu.memory_space<vmem>>, vector<32x32xbf16>
    %c0_11 = arith.constant 0 : index
    %c0_12 = arith.constant 0 : index
    %22 = vector.load %arg5[%c0_11, %c0_12] : memref<1x32xbf16, #tpu.memory_space<vmem>>, vector<1x32xbf16>
    %23 = arith.truncf %20 : vector<128x32xf32> to vector<128x32xbf16>
    %cst_13 = arith.constant dense<0.000000e+00> : vector<128x32xf32>
    %24 = tpu.matmul %23, %21, %cst_13 {dimension_numbers = #tpu.dot_dimension_numbers<[1], [0], [0], [1], [0, 0, 1, 1], [], []>} : vector<128x32xbf16>, vector<32x32xbf16>, vector<128x32xf32> -> vector<128x32xf32>
    %25 = arith.extf %22 : vector<1x32xbf16> to vector<1x32xf32>
    %26 = vector.broadcast %25 : vector<1x32xf32> to vector<128x32xf32>
    %27 = arith.addf %24, %26 : vector<128x32xf32>
    %cst_14 = arith.constant 0.000000e+00 : f32
    %28 = vector.broadcast %cst_14 : f32 to vector<128x32xf32>
    %29 = arith.maximumf %27, %28 : vector<128x32xf32>
    %c0_15 = arith.constant 0 : index
    %c0_16 = arith.constant 0 : index
    %30 = vector.load %arg6[%c0_15, %c0_16] : memref<32x128xbf16, #tpu.memory_space<vmem>>, vector<32x128xbf16>
    %c0_17 = arith.constant 0 : index
    %c0_18 = arith.constant 0 : index
    %31 = vector.load %arg7[%c0_17, %c0_18] : memref<1x128xbf16, #tpu.memory_space<vmem>>, vector<1x128xbf16>
    %32 = arith.truncf %29 : vector<128x32xf32> to vector<128x32xbf16>
    %cst_19 = arith.constant dense<0.000000e+00> : vector<128x128xf32>
    %33 = tpu.matmul %32, %30, %cst_19 {dimension_numbers = #tpu.dot_dimension_numbers<[1], [0], [0], [1], [0, 0, 1, 1], [], []>} : vector<128x32xbf16>, vector<32x128xbf16>, vector<128x128xf32> -> vector<128x128xf32>
    %34 = arith.extf %31 : vector<1x128xbf16> to vector<1x128xf32>
    %35 = vector.broadcast %34 : vector<1x128xf32> to vector<128x128xf32>
    %36 = arith.addf %33, %35 : vector<128x128xf32>
    %c0_20 = arith.constant 0 : index
    %c0_21 = arith.constant 0 : index
    %37 = vector.load %arg8[%c0_20, %c0_21] : memref<128x128xf32, #tpu.memory_space<vmem>>, vector<128x128xf32>
    tpu.vector_store %arg8[%c0_20, %c0_21], %36 {strides = array<i32>} : memref<128x128xf32, #tpu.memory_space<vmem>>, vector<128x128xf32>,
    return
  }
  func.func @transform_0(%arg0: i32) -> (i32, i32, i32) {
    %c0_i32 = arith.constant 0 : i32
    %c0_i32_0 = arith.constant 0 : i32
    %c0_i32_1 = arith.constant 0 : i32
    return %arg0, %c0_i32, %c0_i32_0 : i32, i32, i32
  }
  func.func @transform_1(%arg0: i32) -> (i32, i32) {
    %c0_i32 = arith.constant 0 : i32
    %c0_i32_0 = arith.constant 0 : i32
    %c0_i32_1 = arith.constant 0 : i32
    return %c0_i32, %c0_i32_0 : i32, i32
  }
  func.func @transform_2(%arg0: i32) -> (i32, i32) {
    %c0_i32 = arith.constant 0 : i32
    %c0_i32_0 = arith.constant 0 : i32
    %c0_i32_1 = arith.constant 0 : i32
    return %c0_i32, %c0_i32_0 : i32, i32
  }
  func.func @transform_3(%arg0: i32) -> (i32, i32) {
    %c0_i32 = arith.constant 0 : i32
    %c0_i32_0 = arith.constant 0 : i32
    %c0_i32_1 = arith.constant 0 : i32
    return %c0_i32, %c0_i32_0 : i32, i32
  }
  func.func @transform_4(%arg0: i32) -> (i32, i32) {
    %c0_i32 = arith.constant 0 : i32
    %c0_i32_0 = arith.constant 0 : i32
    %c0_i32_1 = arith.constant 0 : i32
    return %c0_i32, %c0_i32_0 : i32, i32
  }
  func.func @transform_5(%arg0: i32) -> (i32, i32) {
    %c0_i32 = arith.constant 0 : i32
    %c0_i32_0 = arith.constant 0 : i32
    %c0_i32_1 = arith.constant 0 : i32
    return %c0_i32, %c0_i32_0 : i32, i32
  }
  func.func @transform_6(%arg0: i32) -> (i32, i32) {
    %c0_i32 = arith.constant 0 : i32
    %c0_i32_0 = arith.constant 0 : i32
    %c0_i32_1 = arith.constant 0 : i32
    return %c0_i32, %c0_i32_0 : i32, i32
  }
  func.func @transform_7(%arg0: i32) -> (i32, i32) {
    %c0_i32 = arith.constant 0 : i32
    %c0_i32_0 = arith.constant 0 : i32
    return %arg0, %c0_i32 : i32, i32
  }
}

</mosaic_0001>

<llo_original>
// kernel: _lambda_.1
$region0: #{_lambda_.1}
  #allocation0 [shape = 'u32[]', space=smem, size = 0x4, offset = 0x4, fixed_abs, tag = 'smem constant byte address 0x4 - core index']
  #allocation1 [shape = 'u32[72,128]{1,0:T(1,128)}', space=vmem, size = 0x9000, scoped, tag = 'internal scratch']
  %s0 = inlined_call_operand.vmem [shape: f32[256,8,16], index: 0, kind: input, shape index: {}]
  %s1 = inlined_call_operand.vmem [shape: bf16[16,32], index: 1, kind: input, shape index: {}]
  %s2 = inlined_call_operand.vmem [shape: bf16[1,32], index: 2, kind: input, shape index: {}]
  %s3 = inlined_call_operand.vmem [shape: bf16[32,32], index: 3, kind: input, shape index: {}]
  %s4 = inlined_call_operand.vmem [shape: bf16[1,32], index: 4, kind: input, shape index: {}]
  %s5 = inlined_call_operand.vmem [shape: bf16[32,128], index: 5, kind: input, shape index: {}]
  %s6 = inlined_call_operand.vmem [shape: bf16[1,128], index: 6, kind: input, shape index: {}]
  %s7 = inlined_call_operand.vmem [shape: f32[256,128], index: 7, kind: output, shape index: {}]
  %s8 = sld [smem:[#allocation0]]
  $region61: #{_lambda_.1} parent=0
    _
  %s10 = ssub.s32 1, %s8
  %s11 = scalar_select 0, %s10, %s8
  loop: start=0, step=1, limit=4
  $region2: #{_lambda_.1} parent=0 // loop_pre_header
    _
  $region3: #{_lambda_.1} parent=0 // loop_header
    %s13 = sphi 0, %s17
    %p14 = scmp.ge.s32.totalorder %s13, 4
    %s23 = sphi 0, %s25
    %s26 = sphi 0, %s23
    %s27 = sphi 0, %s26
    %s43 = sphi 0, %s27
    %s47 = sphi 0, %s47
    %s49 = sphi 0, %s47
    %s50 = sphi 0, %s49
    %s64 = sphi 0, %s50
    %s68 = sphi 0, %s68
    %s70 = sphi 0, %s68
    %s71 = sphi 0, %s70
    %s85 = sphi 0, %s71
    %s89 = sphi 0, %s89
    %s91 = sphi 0, %s89
    %s92 = sphi 0, %s91
    %s106 = sphi 0, %s92
    %s110 = sphi 0, %s110
    %s112 = sphi 0, %s110
    %s113 = sphi 0, %s112
    %s127 = sphi 0, %s113
    %s131 = sphi 0, %s131
    %s133 = sphi 0, %s131
    %s134 = sphi 0, %s133
    %s148 = sphi 0, %s134
    %s152 = sphi 0, %s152
    %s154 = sphi 0, %s152
    %s155 = sphi 0, %s154
    %s169 = sphi 0, %s155
    %s175 = sphi 0, %s177
    %s178 = sphi 0, %s175
    %s179 = sphi 0, %s178
    %s195 = sphi 0, %s179
  $region4: #{_lambda_.1} parent=0 // loop_header_branch
    %16 = sbr.rel (%p14) target = $region8
  $region5: #{_lambda_.1} parent=0 // loop_body
    %s18 = ssub.s32 %s13, 1
    %s19 = ssub.s32 %s13, 2
    %s20 = sadd.s32 %s13, 1
    %s21 = ssub.s32 %s13, %s20
    %p22 = scmp.eq.s32.totalorder %s21, 0
    %s24 = sadd.s32 %s23, 1
    %s25 = scalar_select %p22, %s23, %s24
    %p28 = pneg %p22
    %p29 = scmp.eq.s32.totalorder %s13, 1
    %p30 = por %p28, %p29
    %p31 = scmp.ne.s32.totalorder %s23, %s26
    %p32 = scmp.eq.s32.totalorder %s13, 0
    %p33 = por %p31, %p32
    %p34 = scmp.ne.s32.totalorder %s23, %s26
    %p35 = scmp.eq.s32.totalorder %s18, 1
    %p36 = por %p34, %p35
    %p37 = scmp.ne.s32.totalorder %s26, %s27
    %p38 = scmp.eq.s32.totalorder %s18, 0
    %p39 = por %p37, %p38
    %p40 = scmp.ne.s32.totalorder %s26, %s27
    %p41 = scmp.eq.s32.totalorder %s19, 1
    %p42 = por %p40, %p41
    %p44 = scmp.ne.s32.totalorder %s27, %s43
    %p45 = scmp.eq.s32.totalorder %s19, 0
    %p46 = por %p44, %p45
    %s48 = sadd.s32 %s47, 1
    %p51 = scmp.eq.s32.totalorder %s13, 1
    %p52 = scmp.ne.s32.totalorder %s47, %s49
    %p53 = scmp.eq.s32.totalorder %s13, 0
    %p54 = por %p52, %p53
    %p55 = scmp.ne.s32.totalorder %s47, %s49
    %p56 = scmp.eq.s32.totalorder %s18, 1
    %p57 = por %p55, %p56
    %p58 = scmp.ne.s32.totalorder %s49, %s50
    %p59 = scmp.eq.s32.totalorder %s18, 0
    %p60 = por %p58, %p59
    %p61 = scmp.ne.s32.totalorder %s49, %s50
    %p62 = scmp.eq.s32.totalorder %s19, 1
    %p63 = por %p61, %p62
    %p65 = scmp.ne.s32.totalorder %s50, %s64
    %p66 = scmp.eq.s32.totalorder %s19, 0
    %p67 = por %p65, %p66
    %s69 = sadd.s32 %s68, 1
    %p72 = scmp.eq.s32.totalorder %s13, 1
    %p73 = scmp.ne.s32.totalorder %s68, %s70
    %p74 = scmp.eq.s32.totalorder %s13, 0
    %p75 = por %p73, %p74
    %p76 = scmp.ne.s32.totalorder %s68, %s70
    %p77 = scmp.eq.s32.totalorder %s18, 1
    %p78 = por %p76, %p77
    %p79 = scmp.ne.s32.totalorder %s70, %s71
    %p80 = scmp.eq.s32.totalorder %s18, 0
    %p81 = por %p79, %p80
    %p82 = scmp.ne.s32.totalorder %s70, %s71
    %p83 = scmp.eq.s32.totalorder %s19, 1
    %p84 = por %p82, %p83
    %p86 = scmp.ne.s32.totalorder %s71, %s85
    %p87 = scmp.eq.s32.totalorder %s19, 0
    %p88 = por %p86, %p87
    %s90 = sadd.s32 %s89, 1
    %p93 = scmp.eq.s32.totalorder %s13, 1
    %p94 = scmp.ne.s32.totalorder %s89, %s91
    %p95 = scmp.eq.s32.totalorder %s13, 0
    %p96 = por %p94, %p95
    %p97 = scmp.ne.s32.totalorder %s89, %s91
    %p98 = scmp.eq.s32.totalorder %s18, 1
    %p99 = por %p97, %p98
    %p100 = scmp.ne.s32.totalorder %s91, %s92
    %p101 = scmp.eq.s32.totalorder %s18, 0
    %p102 = por %p100, %p101
    %p103 = scmp.ne.s32.totalorder %s91, %s92
    %p104 = scmp.eq.s32.totalorder %s19, 1
    %p105 = por %p103, %p104
    %p107 = scmp.ne.s32.totalorder %s92, %s106
    %p108 = scmp.eq.s32.totalorder %s19, 0
    %p109 = por %p107, %p108
    %s111 = sadd.s32 %s110, 1
    %p114 = scmp.eq.s32.totalorder %s13, 1
    %p115 = scmp.ne.s32.totalorder %s110, %s112
    %p116 = scmp.eq.s32.totalorder %s13, 0
    %p117 = por %p115, %p116
    %p118 = scmp.ne.s32.totalorder %s110, %s112
    %p119 = scmp.eq.s32.totalorder %s18, 1
    %p120 = por %p118, %p119
    %p121 = scmp.ne.s32.totalorder %s112, %s113
    %p122 = scmp.eq.s32.totalorder %s18, 0
    %p123 = por %p121, %p122
    %p124 = scmp.ne.s32.totalorder %s112, %s113
    %p125 = scmp.eq.s32.totalorder %s19, 1
    %p126 = por %p124, %p125
    %p128 = scmp.ne.s32.totalorder %s113, %s127
    %p129 = scmp.eq.s32.totalorder %s19, 0
    %p130 = por %p128, %p129
    %s132 = sadd.s32 %s131, 1
    %p135 = scmp.eq.s32.totalorder %s13, 1
    %p136 = scmp.ne.s32.totalorder %s131, %s133
    %p137 = scmp.eq.s32.totalorder %s13, 0
    %p138 = por %p136, %p137
    %p139 = scmp.ne.s32.totalorder %s131, %s133
    %p140 = scmp.eq.s32.totalorder %s18, 1
    %p141 = por %p139, %p140
    %p142 = scmp.ne.s32.totalorder %s133, %s134
    %p143 = scmp.eq.s32.totalorder %s18, 0
    %p144 = por %p142, %p143
    %p145 = scmp.ne.s32.totalorder %s133, %s134
    %p146 = scmp.eq.s32.totalorder %s19, 1
    %p147 = por %p145, %p146
    %p149 = scmp.ne.s32.totalorder %s134, %s148
    %p150 = scmp.eq.s32.totalorder %s19, 0
    %p151 = por %p149, %p150
    %s153 = sadd.s32 %s152, 1
    %p156 = scmp.eq.s32.totalorder %s13, 1
    %p157 = scmp.ne.s32.totalorder %s152, %s154
    %p158 = scmp.eq.s32.totalorder %s13, 0
    %p159 = por %p157, %p158
    %p160 = scmp.ne.s32.totalorder %s152, %s154
    %p161 = scmp.eq.s32.totalorder %s18, 1
    %p162 = por %p160, %p161
    %p163 = scmp.ne.s32.totalorder %s154, %s155
    %p164 = scmp.eq.s32.totalorder %s18, 0
    %p165 = por %p163, %p164
    %p166 = scmp.ne.s32.totalorder %s154, %s155
    %p167 = scmp.eq.s32.totalorder %s19, 1
    %p168 = por %p166, %p167
    %p170 = scmp.ne.s32.totalorder %s155, %s169
    %p171 = scmp.eq.s32.totalorder %s19, 0
    %p172 = por %p170, %p171
    %s173 = ssub.s32 %s13, %s20
    %p174 = scmp.eq.s32.totalorder %s173, 0
    %s176 = sadd.s32 %s175, 1
    %s177 = scalar_select %p174, %s175, %s176
    %p180 = pneg %p174
    %p181 = scmp.eq.s32.totalorder %s13, 1
    %p182 = por %p180, %p181
    %p183 = scmp.ne.s32.totalorder %s175, %s178
    %p184 = scmp.eq.s32.totalorder %s13, 0
    %p185 = por %p183, %p184
    %p186 = scmp.ne.s32.totalorder %s175, %s178
    %p187 = scmp.eq.s32.totalorder %s18, 1
    %p188 = por %p186, %p187
    %p189 = scmp.ne.s32.totalorder %s178, %s179
    %p190 = scmp.eq.s32.totalorder %s18, 0
    %p191 = por %p189, %p190
    %p192 = scmp.ne.s32.totalorder %s178, %s179
    %p193 = scmp.eq.s32.totalorder %s19, 1
    %p194 = por %p192, %p193
    %p196 = scmp.ne.s32.totalorder %s179, %s195
    %p197 = scmp.eq.s32.totalorder %s19, 0
    %p198 = por %p196, %p197
    %p199 = scmp.le.s32.totalorder 1, %s13
    %p200 = scmp.lt.s32.totalorder %s13, 3
    %p201 = pnand %p199, %p200
    %p202 = pneg %p201
    // Predicated region
    $region9: #{_lambda_.1} parent=5 // pred_check
      _
    $region10: #{_lambda_.1} parent=5 // pred_check_branch
      %204 = sbr.rel (%p201) target = $region12
    $region11: #{_lambda_.1} parent=5 // pred_region
      %s205 = ssub.s32 %s13, 1
      // Predicated region
      $region13: #{_lambda_.1} parent=11 // pred_check
        %p206 = pneg %p60
      $region14: #{_lambda_.1} parent=11 // pred_check_branch
        %208 = sbr.rel (%p206) target = $region16
      $region15: #{_lambda_.1} parent=11 // pred_region
        _
      $region16: #{_lambda_.1} parent=11 // pred_fallthru
        _
      // Predicated region
      $region17: #{_lambda_.1} parent=11 // pred_check
        %p209 = pneg %p81
      $region18: #{_lambda_.1} parent=11 // pred_check_branch
        %211 = sbr.rel (%p209) target = $region20
      $region19: #{_lambda_.1} parent=11 // pred_region
        _
      $region20: #{_lambda_.1} parent=11 // pred_fallthru
        _
      // Predicated region
      $region21: #{_lambda_.1} parent=11 // pred_check
        %p212 = pneg %p102
      $region22: #{_lambda_.1} parent=11 // pred_check_branch
        %214 = sbr.rel (%p212) target = $region24
      $region23: #{_lambda_.1} parent=11 // pred_region
        _
      $region24: #{_lambda_.1} parent=11 // pred_fallthru
        _
      // Predicated region
      $region25: #{_lambda_.1} parent=11 // pred_check
        %p215 = pneg %p123
      $region26: #{_lambda_.1} parent=11 // pred_check_branch
        %217 = sbr.rel (%p215) target = $region28
      $region27: #{_lambda_.1} parent=11 // pred_region
        _
      $region28: #{_lambda_.1} parent=11 // pred_fallthru
        _
      // Predicated region
      $region29: #{_lambda_.1} parent=11 // pred_check
        %p218 = pneg %p144
      $region30: #{_lambda_.1} parent=11 // pred_check_branch
        %220 = sbr.rel (%p218) target = $region32
      $region31: #{_lambda_.1} parent=11 // pred_region
        _
      $region32: #{_lambda_.1} parent=11 // pred_fallthru
        _
      // Predicated region
      $region33: #{_lambda_.1} parent=11 // pred_check
        %p221 = pneg %p165
      $region34: #{_lambda_.1} parent=11 // pred_check_branch
        %223 = sbr.rel (%p221) target = $region36
      $region35: #{_lambda_.1} parent=11 // pred_region
        _
      $region36: #{_lambda_.1} parent=11 // pred_fallthru
        _
    $region12: #{_lambda_.1} parent=5 // pred_fallthru
      _
    %p224 = scmp.lt.s32.totalorder %s13, 2
    // Predicated region
    $region37: #{_lambda_.1} parent=5 // pred_check
      %p225 = pneg %p224
    $region38: #{_lambda_.1} parent=5 // pred_check_branch
      %227 = sbr.rel (%p225) target = $region40
    $region39: #{_lambda_.1} parent=5 // pred_region
      // Predicated region
      $region41: #{_lambda_.1} parent=39 // pred_check
        %p228 = pneg %p33
      $region42: #{_lambda_.1} parent=39 // pred_check_branch
        %230 = sbr.rel (%p228) target = $region44
      $region43: #{_lambda_.1} parent=39 // pred_region
        %s231 = smul.u32 128, %s13
        %p232 = scmp.lt.s32.totalorder %s231, 255
        %s233 = scalar_select %p232, %s231, 255
        %s234 = smul.addr %s233, 8
        %s235 = scalar_lea.vmem %s0, %s234
        %s236 = smul.u32 128, %s13
      $region44: #{_lambda_.1} parent=39 // pred_fallthru
        _
    $region40: #{_lambda_.1} parent=5 // pred_fallthru
      _
    %p237 = scmp.le.s32.totalorder 1, %s13
    %p238 = scmp.lt.s32.totalorder %s13, 3
    %p239 = pnand %p237, %p238
    %p240 = pneg %p239
    // Predicated region
    $region45: #{_lambda_.1} parent=5 // pred_check
      _
    $region46: #{_lambda_.1} parent=5 // pred_check_branch
      %242 = sbr.rel (%p239) target = $region48
    $region47: #{_lambda_.1} parent=5 // pred_region
      %s243 = ssub.s32 %s13, 1
      %s244 = smul.u32 128, %s18
      %p245 = scmp.lt.s32.totalorder %s244, 255
      %s246 = scalar_select %p245, %s244, 255
      %s247 = smul.addr %s246, 8
      %s248 = scalar_lea.vmem %s0, %s247
      %p249 = pneg %p39
      %p250 = pneg %p36
      %p251 = pneg %p60
      %p252 = pneg %p57
      %p253 = pneg %p81
      %p254 = pneg %p78
      %p255 = pneg %p102
      %p256 = pneg %p99
      %p257 = pneg %p123
      %p258 = pneg %p120
      %p259 = pneg %p144
      %p260 = pneg %p141
      %p261 = pneg %p165
      %p262 = pneg %p162
      %p263 = pneg %p191
      %p264 = pneg %p188
      %s265 = smul.u32 16, %s18
      %p266 = scmp.lt.s32.totalorder %s265, 31
      %s267 = scalar_select %p266, %s265, 31
      %s268 = smul.addr %s267, 8
      %s269 = scalar_lea.vmem %s7, %s268
      %s270 = smul.u32 128, %s18
      %p271 = scmp.lt.s32.totalorder %s270, 255
      %s272 = scalar_select %p271, %s270, 255
      %s273 = smul.addr %s272, 8
      %s274 = scalar_lea.vmem %s0, %s273
      %s275 = smul.u32 128, %s18
      %s276 = smul.u32 16, %s18
      %p277 = scmp.lt.s32.totalorder %s276, 31
      %s278 = scalar_select %p277, %s276, 31
      %s279 = smul.addr %s278, 8
      %s280 = scalar_lea.vmem %s7, %s279
      %s281 = smul.u32 16, %s18
      %v283 = vld [vmem:[%s274] sm:$0xff]
      %v284 = vld [vmem:[%s274 + $0x8] sm:$0xff]
      %v285 = vld [vmem:[%s274 + $0x10] sm:$0xff]
      %v286 = vld [vmem:[%s274 + $0x18] sm:$0xff]
      %v287 = vld [vmem:[%s274 + $0x20] sm:$0xff]
      %v288 = vld [vmem:[%s274 + $0x28] sm:$0xff]
      %v289 = vld [vmem:[%s274 + $0x30] sm:$0xff]
      %v290 = vld [vmem:[%s274 + $0x38] sm:$0xff]
      %v291 = vld [vmem:[%s274 + $0x40] sm:$0xff]
      %v292 = vld [vmem:[%s274 + $0x48] sm:$0xff]
      %v293 = vld [vmem:[%s274 + $0x50] sm:$0xff]
      %v294 = vld [vmem:[%s274 + $0x58] sm:$0xff]
      %v295 = vld [vmem:[%s274 + $0x60] sm:$0xff]
      %v296 = vld [vmem:[%s274 + $0x68] sm:$0xff]
      %v297 = vld [vmem:[%s274 + $0x70] sm:$0xff]
      %v298 = vld [vmem:[%s274 + $0x78] sm:$0xff]
      %v299 = vld [vmem:[%s274 + $0x80] sm:$0xff]
      %v300 = vld [vmem:[%s274 + $0x88] sm:$0xff]
      %v301 = vld [vmem:[%s274 + $0x90] sm:$0xff]
      %v302 = vld [vmem:[%s274 + $0x98] sm:$0xff]
      %v303 = vld [vmem:[%s274 + $0xa0] sm:$0xff]
      %v304 = vld [vmem:[%s274 + $0xa8] sm:$0xff]
      %v305 = vld [vmem:[%s274 + $0xb0] sm:$0xff]
      %v306 = vld [vmem:[%s274 + $0xb8] sm:$0xff]
      %v307 = vld [vmem:[%s274 + $0xc0] sm:$0xff]
      %v308 = vld [vmem:[%s274 + $0xc8] sm:$0xff]
      %v309 = vld [vmem:[%s274 + $0xd0] sm:$0xff]
      %v310 = vld [vmem:[%s274 + $0xd8] sm:$0xff]
      %v311 = vld [vmem:[%s274 + $0xe0] sm:$0xff]
      %v312 = vld [vmem:[%s274 + $0xe8] sm:$0xff]
      %v313 = vld [vmem:[%s274 + $0xf0] sm:$0xff]
      %v314 = vld [vmem:[%s274 + $0xf8] sm:$0xff]
      %v315 = vld [vmem:[%s274 + $0x100] sm:$0xff]
      %v316 = vld [vmem:[%s274 + $0x108] sm:$0xff]
      %v317 = vld [vmem:[%s274 + $0x110] sm:$0xff]
      %v318 = vld [vmem:[%s274 + $0x118] sm:$0xff]
      %v319 = vld [vmem:[%s274 + $0x120] sm:$0xff]
      %v320 = vld [vmem:[%s274 + $0x128] sm:$0xff]
      %v321 = vld [vmem:[%s274 + $0x130] sm:$0xff]
      %v322 = vld [vmem:[%s274 + $0x138] sm:$0xff]
      %v323 = vld [vmem:[%s274 + $0x140] sm:$0xff]
      %v324 = vld [vmem:[%s274 + $0x148] sm:$0xff]
      %v325 = vld [vmem:[%s274 + $0x150] sm:$0xff]
      %v326 = vld [vmem:[%s274 + $0x158] sm:$0xff]
      %v327 = vld [vmem:[%s274 + $0x160] sm:$0xff]
      %v328 = vld [vmem:[%s274 + $0x168] sm:$0xff]
      %v329 = vld [vmem:[%s274 + $0x170] sm:$0xff]
      %v330 = vld [vmem:[%s274 + $0x178] sm:$0xff]
      %v331 = vld [vmem:[%s274 + $0x180] sm:$0xff]
      %v332 = vld [vmem:[%s274 + $0x188] sm:$0xff]
      %v333 = vld [vmem:[%s274 + $0x190] sm:$0xff]
      %v334 = vld [vmem:[%s274 + $0x198] sm:$0xff]
      %v335 = vld [vmem:[%s274 + $0x1a0] sm:$0xff]
      %v336 = vld [vmem:[%s274 + $0x1a8] sm:$0xff]
      %v337 = vld [vmem:[%s274 + $0x1b0] sm:$0xff]
      %v338 = vld [vmem:[%s274 + $0x1b8] sm:$0xff]
      %v339 = vld [vmem:[%s274 + $0x1c0] sm:$0xff]
      %v340 = vld [vmem:[%s274 + $0x1c8] sm:$0xff]
      %v341 = vld [vmem:[%s274 + $0x1d0] sm:$0xff]
      %v342 = vld [vmem:[%s274 + $0x1d8] sm:$0xff]
      %v343 = vld [vmem:[%s274 + $0x1e0] sm:$0xff]
      %v344 = vld [vmem:[%s274 + $0x1e8] sm:$0xff]
      %v345 = vld [vmem:[%s274 + $0x1f0] sm:$0xff]
      %v346 = vld [vmem:[%s274 + $0x1f8] sm:$0xff]
      %v347 = vld [vmem:[%s274 + $0x200] sm:$0xff]
      %v348 = vld [vmem:[%s274 + $0x208] sm:$0xff]
      %v349 = vld [vmem:[%s274 + $0x210] sm:$0xff]
      %v350 = vld [vmem:[%s274 + $0x218] sm:$0xff]
      %v351 = vld [vmem:[%s274 + $0x220] sm:$0xff]
      %v352 = vld [vmem:[%s274 + $0x228] sm:$0xff]
      %v353 = vld [vmem:[%s274 + $0x230] sm:$0xff]
      %v354 = vld [vmem:[%s274 + $0x238] sm:$0xff]
      %v355 = vld [vmem:[%s274 + $0x240] sm:$0xff]
      %v356 = vld [vmem:[%s274 + $0x248] sm:$0xff]
      %v357 = vld [vmem:[%s274 + $0x250] sm:$0xff]
      %v358 = vld [vmem:[%s274 + $0x258] sm:$0xff]
      %v359 = vld [vmem:[%s274 + $0x260] sm:$0xff]
      %v360 = vld [vmem:[%s274 + $0x268] sm:$0xff]
      %v361 = vld [vmem:[%s274 + $0x270] sm:$0xff]
      %v362 = vld [vmem:[%s274 + $0x278] sm:$0xff]
      %v363 = vld [vmem:[%s274 + $0x280] sm:$0xff]
      %v364 = vld [vmem:[%s274 + $0x288] sm:$0xff]
      %v365 = vld [vmem:[%s274 + $0x290] sm:$0xff]
      %v366 = vld [vmem:[%s274 + $0x298] sm:$0xff]
      %v367 = vld [vmem:[%s274 + $0x2a0] sm:$0xff]
      %v368 = vld [vmem:[%s274 + $0x2a8] sm:$0xff]
      %v369 = vld [vmem:[%s274 + $0x2b0] sm:$0xff]
      %v370 = vld [vmem:[%s274 + $0x2b8] sm:$0xff]
      %v371 = vld [vmem:[%s274 + $0x2c0] sm:$0xff]
      %v372 = vld [vmem:[%s274 + $0x2c8] sm:$0xff]
      %v373 = vld [vmem:[%s274 + $0x2d0] sm:$0xff]
      %v374 = vld [vmem:[%s274 + $0x2d8] sm:$0xff]
      %v375 = vld [vmem:[%s274 + $0x2e0] sm:$0xff]
      %v376 = vld [vmem:[%s274 + $0x2e8] sm:$0xff]
      %v377 = vld [vmem:[%s274 + $0x2f0] sm:$0xff]
      %v378 = vld [vmem:[%s274 + $0x2f8] sm:$0xff]
      %v379 = vld [vmem:[%s274 + $0x300] sm:$0xff]
      %v380 = vld [vmem:[%s274 + $0x308] sm:$0xff]
      %v381 = vld [vmem:[%s274 + $0x310] sm:$0xff]
      %v382 = vld [vmem:[%s274 + $0x318] sm:$0xff]
      %v383 = vld [vmem:[%s274 + $0x320] sm:$0xff]
      %v384 = vld [vmem:[%s274 + $0x328] sm:$0xff]
      %v385 = vld [vmem:[%s274 + $0x330] sm:$0xff]
      %v386 = vld [vmem:[%s274 + $0x338] sm:$0xff]
      %v387 = vld [vmem:[%s274 + $0x340] sm:$0xff]
      %v388 = vld [vmem:[%s274 + $0x348] sm:$0xff]
      %v389 = vld [vmem:[%s274 + $0x350] sm:$0xff]
      %v390 = vld [vmem:[%s274 + $0x358] sm:$0xff]
      %v391 = vld [vmem:[%s274 + $0x360] sm:$0xff]
      %v392 = vld [vmem:[%s274 + $0x368] sm:$0xff]
      %v393 = vld [vmem:[%s274 + $0x370] sm:$0xff]
      %v394 = vld [vmem:[%s274 + $0x378] sm:$0xff]
      %v395 = vld [vmem:[%s274 + $0x380] sm:$0xff]
      %v396 = vld [vmem:[%s274 + $0x388] sm:$0xff]
      %v397 = vld [vmem:[%s274 + $0x390] sm:$0xff]
      %v398 = vld [vmem:[%s274 + $0x398] sm:$0xff]
      %v399 = vld [vmem:[%s274 + $0x3a0] sm:$0xff]
      %v400 = vld [vmem:[%s274 + $0x3a8] sm:$0xff]
      %v401 = vld [vmem:[%s274 + $0x3b0] sm:$0xff]
      %v402 = vld [vmem:[%s274 + $0x3b8] sm:$0xff]
      %v403 = vld [vmem:[%s274 + $0x3c0] sm:$0xff]
      %v404 = vld [vmem:[%s274 + $0x3c8] sm:$0xff]
      %v405 = vld [vmem:[%s274 + $0x3d0] sm:$0xff]
      %v406 = vld [vmem:[%s274 + $0x3d8] sm:$0xff]
      %v407 = vld [vmem:[%s274 + $0x3e0] sm:$0xff]
      %v408 = vld [vmem:[%s274 + $0x3e8] sm:$0xff]
      %v409 = vld [vmem:[%s274 + $0x3f0] sm:$0xff]
      %v410 = vld [vmem:[%s274 + $0x3f8] sm:$0xff]
      %539 = vset.pattern.permute.xlu0 15
      %540 = vperm.xlu0 %539, %v283
      %v541 = vpop.permute.xlu0 %540
      %542 = vset.pattern.permute.xlu0 15
      %543 = vperm.xlu0 %542, %v284
      %v544 = vpop.permute.xlu0 %543
      %545 = vset.pattern.permute.xlu0 15
      %546 = vperm.xlu0 %545, %v285
      %v547 = vpop.permute.xlu0 %546
      %548 = vset.pattern.permute.xlu0 15
      %549 = vperm.xlu0 %548, %v286
      %v550 = vpop.permute.xlu0 %549
      %551 = vset.pattern.permute.xlu0 15
      %552 = vperm.xlu0 %551, %v287
      %v553 = vpop.permute.xlu0 %552
      %554 = vset.pattern.permute.xlu0 15
      %555 = vperm.xlu0 %554, %v288
      %v556 = vpop.permute.xlu0 %555
      %557 = vset.pattern.permute.xlu0 15
      %558 = vperm.xlu0 %557, %v289
      %v559 = vpop.permute.xlu0 %558
      %560 = vset.pattern.permute.xlu0 15
      %561 = vperm.xlu0 %560, %v290
      %v562 = vpop.permute.xlu0 %561
      %563 = vset.pattern.permute.xlu0 15
      %564 = vperm.xlu0 %563, %v291
      %v565 = vpop.permute.xlu0 %564
      %566 = vset.pattern.permute.xlu0 15
      %567 = vperm.xlu0 %566, %v292
      %v568 = vpop.permute.xlu0 %567
      %569 = vset.pattern.permute.xlu0 15
      %570 = vperm.xlu0 %569, %v293
      %v571 = vpop.permute.xlu0 %570
      %572 = vset.pattern.permute.xlu0 15
      %573 = vperm.xlu0 %572, %v294
      %v574 = vpop.permute.xlu0 %573
      %575 = vset.pattern.permute.xlu0 15
      %576 = vperm.xlu0 %575, %v295
      %v577 = vpop.permute.xlu0 %576
      %578 = vset.pattern.permute.xlu0 15
      %579 = vperm.xlu0 %578, %v296
      %v580 = vpop.permute.xlu0 %579
      %581 = vset.pattern.permute.xlu0 15
      %582 = vperm.xlu0 %581, %v297
      %v583 = vpop.permute.xlu0 %582
      %584 = vset.pattern.permute.xlu0 15
      %585 = vperm.xlu0 %584, %v298
      %v586 = vpop.permute.xlu0 %585
      %587 = vset.pattern.permute.xlu0 15
      %588 = vperm.xlu0 %587, %v299
      %v589 = vpop.permute.xlu0 %588
      %590 = vset.pattern.permute.xlu0 15
      %591 = vperm.xlu0 %590, %v300
      %v592 = vpop.permute.xlu0 %591
      %593 = vset.pattern.permute.xlu0 15
      %594 = vperm.xlu0 %593, %v301
      %v595 = vpop.permute.xlu0 %594
      %596 = vset.pattern.permute.xlu0 15
      %597 = vperm.xlu0 %596, %v302
      %v598 = vpop.permute.xlu0 %597
      %599 = vset.pattern.permute.xlu0 15
      %600 = vperm.xlu0 %599, %v303
      %v601 = vpop.permute.xlu0 %600
      %602 = vset.pattern.permute.xlu0 15
      %603 = vperm.xlu0 %602, %v304
      %v604 = vpop.permute.xlu0 %603
      %605 = vset.pattern.permute.xlu0 15
      %606 = vperm.xlu0 %605, %v305
      %v607 = vpop.permute.xlu0 %606
      %608 = vset.pattern.permute.xlu0 15
      %609 = vperm.xlu0 %608, %v306
      %v610 = vpop.permute.xlu0 %609
      %611 = vset.pattern.permute.xlu0 15
      %612 = vperm.xlu0 %611, %v307
      %v613 = vpop.permute.xlu0 %612
      %614 = vset.pattern.permute.xlu0 15
      %615 = vperm.xlu0 %614, %v308
      %v616 = vpop.permute.xlu0 %615
      %617 = vset.pattern.permute.xlu0 15
      %618 = vperm.xlu0 %617, %v309
      %v619 = vpop.permute.xlu0 %618
      %620 = vset.pattern.permute.xlu0 15
      %621 = vperm.xlu0 %620, %v310
      %v622 = vpop.permute.xlu0 %621
      %623 = vset.pattern.permute.xlu0 15
      %624 = vperm.xlu0 %623, %v311
      %v625 = vpop.permute.xlu0 %624
      %626 = vset.pattern.permute.xlu0 15
      %627 = vperm.xlu0 %626, %v312
      %v628 = vpop.permute.xlu0 %627
      %629 = vset.pattern.permute.xlu0 15
      %630 = vperm.xlu0 %629, %v313
      %v631 = vpop.permute.xlu0 %630
      %632 = vset.pattern.permute.xlu0 15
      %633 = vperm.xlu0 %632, %v314
      %v634 = vpop.permute.xlu0 %633
      %635 = vset.pattern.permute.xlu0 15
      %636 = vperm.xlu0 %635, %v315
      %v637 = vpop.permute.xlu0 %636
      %638 = vset.pattern.permute.xlu0 15
      %639 = vperm.xlu0 %638, %v316
      %v640 = vpop.permute.xlu0 %639
      %641 = vset.pattern.permute.xlu0 15
      %642 = vperm.xlu0 %641, %v317
      %v643 = vpop.permute.xlu0 %642
      %644 = vset.pattern.permute.xlu0 15
      %645 = vperm.xlu0 %644, %v318
      %v646 = vpop.permute.xlu0 %645
      %647 = vset.pattern.permute.xlu0 15
      %648 = vperm.xlu0 %647, %v319
      %v649 = vpop.permute.xlu0 %648
      %650 = vset.pattern.permute.xlu0 15
      %651 = vperm.xlu0 %650, %v320
      %v652 = vpop.permute.xlu0 %651
      %653 = vset.pattern.permute.xlu0 15
      %654 = vperm.xlu0 %653, %v321
      %v655 = vpop.permute.xlu0 %654
      %656 = vset.pattern.permute.xlu0 15
      %657 = vperm.xlu0 %656, %v322
      %v658 = vpop.permute.xlu0 %657
      %659 = vset.pattern.permute.xlu0 15
      %660 = vperm.xlu0 %659, %v323
      %v661 = vpop.permute.xlu0 %660
      %662 = vset.pattern.permute.xlu0 15
      %663 = vperm.xlu0 %662, %v324
      %v664 = vpop.permute.xlu0 %663
      %665 = vset.pattern.permute.xlu0 15
      %666 = vperm.xlu0 %665, %v325
      %v667 = vpop.permute.xlu0 %666
      %668 = vset.pattern.permute.xlu0 15
      %669 = vperm.xlu0 %668, %v326
      %v670 = vpop.permute.xlu0 %669
      %671 = vset.pattern.permute.xlu0 15
      %672 = vperm.xlu0 %671, %v327
      %v673 = vpop.permute.xlu0 %672
      %674 = vset.pattern.permute.xlu0 15
      %675 = vperm.xlu0 %674, %v328
      %v676 = vpop.permute.xlu0 %675
      %677 = vset.pattern.permute.xlu0 15
      %678 = vperm.xlu0 %677, %v329
      %v679 = vpop.permute.xlu0 %678
      %680 = vset.pattern.permute.xlu0 15
      %681 = vperm.xlu0 %680, %v330
      %v682 = vpop.permute.xlu0 %681
      %683 = vset.pattern.permute.xlu0 15
      %684 = vperm.xlu0 %683, %v331
      %v685 = vpop.permute.xlu0 %684
      %686 = vset.pattern.permute.xlu0 15
      %687 = vperm.xlu0 %686, %v332
      %v688 = vpop.permute.xlu0 %687
      %689 = vset.pattern.permute.xlu0 15
      %690 = vperm.xlu0 %689, %v333
      %v691 = vpop.permute.xlu0 %690
      %692 = vset.pattern.permute.xlu0 15
      %693 = vperm.xlu0 %692, %v334
      %v694 = vpop.permute.xlu0 %693
      %695 = vset.pattern.permute.xlu0 15
      %696 = vperm.xlu0 %695, %v335
      %v697 = vpop.permute.xlu0 %696
      %698 = vset.pattern.permute.xlu0 15
      %699 = vperm.xlu0 %698, %v336
      %v700 = vpop.permute.xlu0 %699
      %701 = vset.pattern.permute.xlu0 15
      %702 = vperm.xlu0 %701, %v337
      %v703 = vpop.permute.xlu0 %702
      %704 = vset.pattern.permute.xlu0 15
      %705 = vperm.xlu0 %704, %v338
      %v706 = vpop.permute.xlu0 %705
      %707 = vset.pattern.permute.xlu0 15
      %708 = vperm.xlu0 %707, %v339
      %v709 = vpop.permute.xlu0 %708
      %710 = vset.pattern.permute.xlu0 15
      %711 = vperm.xlu0 %710, %v340
      %v712 = vpop.permute.xlu0 %711
      %713 = vset.pattern.permute.xlu0 15
      %714 = vperm.xlu0 %713, %v341
      %v715 = vpop.permute.xlu0 %714
      %716 = vset.pattern.permute.xlu0 15
      %717 = vperm.xlu0 %716, %v342
      %v718 = vpop.permute.xlu0 %717
      %719 = vset.pattern.permute.xlu0 15
      %720 = vperm.xlu0 %719, %v343
      %v721 = vpop.permute.xlu0 %720
      %722 = vset.pattern.permute.xlu0 15
      %723 = vperm.xlu0 %722, %v344
      %v724 = vpop.permute.xlu0 %723
      %725 = vset.pattern.permute.xlu0 15
      %726 = vperm.xlu0 %725, %v345
      %v727 = vpop.permute.xlu0 %726
      %728 = vset.pattern.permute.xlu0 15
      %729 = vperm.xlu0 %728, %v346
      %v730 = vpop.permute.xlu0 %729
      %731 = vset.pattern.permute.xlu0 15
      %732 = vperm.xlu0 %731, %v347
      %v733 = vpop.permute.xlu0 %732
      %734 = vset.pattern.permute.xlu0 15
      %735 = vperm.xlu0 %734, %v348
      %v736 = vpop.permute.xlu0 %735
      %737 = vset.pattern.permute.xlu0 15
      %738 = vperm.xlu0 %737, %v349
      %v739 = vpop.permute.xlu0 %738
      %740 = vset.pattern.permute.xlu0 15
      %741 = vperm.xlu0 %740, %v350
      %v742 = vpop.permute.xlu0 %741
      %743 = vset.pattern.permute.xlu0 15
      %744 = vperm.xlu0 %743, %v351
      %v745 = vpop.permute.xlu0 %744
      %746 = vset.pattern.permute.xlu0 15
      %747 = vperm.xlu0 %746, %v352
      %v748 = vpop.permute.xlu0 %747
      %749 = vset.pattern.permute.xlu0 15
      %750 = vperm.xlu0 %749, %v353
      %v751 = vpop.permute.xlu0 %750
      %752 = vset.pattern.permute.xlu0 15
      %753 = vperm.xlu0 %752, %v354
      %v754 = vpop.permute.xlu0 %753
      %755 = vset.pattern.permute.xlu0 15
      %756 = vperm.xlu0 %755, %v355
      %v757 = vpop.permute.xlu0 %756
      %758 = vset.pattern.permute.xlu0 15
      %759 = vperm.xlu0 %758, %v356
      %v760 = vpop.permute.xlu0 %759
      %761 = vset.pattern.permute.xlu0 15
      %762 = vperm.xlu0 %761, %v357
      %v763 = vpop.permute.xlu0 %762
      %764 = vset.pattern.permute.xlu0 15
      %765 = vperm.xlu0 %764, %v358
      %v766 = vpop.permute.xlu0 %765
      %767 = vset.pattern.permute.xlu0 15
      %768 = vperm.xlu0 %767, %v359
      %v769 = vpop.permute.xlu0 %768
      %770 = vset.pattern.permute.xlu0 15
      %771 = vperm.xlu0 %770, %v360
      %v772 = vpop.permute.xlu0 %771
      %773 = vset.pattern.permute.xlu0 15
      %774 = vperm.xlu0 %773, %v361
      %v775 = vpop.permute.xlu0 %774
      %776 = vset.pattern.permute.xlu0 15
      %777 = vperm.xlu0 %776, %v362
      %v778 = vpop.permute.xlu0 %777
      %779 = vset.pattern.permute.xlu0 15
      %780 = vperm.xlu0 %779, %v363
      %v781 = vpop.permute.xlu0 %780
      %782 = vset.pattern.permute.xlu0 15
      %783 = vperm.xlu0 %782, %v364
      %v784 = vpop.permute.xlu0 %783
      %785 = vset.pattern.permute.xlu0 15
      %786 = vperm.xlu0 %785, %v365
      %v787 = vpop.permute.xlu0 %786
      %788 = vset.pattern.permute.xlu0 15
      %789 = vperm.xlu0 %788, %v366
      %v790 = vpop.permute.xlu0 %789
      %791 = vset.pattern.permute.xlu0 15
      %792 = vperm.xlu0 %791, %v367
      %v793 = vpop.permute.xlu0 %792
      %794 = vset.pattern.permute.xlu0 15
      %795 = vperm.xlu0 %794, %v368
      %v796 = vpop.permute.xlu0 %795
      %797 = vset.pattern.permute.xlu0 15
      %798 = vperm.xlu0 %797, %v369
      %v799 = vpop.permute.xlu0 %798
      %800 = vset.pattern.permute.xlu0 15
      %801 = vperm.xlu0 %800, %v370
      %v802 = vpop.permute.xlu0 %801
      %803 = vset.pattern.permute.xlu0 15
      %804 = vperm.xlu0 %803, %v371
      %v805 = vpop.permute.xlu0 %804
      %806 = vset.pattern.permute.xlu0 15
      %807 = vperm.xlu0 %806, %v372
      %v808 = vpop.permute.xlu0 %807
      %809 = vset.pattern.permute.xlu0 15
      %810 = vperm.xlu0 %809, %v373
      %v811 = vpop.permute.xlu0 %810
      %812 = vset.pattern.permute.xlu0 15
      %813 = vperm.xlu0 %812, %v374
      %v814 = vpop.permute.xlu0 %813
      %815 = vset.pattern.permute.xlu0 15
      %816 = vperm.xlu0 %815, %v375
      %v817 = vpop.permute.xlu0 %816
      %818 = vset.pattern.permute.xlu0 15
      %819 = vperm.xlu0 %818, %v376
      %v820 = vpop.permute.xlu0 %819
      %821 = vset.pattern.permute.xlu0 15
      %822 = vperm.xlu0 %821, %v377
      %v823 = vpop.permute.xlu0 %822
      %824 = vset.pattern.permute.xlu0 15
      %825 = vperm.xlu0 %824, %v378
      %v826 = vpop.permute.xlu0 %825
      %827 = vset.pattern.permute.xlu0 15
      %828 = vperm.xlu0 %827, %v379
      %v829 = vpop.permute.xlu0 %828
      %830 = vset.pattern.permute.xlu0 15
      %831 = vperm.xlu0 %830, %v380
      %v832 = vpop.permute.xlu0 %831
      %833 = vset.pattern.permute.xlu0 15
      %834 = vperm.xlu0 %833, %v381
      %v835 = vpop.permute.xlu0 %834
      %836 = vset.pattern.permute.xlu0 15
      %837 = vperm.xlu0 %836, %v382
      %v838 = vpop.permute.xlu0 %837
      %839 = vset.pattern.permute.xlu0 15
      %840 = vperm.xlu0 %839, %v383
      %v841 = vpop.permute.xlu0 %840
      %842 = vset.pattern.permute.xlu0 15
      %843 = vperm.xlu0 %842, %v384
      %v844 = vpop.permute.xlu0 %843
      %845 = vset.pattern.permute.xlu0 15
      %846 = vperm.xlu0 %845, %v385
      %v847 = vpop.permute.xlu0 %846
      %848 = vset.pattern.permute.xlu0 15
      %849 = vperm.xlu0 %848, %v386
      %v850 = vpop.permute.xlu0 %849
      %851 = vset.pattern.permute.xlu0 15
      %852 = vperm.xlu0 %851, %v387
      %v853 = vpop.permute.xlu0 %852
      %854 = vset.pattern.permute.xlu0 15
      %855 = vperm.xlu0 %854, %v388
      %v856 = vpop.permute.xlu0 %855
      %857 = vset.pattern.permute.xlu0 15
      %858 = vperm.xlu0 %857, %v389
      %v859 = vpop.permute.xlu0 %858
      %860 = vset.pattern.permute.xlu0 15
      %861 = vperm.xlu0 %860, %v390
      %v862 = vpop.permute.xlu0 %861
      %863 = vset.pattern.permute.xlu0 15
      %864 = vperm.xlu0 %863, %v391
      %v865 = vpop.permute.xlu0 %864
      %866 = vset.pattern.permute.xlu0 15
      %867 = vperm.xlu0 %866, %v392
      %v868 = vpop.permute.xlu0 %867
      %869 = vset.pattern.permute.xlu0 15
      %870 = vperm.xlu0 %869, %v393
      %v871 = vpop.permute.xlu0 %870
      %872 = vset.pattern.permute.xlu0 15
      %873 = vperm.xlu0 %872, %v394
      %v874 = vpop.permute.xlu0 %873
      %875 = vset.pattern.permute.xlu0 15
      %876 = vperm.xlu0 %875, %v395
      %v877 = vpop.permute.xlu0 %876
      %878 = vset.pattern.permute.xlu0 15
      %879 = vperm.xlu0 %878, %v396
      %v880 = vpop.permute.xlu0 %879
      %881 = vset.pattern.permute.xlu0 15
      %882 = vperm.xlu0 %881, %v397
      %v883 = vpop.permute.xlu0 %882
      %884 = vset.pattern.permute.xlu0 15
      %885 = vperm.xlu0 %884, %v398
      %v886 = vpop.permute.xlu0 %885
      %887 = vset.pattern.permute.xlu0 15
      %888 = vperm.xlu0 %887, %v399
      %v889 = vpop.permute.xlu0 %888
      %890 = vset.pattern.permute.xlu0 15
      %891 = vperm.xlu0 %890, %v400
      %v892 = vpop.permute.xlu0 %891
      %893 = vset.pattern.permute.xlu0 15
      %894 = vperm.xlu0 %893, %v401
      %v895 = vpop.permute.xlu0 %894
      %896 = vset.pattern.permute.xlu0 15
      %897 = vperm.xlu0 %896, %v402
      %v898 = vpop.permute.xlu0 %897
      %899 = vset.pattern.permute.xlu0 15
      %900 = vperm.xlu0 %899, %v403
      %v901 = vpop.permute.xlu0 %900
      %902 = vset.pattern.permute.xlu0 15
      %903 = vperm.xlu0 %902, %v404
      %v904 = vpop.permute.xlu0 %903
      %905 = vset.pattern.permute.xlu0 15
      %906 = vperm.xlu0 %905, %v405
      %v907 = vpop.permute.xlu0 %906
      %908 = vset.pattern.permute.xlu0 15
      %909 = vperm.xlu0 %908, %v406
      %v910 = vpop.permute.xlu0 %909
      %911 = vset.pattern.permute.xlu0 15
      %912 = vperm.xlu0 %911, %v407
      %v913 = vpop.permute.xlu0 %912
      %914 = vset.pattern.permute.xlu0 15
      %915 = vperm.xlu0 %914, %v408
      %v916 = vpop.permute.xlu0 %915
      %917 = vset.pattern.permute.xlu0 15
      %918 = vperm.xlu0 %917, %v409
      %v919 = vpop.permute.xlu0 %918
      %920 = vset.pattern.permute.xlu0 15
      %921 = vperm.xlu0 %920, %v410
      %v922 = vpop.permute.xlu0 %921
      %v923 = vlaneseq
      %v924 = vand.u32 %v923, 127
      %v925 = vperm.slane %v541, %v924
      %v926 = vperm.slane %v544, %v924
      %v927 = vperm.slane %v547, %v924
      %v928 = vperm.slane %v550, %v924
      %v929 = vperm.slane %v553, %v924
      %v930 = vperm.slane %v556, %v924
      %v931 = vperm.slane %v559, %v924
      %v932 = vperm.slane %v562, %v924
      %v933 = vperm.slane %v565, %v924
      %v934 = vperm.slane %v568, %v924
      %v935 = vperm.slane %v571, %v924
      %v936 = vperm.slane %v574, %v924
      %v937 = vperm.slane %v577, %v924
      %v938 = vperm.slane %v580, %v924
      %v939 = vperm.slane %v583, %v924
      %v940 = vperm.slane %v586, %v924
      %v941 = vperm.slane %v589, %v924
      %v942 = vperm.slane %v592, %v924
      %v943 = vperm.slane %v595, %v924
      %v944 = vperm.slane %v598, %v924
      %v945 = vperm.slane %v601, %v924
      %v946 = vperm.slane %v604, %v924
      %v947 = vperm.slane %v607, %v924
      %v948 = vperm.slane %v610, %v924
      %v949 = vperm.slane %v613, %v924
      %v950 = vperm.slane %v616, %v924
      %v951 = vperm.slane %v619, %v924
      %v952 = vperm.slane %v622, %v924
      %v953 = vperm.slane %v625, %v924
      %v954 = vperm.slane %v628, %v924
      %v955 = vperm.slane %v631, %v924
      %v956 = vperm.slane %v634, %v924
      %v957 = vperm.slane %v637, %v924
      %v958 = vperm.slane %v640, %v924
      %v959 = vperm.slane %v643, %v924
      %v960 = vperm.slane %v646, %v924
      %v961 = vperm.slane %v649, %v924
      %v962 = vperm.slane %v652, %v924
      %v963 = vperm.slane %v655, %v924
      %v964 = vperm.slane %v658, %v924
      %v965 = vperm.slane %v661, %v924
      %v966 = vperm.slane %v664, %v924
      %v967 = vperm.slane %v667, %v924
      %v968 = vperm.slane %v670, %v924
      %v969 = vperm.slane %v673, %v924
      %v970 = vperm.slane %v676, %v924
      %v971 = vperm.slane %v679, %v924
      %v972 = vperm.slane %v682, %v924
      %v973 = vperm.slane %v685, %v924
      %v974 = vperm.slane %v688, %v924
      %v975 = vperm.slane %v691, %v924
      %v976 = vperm.slane %v694, %v924
      %v977 = vperm.slane %v697, %v924
      %v978 = vperm.slane %v700, %v924
      %v979 = vperm.slane %v703, %v924
      %v980 = vperm.slane %v706, %v924
      %v981 = vperm.slane %v709, %v924
      %v982 = vperm.slane %v712, %v924
      %v983 = vperm.slane %v715, %v924
      %v984 = vperm.slane %v718, %v924
      %v985 = vperm.slane %v721, %v924
      %v986 = vperm.slane %v724, %v924
      %v987 = vperm.slane %v727, %v924
      %v988 = vperm.slane %v730, %v924
      %v989 = vperm.slane %v733, %v924
      %v990 = vperm.slane %v736, %v924
      %v991 = vperm.slane %v739, %v924
      %v992 = vperm.slane %v742, %v924
      %v993 = vperm.slane %v745, %v924
      %v994 = vperm.slane %v748, %v924
      %v995 = vperm.slane %v751, %v924
      %v996 = vperm.slane %v754, %v924
      %v997 = vperm.slane %v757, %v924
      %v998 = vperm.slane %v760, %v924
      %v999 = vperm.slane %v763, %v924
      %v1000 = vperm.slane %v766, %v924
      %v1001 = vperm.slane %v769, %v924
      %v1002 = vperm.slane %v772, %v924
      %v1003 = vperm.slane %v775, %v924
      %v1004 = vperm.slane %v778, %v924
      %v1005 = vperm.slane %v781, %v924
      %v1006 = vperm.slane %v784, %v924
      %v1007 = vperm.slane %v787, %v924
      %v1008 = vperm.slane %v790, %v924
      %v1009 = vperm.slane %v793, %v924
      %v1010 = vperm.slane %v796, %v924
      %v1011 = vperm.slane %v799, %v924
      %v1012 = vperm.slane %v802, %v924
      %v1013 = vperm.slane %v805, %v924
      %v1014 = vperm.slane %v808, %v924
      %v1015 = vperm.slane %v811, %v924
      %v1016 = vperm.slane %v814, %v924
      %v1017 = vperm.slane %v817, %v924
      %v1018 = vperm.slane %v820, %v924
      %v1019 = vperm.slane %v823, %v924
      %v1020 = vperm.slane %v826, %v924
      %v1021 = vperm.slane %v829, %v924
      %v1022 = vperm.slane %v832, %v924
      %v1023 = vperm.slane %v835, %v924
      %v1024 = vperm.slane %v838, %v924
      %v1025 = vperm.slane %v841, %v924
      %v1026 = vperm.slane %v844, %v924
      %v1027 = vperm.slane %v847, %v924
      %v1028 = vperm.slane %v850, %v924
      %v1029 = vperm.slane %v853, %v924
      %v1030 = vperm.slane %v856, %v924
      %v1031 = vperm.slane %v859, %v924
      %v1032 = vperm.slane %v862, %v924
      %v1033 = vperm.slane %v865, %v924
      %v1034 = vperm.slane %v868, %v924
      %v1035 = vperm.slane %v871, %v924
      %v1036 = vperm.slane %v874, %v924
      %v1037 = vperm.slane %v877, %v924
      %v1038 = vperm.slane %v880, %v924
      %v1039 = vperm.slane %v883, %v924
      %v1040 = vperm.slane %v886, %v924
      %v1041 = vperm.slane %v889, %v924
      %v1042 = vperm.slane %v892, %v924
      %v1043 = vperm.slane %v895, %v924
      %v1044 = vperm.slane %v898, %v924
      %v1045 = vperm.slane %v901, %v924
      %v1046 = vperm.slane %v904, %v924
      %v1047 = vperm.slane %v907, %v924
      %v1048 = vperm.slane %v910, %v924
      %v1049 = vperm.slane %v913, %v924
      %v1050 = vperm.slane %v916, %v924
      %v1051 = vperm.slane %v919, %v924
      %v1052 = vperm.slane %v922, %v924
      %vm1053 = vcmask 1041409
      %v1054 = vsel %vm1053, %v926, %v925
      %vm1055 = vcmask 1042434
      %v1056 = vsel %vm1055, %v927, %v1054
      %vm1057 = vcmask 1043459
      %v1058 = vsel %vm1057, %v928, %v1056
      %vm1059 = vcmask 1044484
      %v1060 = vsel %vm1059, %v929, %v1058
      %vm1061 = vcmask 1045509
      %v1062 = vsel %vm1061, %v930, %v1060
      %vm1063 = vcmask 1046534
      %v1064 = vsel %vm1063, %v931, %v1062
      %vm1065 = vcmask 1047559
      %v1066 = vsel %vm1065, %v932, %v1064
      %v1067 = vsel %vm1053, %v934, %v933
      %v1068 = vsel %vm1055, %v935, %v1067
      %v1069 = vsel %vm1057, %v936, %v1068
      %v1070 = vsel %vm1059, %v937, %v1069
      %v1071 = vsel %vm1061, %v938, %v1070
      %v1072 = vsel %vm1063, %v939, %v1071
      %v1073 = vsel %vm1065, %v940, %v1072
      %v1074 = vsel %vm1053, %v942, %v941
      %v1075 = vsel %vm1055, %v943, %v1074
      %v1076 = vsel %vm1057, %v944, %v1075
      %v1077 = vsel %vm1059, %v945, %v1076
      %v1078 = vsel %vm1061, %v946, %v1077
      %v1079 = vsel %vm1063, %v947, %v1078
      %v1080 = vsel %vm1065, %v948, %v1079
      %v1081 = vsel %vm1053, %v950, %v949
      %v1082 = vsel %vm1055, %v951, %v1081
      %v1083 = vsel %vm1057, %v952, %v1082
      %v1084 = vsel %vm1059, %v953, %v1083
      %v1085 = vsel %vm1061, %v954, %v1084
      %v1086 = vsel %vm1063, %v955, %v1085
      %v1087 = vsel %vm1065, %v956, %v1086
      %v1088 = vsel %vm1053, %v958, %v957
      %v1089 = vsel %vm1055, %v959, %v1088
      %v1090 = vsel %vm1057, %v960, %v1089
      %v1091 = vsel %vm1059, %v961, %v1090
      %v1092 = vsel %vm1061, %v962, %v1091
      %v1093 = vsel %vm1063, %v963, %v1092
      %v1094 = vsel %vm1065, %v964, %v1093
      %v1095 = vsel %vm1053, %v966, %v965
      %v1096 = vsel %vm1055, %v967, %v1095
      %v1097 = vsel %vm1057, %v968, %v1096
      %v1098 = vsel %vm1059, %v969, %v1097
      %v1099 = vsel %vm1061, %v970, %v1098
      %v1100 = vsel %vm1063, %v971, %v1099
      %v1101 = vsel %vm1065, %v972, %v1100
      %v1102 = vsel %vm1053, %v974, %v973
      %v1103 = vsel %vm1055, %v975, %v1102
      %v1104 = vsel %vm1057, %v976, %v1103
      %v1105 = vsel %vm1059, %v977, %v1104
      %v1106 = vsel %vm1061, %v978, %v1105
      %v1107 = vsel %vm1063, %v979, %v1106
      %v1108 = vsel %vm1065, %v980, %v1107
      %v1109 = vsel %vm1053, %v982, %v981
      %v1110 = vsel %vm1055, %v983, %v1109
      %v1111 = vsel %vm1057, %v984, %v1110
      %v1112 = vsel %vm1059, %v985, %v1111
      %v1113 = vsel %vm1061, %v986, %v1112
      %v1114 = vsel %vm1063, %v987, %v1113
      %v1115 = vsel %vm1065, %v988, %v1114
      %v1116 = vsel %vm1053, %v990, %v989
      %v1117 = vsel %vm1055, %v991, %v1116
      %v1118 = vsel %vm1057, %v992, %v1117
      %v1119 = vsel %vm1059, %v993, %v1118
      %v1120 = vsel %vm1061, %v994, %v1119
      %v1121 = vsel %vm1063, %v995, %v1120
      %v1122 = vsel %vm1065, %v996, %v1121
      %v1123 = vsel %vm1053, %v998, %v997
      %v1124 = vsel %vm1055, %v999, %v1123
      %v1125 = vsel %vm1057, %v1000, %v1124
      %v1126 = vsel %vm1059, %v1001, %v1125
      %v1127 = vsel %vm1061, %v1002, %v1126
      %v1128 = vsel %vm1063, %v1003, %v1127
      %v1129 = vsel %vm1065, %v1004, %v1128
      %v1130 = vsel %vm1053, %v1006, %v1005
      %v1131 = vsel %vm1055, %v1007, %v1130
      %v1132 = vsel %vm1057, %v1008, %v1131
      %v1133 = vsel %vm1059, %v1009, %v1132
      %v1134 = vsel %vm1061, %v1010, %v1133
      %v1135 = vsel %vm1063, %v1011, %v1134
      %v1136 = vsel %vm1065, %v1012, %v1135
      %v1137 = vsel %vm1053, %v1014, %v1013
      %v1138 = vsel %vm1055, %v1015, %v1137
      %v1139 = vsel %vm1057, %v1016, %v1138
      %v1140 = vsel %vm1059, %v1017, %v1139
      %v1141 = vsel %vm1061, %v1018, %v1140
      %v1142 = vsel %vm1063, %v1019, %v1141
      %v1143 = vsel %vm1065, %v1020, %v1142
      %v1144 = vsel %vm1053, %v1022, %v1021
      %v1145 = vsel %vm1055, %v1023, %v1144
      %v1146 = vsel %vm1057, %v1024, %v1145
      %v1147 = vsel %vm1059, %v1025, %v1146
      %v1148 = vsel %vm1061, %v1026, %v1147
      %v1149 = vsel %vm1063, %v1027, %v1148
      %v1150 = vsel %vm1065, %v1028, %v1149
      %v1151 = vsel %vm1053, %v1030, %v1029
      %v1152 = vsel %vm1055, %v1031, %v1151
      %v1153 = vsel %vm1057, %v1032, %v1152
      %v1154 = vsel %vm1059, %v1033, %v1153
      %v1155 = vsel %vm1061, %v1034, %v1154
      %v1156 = vsel %vm1063, %v1035, %v1155
      %v1157 = vsel %vm1065, %v1036, %v1156
      %v1158 = vsel %vm1053, %v1038, %v1037
      %v1159 = vsel %vm1055, %v1039, %v1158
      %v1160 = vsel %vm1057, %v1040, %v1159
      %v1161 = vsel %vm1059, %v1041, %v1160
      %v1162 = vsel %vm1061, %v1042, %v1161
      %v1163 = vsel %vm1063, %v1043, %v1162
      %v1164 = vsel %vm1065, %v1044, %v1163
      %v1165 = vsel %vm1053, %v1046, %v1045
      %v1166 = vsel %vm1055, %v1047, %v1165
      %v1167 = vsel %vm1057, %v1048, %v1166
      %v1168 = vsel %vm1059, %v1049, %v1167
      %v1169 = vsel %vm1061, %v1050, %v1168
      %v1170 = vsel %vm1063, %v1051, %v1169
      %v1171 = vsel %vm1065, %v1052, %v1170
      %vm1188 = vcmask 64512
      %v1189 = vsel %vm1188, %v1066, 0.0
      %1190 = vadd.xlane.f32.xlu0 %v1189
      %v1191 = vpop.xlane.xlu0 %1190
      %v1192 = vsel %vm1188, %v1073, 0.0
      %1193 = vadd.xlane.f32.xlu0 %v1192
      %v1194 = vpop.xlane.xlu0 %1193
      %v1195 = vsel %vm1188, %v1080, 0.0
      %1196 = vadd.xlane.f32.xlu0 %v1195
      %v1197 = vpop.xlane.xlu0 %1196
      %v1198 = vsel %vm1188, %v1087, 0.0
      %1199 = vadd.xlane.f32.xlu0 %v1198
      %v1200 = vpop.xlane.xlu0 %1199
      %v1201 = vsel %vm1188, %v1094, 0.0
      %1202 = vadd.xlane.f32.xlu0 %v1201
      %v1203 = vpop.xlane.xlu0 %1202
      %v1204 = vsel %vm1188, %v1101, 0.0
      %1205 = vadd.xlane.f32.xlu0 %v1204
      %v1206 = vpop.xlane.xlu0 %1205
      %v1207 = vsel %vm1188, %v1108, 0.0
      %1208 = vadd.xlane.f32.xlu0 %v1207
      %v1209 = vpop.xlane.xlu0 %1208
      %v1210 = vsel %vm1188, %v1115, 0.0
      %1211 = vadd.xlane.f32.xlu0 %v1210
      %v1212 = vpop.xlane.xlu0 %1211
      %v1213 = vsel %vm1188, %v1122, 0.0
      %1214 = vadd.xlane.f32.xlu0 %v1213
      %v1215 = vpop.xlane.xlu0 %1214
      %v1216 = vsel %vm1188, %v1129, 0.0
      %1217 = vadd.xlane.f32.xlu0 %v1216
      %v1218 = vpop.xlane.xlu0 %1217
      %v1219 = vsel %vm1188, %v1136, 0.0
      %1220 = vadd.xlane.f32.xlu0 %v1219
      %v1221 = vpop.xlane.xlu0 %1220
      %v1222 = vsel %vm1188, %v1143, 0.0
      %1223 = vadd.xlane.f32.xlu0 %v1222
      %v1224 = vpop.xlane.xlu0 %1223
      %v1225 = vsel %vm1188, %v1150, 0.0
      %1226 = vadd.xlane.f32.xlu0 %v1225
      %v1227 = vpop.xlane.xlu0 %1226
      %v1228 = vsel %vm1188, %v1157, 0.0
      %1229 = vadd.xlane.f32.xlu0 %v1228
      %v1230 = vpop.xlane.xlu0 %1229
      %v1231 = vsel %vm1188, %v1164, 0.0
      %1232 = vadd.xlane.f32.xlu0 %v1231
      %v1233 = vpop.xlane.xlu0 %1232
      %v1234 = vsel %vm1188, %v1171, 0.0
      %1235 = vadd.xlane.f32.xlu0 %v1234
      %v1236 = vpop.xlane.xlu0 %1235
      %v1237 = vrcp.pop %v1191
      %v1238 = vrcp.pop %v1194
      %v1239 = vrcp.pop %v1197
      %v1240 = vrcp.pop %v1200
      %v1241 = vrcp.pop %v1203
      %v1242 = vrcp.pop %v1206
      %v1243 = vrcp.pop %v1209
      %v1244 = vrcp.pop %v1212
      %v1245 = vrcp.pop %v1215
      %v1246 = vrcp.pop %v1218
      %v1247 = vrcp.pop %v1221
      %v1248 = vrcp.pop %v1224
      %v1249 = vrcp.pop %v1227
      %v1250 = vrcp.pop %v1230
      %v1251 = vrcp.pop %v1233
      %v1252 = vrcp.pop %v1236
      %v1269 = vperm.slane %v1237, 0
      %v1270 = vperm.slane %v1237, 1
      %v1271 = vperm.slane %v1237, 2
      %v1272 = vperm.slane %v1237, 3
      %v1273 = vperm.slane %v1237, 4
      %v1274 = vperm.slane %v1237, 5
      %v1275 = vperm.slane %v1237, 6
      %v1276 = vperm.slane %v1237, 7
      %v1277 = vperm.slane %v1238, 0
      %v1278 = vperm.slane %v1238, 1
      %v1279 = vperm.slane %v1238, 2
      %v1280 = vperm.slane %v1238, 3
      %v1281 = vperm.slane %v1238, 4
      %v1282 = vperm.slane %v1238, 5
      %v1283 = vperm.slane %v1238, 6
      %v1284 = vperm.slane %v1238, 7
      %v1285 = vperm.slane %v1239, 0
      %v1286 = vperm.slane %v1239, 1
      %v1287 = vperm.slane %v1239, 2
      %v1288 = vperm.slane %v1239, 3
      %v1289 = vperm.slane %v1239, 4
      %v1290 = vperm.slane %v1239, 5
      %v1291 = vperm.slane %v1239, 6
      %v1292 = vperm.slane %v1239, 7
      %v1293 = vperm.slane %v1240, 0
      %v1294 = vperm.slane %v1240, 1
      %v1295 = vperm.slane %v1240, 2
      %v1296 = vperm.slane %v1240, 3
      %v1297 = vperm.slane %v1240, 4
      %v1298 = vperm.slane %v1240, 5
      %v1299 = vperm.slane %v1240, 6
      %v1300 = vperm.slane %v1240, 7
      %v1301 = vperm.slane %v1241, 0
      %v1302 = vperm.slane %v1241, 1
      %v1303 = vperm.slane %v1241, 2
      %v1304 = vperm.slane %v1241, 3
      %v1305 = vperm.slane %v1241, 4
      %v1306 = vperm.slane %v1241, 5
      %v1307 = vperm.slane %v1241, 6
      %v1308 = vperm.slane %v1241, 7
      %v1309 = vperm.slane %v1242, 0
      %v1310 = vperm.slane %v1242, 1
      %v1311 = vperm.slane %v1242, 2
      %v1312 = vperm.slane %v1242, 3
      %v1313 = vperm.slane %v1242, 4
      %v1314 = vperm.slane %v1242, 5
      %v1315 = vperm.slane %v1242, 6
      %v1316 = vperm.slane %v1242, 7
      %v1317 = vperm.slane %v1243, 0
      %v1318 = vperm.slane %v1243, 1
      %v1319 = vperm.slane %v1243, 2
      %v1320 = vperm.slane %v1243, 3
      %v1321 = vperm.slane %v1243, 4
      %v1322 = vperm.slane %v1243, 5
      %v1323 = vperm.slane %v1243, 6
      %v1324 = vperm.slane %v1243, 7
      %v1325 = vperm.slane %v1244, 0
      %v1326 = vperm.slane %v1244, 1
      %v1327 = vperm.slane %v1244, 2
      %v1328 = vperm.slane %v1244, 3
      %v1329 = vperm.slane %v1244, 4
      %v1330 = vperm.slane %v1244, 5
      %v1331 = vperm.slane %v1244, 6
      %v1332 = vperm.slane %v1244, 7
      %v1333 = vperm.slane %v1245, 0
      %v1334 = vperm.slane %v1245, 1
      %v1335 = vperm.slane %v1245, 2
      %v1336 = vperm.slane %v1245, 3
      %v1337 = vperm.slane %v1245, 4
      %v1338 = vperm.slane %v1245, 5
      %v1339 = vperm.slane %v1245, 6
      %v1340 = vperm.slane %v1245, 7
      %v1341 = vperm.slane %v1246, 0
      %v1342 = vperm.slane %v1246, 1
      %v1343 = vperm.slane %v1246, 2
      %v1344 = vperm.slane %v1246, 3
      %v1345 = vperm.slane %v1246, 4
      %v1346 = vperm.slane %v1246, 5
      %v1347 = vperm.slane %v1246, 6
      %v1348 = vperm.slane %v1246, 7
      %v1349 = vperm.slane %v1247, 0
      %v1350 = vperm.slane %v1247, 1
      %v1351 = vperm.slane %v1247, 2
      %v1352 = vperm.slane %v1247, 3
      %v1353 = vperm.slane %v1247, 4
      %v1354 = vperm.slane %v1247, 5
      %v1355 = vperm.slane %v1247, 6
      %v1356 = vperm.slane %v1247, 7
      %v1357 = vperm.slane %v1248, 0
      %v1358 = vperm.slane %v1248, 1
      %v1359 = vperm.slane %v1248, 2
      %v1360 = vperm.slane %v1248, 3
      %v1361 = vperm.slane %v1248, 4
      %v1362 = vperm.slane %v1248, 5
      %v1363 = vperm.slane %v1248, 6
      %v1364 = vperm.slane %v1248, 7
      %v1365 = vperm.slane %v1249, 0
      %v1366 = vperm.slane %v1249, 1
      %v1367 = vperm.slane %v1249, 2
      %v1368 = vperm.slane %v1249, 3
      %v1369 = vperm.slane %v1249, 4
      %v1370 = vperm.slane %v1249, 5
      %v1371 = vperm.slane %v1249, 6
      %v1372 = vperm.slane %v1249, 7
      %v1373 = vperm.slane %v1250, 0
      %v1374 = vperm.slane %v1250, 1
      %v1375 = vperm.slane %v1250, 2
      %v1376 = vperm.slane %v1250, 3
      %v1377 = vperm.slane %v1250, 4
      %v1378 = vperm.slane %v1250, 5
      %v1379 = vperm.slane %v1250, 6
      %v1380 = vperm.slane %v1250, 7
      %v1381 = vperm.slane %v1251, 0
      %v1382 = vperm.slane %v1251, 1
      %v1383 = vperm.slane %v1251, 2
      %v1384 = vperm.slane %v1251, 3
      %v1385 = vperm.slane %v1251, 4
      %v1386 = vperm.slane %v1251, 5
      %v1387 = vperm.slane %v1251, 6
      %v1388 = vperm.slane %v1251, 7
      %v1389 = vperm.slane %v1252, 0
      %v1390 = vperm.slane %v1252, 1
      %v1391 = vperm.slane %v1252, 2
      %v1392 = vperm.slane %v1252, 3
      %v1393 = vperm.slane %v1252, 4
      %v1394 = vperm.slane %v1252, 5
      %v1395 = vperm.slane %v1252, 6
      %v1396 = vperm.slane %v1252, 7
      %v1525 = vmul.f32 %v283, %v1269
      %v1526 = vmul.f32 %v284, %v1270
      %v1527 = vmul.f32 %v285, %v1271
      %v1528 = vmul.f32 %v286, %v1272
      %v1529 = vmul.f32 %v287, %v1273
      %v1530 = vmul.f32 %v288, %v1274
      %v1531 = vmul.f32 %v289, %v1275
      %v1532 = vmul.f32 %v290, %v1276
      %v1533 = vmul.f32 %v291, %v1277
      %v1534 = vmul.f32 %v292, %v1278
      %v1535 = vmul.f32 %v293, %v1279
      %v1536 = vmul.f32 %v294, %v1280
      %v1537 = vmul.f32 %v295, %v1281
      %v1538 = vmul.f32 %v296, %v1282
      %v1539 = vmul.f32 %v297, %v1283
      %v1540 = vmul.f32 %v298, %v1284
      %v1541 = vmul.f32 %v299, %v1285
      %v1542 = vmul.f32 %v300, %v1286
      %v1543 = vmul.f32 %v301, %v1287
      %v1544 = vmul.f32 %v302, %v1288
      %v1545 = vmul.f32 %v303, %v1289
      %v1546 = vmul.f32 %v304, %v1290
      %v1547 = vmul.f32 %v305, %v1291
      %v1548 = vmul.f32 %v306, %v1292
      %v1549 = vmul.f32 %v307, %v1293
      %v1550 = vmul.f32 %v308, %v1294
      %v1551 = vmul.f32 %v309, %v1295
      %v1552 = vmul.f32 %v310, %v1296
      %v1553 = vmul.f32 %v311, %v1297
      %v1554 = vmul.f32 %v312, %v1298
      %v1555 = vmul.f32 %v313, %v1299
      %v1556 = vmul.f32 %v314, %v1300
      %v1557 = vmul.f32 %v315, %v1301
      %v1558 = vmul.f32 %v316, %v1302
      %v1559 = vmul.f32 %v317, %v1303
      %v1560 = vmul.f32 %v318, %v1304
      %v1561 = vmul.f32 %v319, %v1305
      %v1562 = vmul.f32 %v320, %v1306
      %v1563 = vmul.f32 %v321, %v1307
      %v1564 = vmul.f32 %v322, %v1308
      %v1565 = vmul.f32 %v323, %v1309
      %v1566 = vmul.f32 %v324, %v1310
      %v1567 = vmul.f32 %v325, %v1311
      %v1568 = vmul.f32 %v326, %v1312
      %v1569 = vmul.f32 %v327, %v1313
      %v1570 = vmul.f32 %v328, %v1314
      %v1571 = vmul.f32 %v329, %v1315
      %v1572 = vmul.f32 %v330, %v1316
      %v1573 = vmul.f32 %v331, %v1317
      %v1574 = vmul.f32 %v332, %v1318
      %v1575 = vmul.f32 %v333, %v1319
      %v1576 = vmul.f32 %v334, %v1320
      %v1577 = vmul.f32 %v335, %v1321
      %v1578 = vmul.f32 %v336, %v1322
      %v1579 = vmul.f32 %v337, %v1323
      %v1580 = vmul.f32 %v338, %v1324
      %v1581 = vmul.f32 %v339, %v1325
      %v1582 = vmul.f32 %v340, %v1326
      %v1583 = vmul.f32 %v341, %v1327
      %v1584 = vmul.f32 %v342, %v1328
      %v1585 = vmul.f32 %v343, %v1329
      %v1586 = vmul.f32 %v344, %v1330
      %v1587 = vmul.f32 %v345, %v1331
      %v1588 = vmul.f32 %v346, %v1332
      %v1589 = vmul.f32 %v347, %v1333
      %v1590 = vmul.f32 %v348, %v1334
      %v1591 = vmul.f32 %v349, %v1335
      %v1592 = vmul.f32 %v350, %v1336
      %v1593 = vmul.f32 %v351, %v1337
      %v1594 = vmul.f32 %v352, %v1338
      %v1595 = vmul.f32 %v353, %v1339
      %v1596 = vmul.f32 %v354, %v1340
      %v1597 = vmul.f32 %v355, %v1341
      %v1598 = vmul.f32 %v356, %v1342
      %v1599 = vmul.f32 %v357, %v1343
      %v1600 = vmul.f32 %v358, %v1344
      %v1601 = vmul.f32 %v359, %v1345
      %v1602 = vmul.f32 %v360, %v1346
      %v1603 = vmul.f32 %v361, %v1347
      %v1604 = vmul.f32 %v362, %v1348
      %v1605 = vmul.f32 %v363, %v1349
      %v1606 = vmul.f32 %v364, %v1350
      %v1607 = vmul.f32 %v365, %v1351
      %v1608 = vmul.f32 %v366, %v1352
      %v1609 = vmul.f32 %v367, %v1353
      %v1610 = vmul.f32 %v368, %v1354
      %v1611 = vmul.f32 %v369, %v1355
      %v1612 = vmul.f32 %v370, %v1356
      %v1613 = vmul.f32 %v371, %v1357
      %v1614 = vmul.f32 %v372, %v1358
      %v1615 = vmul.f32 %v373, %v1359
      %v1616 = vmul.f32 %v374, %v1360
      %v1617 = vmul.f32 %v375, %v1361
      %v1618 = vmul.f32 %v376, %v1362
      %v1619 = vmul.f32 %v377, %v1363
      %v1620 = vmul.f32 %v378, %v1364
      %v1621 = vmul.f32 %v379, %v1365
      %v1622 = vmul.f32 %v380, %v1366
      %v1623 = vmul.f32 %v381, %v1367
      %v1624 = vmul.f32 %v382, %v1368
      %v1625 = vmul.f32 %v383, %v1369
      %v1626 = vmul.f32 %v384, %v1370
      %v1627 = vmul.f32 %v385, %v1371
      %v1628 = vmul.f32 %v386, %v1372
      %v1629 = vmul.f32 %v387, %v1373
      %v1630 = vmul.f32 %v388, %v1374
      %v1631 = vmul.f32 %v389, %v1375
      %v1632 = vmul.f32 %v390, %v1376
      %v1633 = vmul.f32 %v391, %v1377
      %v1634 = vmul.f32 %v392, %v1378
      %v1635 = vmul.f32 %v393, %v1379
      %v1636 = vmul.f32 %v394, %v1380
      %v1637 = vmul.f32 %v395, %v1381
      %v1638 = vmul.f32 %v396, %v1382
      %v1639 = vmul.f32 %v397, %v1383
      %v1640 = vmul.f32 %v398, %v1384
      %v1641 = vmul.f32 %v399, %v1385
      %v1642 = vmul.f32 %v400, %v1386
      %v1643 = vmul.f32 %v401, %v1387
      %v1644 = vmul.f32 %v402, %v1388
      %v1645 = vmul.f32 %v403, %v1389
      %v1646 = vmul.f32 %v404, %v1390
      %v1647 = vmul.f32 %v405, %v1391
      %v1648 = vmul.f32 %v406, %v1392
      %v1649 = vmul.f32 %v407, %v1393
      %v1650 = vmul.f32 %v408, %v1394
      %v1651 = vmul.f32 %v409, %v1395
      %v1652 = vmul.f32 %v410, %v1396
      %1654 = vset.pattern.permute.xlu0 15
      %1655 = vperm.xlu0 %1654, %v1525
      %v1656 = vpop.permute.xlu0 %1655
      %1659 = vset.pattern.permute.xlu0 15
      %1660 = vperm.xlu0 %1659, %v1526
      %v1661 = vpop.permute.xlu0 %1660
      %1664 = vset.pattern.permute.xlu0 15
      %1665 = vperm.xlu0 %1664, %v1527
      %v1666 = vpop.permute.xlu0 %1665
      %1669 = vset.pattern.permute.xlu0 15
      %1670 = vperm.xlu0 %1669, %v1528
      %v1671 = vpop.permute.xlu0 %1670
      %1674 = vset.pattern.permute.xlu0 15
      %1675 = vperm.xlu0 %1674, %v1529
      %v1676 = vpop.permute.xlu0 %1675
      %1679 = vset.pattern.permute.xlu0 15
      %1680 = vperm.xlu0 %1679, %v1530
      %v1681 = vpop.permute.xlu0 %1680
      %1684 = vset.pattern.permute.xlu0 15
      %1685 = vperm.xlu0 %1684, %v1531
      %v1686 = vpop.permute.xlu0 %1685
      %1689 = vset.pattern.permute.xlu0 15
      %1690 = vperm.xlu0 %1689, %v1532
      %v1691 = vpop.permute.xlu0 %1690
      %1694 = vset.pattern.permute.xlu0 15
      %1695 = vperm.xlu0 %1694, %v1533
      %v1696 = vpop.permute.xlu0 %1695
      %1699 = vset.pattern.permute.xlu0 15
      %1700 = vperm.xlu0 %1699, %v1534
      %v1701 = vpop.permute.xlu0 %1700
      %1704 = vset.pattern.permute.xlu0 15
      %1705 = vperm.xlu0 %1704, %v1535
      %v1706 = vpop.permute.xlu0 %1705
      %1709 = vset.pattern.permute.xlu0 15
      %1710 = vperm.xlu0 %1709, %v1536
      %v1711 = vpop.permute.xlu0 %1710
      %1714 = vset.pattern.permute.xlu0 15
      %1715 = vperm.xlu0 %1714, %v1537
      %v1716 = vpop.permute.xlu0 %1715
      %1719 = vset.pattern.permute.xlu0 15
      %1720 = vperm.xlu0 %1719, %v1538
      %v1721 = vpop.permute.xlu0 %1720
      %1724 = vset.pattern.permute.xlu0 15
      %1725 = vperm.xlu0 %1724, %v1539
      %v1726 = vpop.permute.xlu0 %1725
      %1729 = vset.pattern.permute.xlu0 15
      %1730 = vperm.xlu0 %1729, %v1540
      %v1731 = vpop.permute.xlu0 %1730
      %1734 = vset.pattern.permute.xlu0 15
      %1735 = vperm.xlu0 %1734, %v1541
      %v1736 = vpop.permute.xlu0 %1735
      %1739 = vset.pattern.permute.xlu0 15
      %1740 = vperm.xlu0 %1739, %v1542
      %v1741 = vpop.permute.xlu0 %1740
      %1744 = vset.pattern.permute.xlu0 15
      %1745 = vperm.xlu0 %1744, %v1543
      %v1746 = vpop.permute.xlu0 %1745
      %1749 = vset.pattern.permute.xlu0 15
      %1750 = vperm.xlu0 %1749, %v1544
      %v1751 = vpop.permute.xlu0 %1750
      %1754 = vset.pattern.permute.xlu0 15
      %1755 = vperm.xlu0 %1754, %v1545
      %v1756 = vpop.permute.xlu0 %1755
      %1759 = vset.pattern.permute.xlu0 15
      %1760 = vperm.xlu0 %1759, %v1546
      %v1761 = vpop.permute.xlu0 %1760
      %1764 = vset.pattern.permute.xlu0 15
      %1765 = vperm.xlu0 %1764, %v1547
      %v1766 = vpop.permute.xlu0 %1765
      %1769 = vset.pattern.permute.xlu0 15
      %1770 = vperm.xlu0 %1769, %v1548
      %v1771 = vpop.permute.xlu0 %1770
      %1774 = vset.pattern.permute.xlu0 15
      %1775 = vperm.xlu0 %1774, %v1549
      %v1776 = vpop.permute.xlu0 %1775
      %1779 = vset.pattern.permute.xlu0 15
      %1780 = vperm.xlu0 %1779, %v1550
      %v1781 = vpop.permute.xlu0 %1780
      %1784 = vset.pattern.permute.xlu0 15
      %1785 = vperm.xlu0 %1784, %v1551
      %v1786 = vpop.permute.xlu0 %1785
      %1789 = vset.pattern.permute.xlu0 15
      %1790 = vperm.xlu0 %1789, %v1552
      %v1791 = vpop.permute.xlu0 %1790
      %1794 = vset.pattern.permute.xlu0 15
      %1795 = vperm.xlu0 %1794, %v1553
      %v1796 = vpop.permute.xlu0 %1795
      %1799 = vset.pattern.permute.xlu0 15
      %1800 = vperm.xlu0 %1799, %v1554
      %v1801 = vpop.permute.xlu0 %1800
      %1804 = vset.pattern.permute.xlu0 15
      %1805 = vperm.xlu0 %1804, %v1555
      %v1806 = vpop.permute.xlu0 %1805
      %1809 = vset.pattern.permute.xlu0 15
      %1810 = vperm.xlu0 %1809, %v1556
      %v1811 = vpop.permute.xlu0 %1810
      %1814 = vset.pattern.permute.xlu0 15
      %1815 = vperm.xlu0 %1814, %v1557
      %v1816 = vpop.permute.xlu0 %1815
      %1819 = vset.pattern.permute.xlu0 15
      %1820 = vperm.xlu0 %1819, %v1558
      %v1821 = vpop.permute.xlu0 %1820
      %1824 = vset.pattern.permute.xlu0 15
      %1825 = vperm.xlu0 %1824, %v1559
      %v1826 = vpop.permute.xlu0 %1825
      %1829 = vset.pattern.permute.xlu0 15
      %1830 = vperm.xlu0 %1829, %v1560
      %v1831 = vpop.permute.xlu0 %1830
      %1834 = vset.pattern.permute.xlu0 15
      %1835 = vperm.xlu0 %1834, %v1561
      %v1836 = vpop.permute.xlu0 %1835
      %1839 = vset.pattern.permute.xlu0 15
      %1840 = vperm.xlu0 %1839, %v1562
      %v1841 = vpop.permute.xlu0 %1840
      %1844 = vset.pattern.permute.xlu0 15
      %1845 = vperm.xlu0 %1844, %v1563
      %v1846 = vpop.permute.xlu0 %1845
      %1849 = vset.pattern.permute.xlu0 15
      %1850 = vperm.xlu0 %1849, %v1564
      %v1851 = vpop.permute.xlu0 %1850
      %1854 = vset.pattern.permute.xlu0 15
      %1855 = vperm.xlu0 %1854, %v1565
      %v1856 = vpop.permute.xlu0 %1855
      %1859 = vset.pattern.permute.xlu0 15
      %1860 = vperm.xlu0 %1859, %v1566
      %v1861 = vpop.permute.xlu0 %1860
      %1864 = vset.pattern.permute.xlu0 15
      %1865 = vperm.xlu0 %1864, %v1567
      %v1866 = vpop.permute.xlu0 %1865
      %1869 = vset.pattern.permute.xlu0 15
      %1870 = vperm.xlu0 %1869, %v1568
      %v1871 = vpop.permute.xlu0 %1870
      %1874 = vset.pattern.permute.xlu0 15
      %1875 = vperm.xlu0 %1874, %v1569
      %v1876 = vpop.permute.xlu0 %1875
      %1879 = vset.pattern.permute.xlu0 15
      %1880 = vperm.xlu0 %1879, %v1570
      %v1881 = vpop.permute.xlu0 %1880
      %1884 = vset.pattern.permute.xlu0 15
      %1885 = vperm.xlu0 %1884, %v1571
      %v1886 = vpop.permute.xlu0 %1885
      %1889 = vset.pattern.permute.xlu0 15
      %1890 = vperm.xlu0 %1889, %v1572
      %v1891 = vpop.permute.xlu0 %1890
      %1894 = vset.pattern.permute.xlu0 15
      %1895 = vperm.xlu0 %1894, %v1573
      %v1896 = vpop.permute.xlu0 %1895
      %1899 = vset.pattern.permute.xlu0 15
      %1900 = vperm.xlu0 %1899, %v1574
      %v1901 = vpop.permute.xlu0 %1900
      %1904 = vset.pattern.permute.xlu0 15
      %1905 = vperm.xlu0 %1904, %v1575
      %v1906 = vpop.permute.xlu0 %1905
      %1909 = vset.pattern.permute.xlu0 15
      %1910 = vperm.xlu0 %1909, %v1576
      %v1911 = vpop.permute.xlu0 %1910
      %1914 = vset.pattern.permute.xlu0 15
      %1915 = vperm.xlu0 %1914, %v1577
      %v1916 = vpop.permute.xlu0 %1915
      %1919 = vset.pattern.permute.xlu0 15
      %1920 = vperm.xlu0 %1919, %v1578
      %v1921 = vpop.permute.xlu0 %1920
      %1924 = vset.pattern.permute.xlu0 15
      %1925 = vperm.xlu0 %1924, %v1579
      %v1926 = vpop.permute.xlu0 %1925
      %1929 = vset.pattern.permute.xlu0 15
      %1930 = vperm.xlu0 %1929, %v1580
      %v1931 = vpop.permute.xlu0 %1930
      %1934 = vset.pattern.permute.xlu0 15
      %1935 = vperm.xlu0 %1934, %v1581
      %v1936 = vpop.permute.xlu0 %1935
      %1939 = vset.pattern.permute.xlu0 15
      %1940 = vperm.xlu0 %1939, %v1582
      %v1941 = vpop.permute.xlu0 %1940
      %1944 = vset.pattern.permute.xlu0 15
      %1945 = vperm.xlu0 %1944, %v1583
      %v1946 = vpop.permute.xlu0 %1945
      %1949 = vset.pattern.permute.xlu0 15
      %1950 = vperm.xlu0 %1949, %v1584
      %v1951 = vpop.permute.xlu0 %1950
      %1954 = vset.pattern.permute.xlu0 15
      %1955 = vperm.xlu0 %1954, %v1585
      %v1956 = vpop.permute.xlu0 %1955
      %1959 = vset.pattern.permute.xlu0 15
      %1960 = vperm.xlu0 %1959, %v1586
      %v1961 = vpop.permute.xlu0 %1960
      %1964 = vset.pattern.permute.xlu0 15
      %1965 = vperm.xlu0 %1964, %v1587
      %v1966 = vpop.permute.xlu0 %1965
      %1969 = vset.pattern.permute.xlu0 15
      %1970 = vperm.xlu0 %1969, %v1588
      %v1971 = vpop.permute.xlu0 %1970
      %1974 = vset.pattern.permute.xlu0 15
      %1975 = vperm.xlu0 %1974, %v1589
      %v1976 = vpop.permute.xlu0 %1975
      %1979 = vset.pattern.permute.xlu0 15
      %1980 = vperm.xlu0 %1979, %v1590
      %v1981 = vpop.permute.xlu0 %1980
      %1984 = vset.pattern.permute.xlu0 15
      %1985 = vperm.xlu0 %1984, %v1591
      %v1986 = vpop.permute.xlu0 %1985
      %1989 = vset.pattern.permute.xlu0 15
      %1990 = vperm.xlu0 %1989, %v1592
      %v1991 = vpop.permute.xlu0 %1990
      %1994 = vset.pattern.permute.xlu0 15
      %1995 = vperm.xlu0 %1994, %v1593
      %v1996 = vpop.permute.xlu0 %1995
      %1999 = vset.pattern.permute.xlu0 15
      %2000 = vperm.xlu0 %1999, %v1594
      %v2001 = vpop.permute.xlu0 %2000
      %2004 = vset.pattern.permute.xlu0 15
      %2005 = vperm.xlu0 %2004, %v1595
      %v2006 = vpop.permute.xlu0 %2005
      %2009 = vset.pattern.permute.xlu0 15
      %2010 = vperm.xlu0 %2009, %v1596
      %v2011 = vpop.permute.xlu0 %2010
      %2014 = vset.pattern.permute.xlu0 15
      %2015 = vperm.xlu0 %2014, %v1597
      %v2016 = vpop.permute.xlu0 %2015
      %2019 = vset.pattern.permute.xlu0 15
      %2020 = vperm.xlu0 %2019, %v1598
      %v2021 = vpop.permute.xlu0 %2020
      %2024 = vset.pattern.permute.xlu0 15
      %2025 = vperm.xlu0 %2024, %v1599
      %v2026 = vpop.permute.xlu0 %2025
      %2029 = vset.pattern.permute.xlu0 15
      %2030 = vperm.xlu0 %2029, %v1600
      %v2031 = vpop.permute.xlu0 %2030
      %2034 = vset.pattern.permute.xlu0 15
      %2035 = vperm.xlu0 %2034, %v1601
      %v2036 = vpop.permute.xlu0 %2035
      %2039 = vset.pattern.permute.xlu0 15
      %2040 = vperm.xlu0 %2039, %v1602
      %v2041 = vpop.permute.xlu0 %2040
      %2044 = vset.pattern.permute.xlu0 15
      %2045 = vperm.xlu0 %2044, %v1603
      %v2046 = vpop.permute.xlu0 %2045
      %2049 = vset.pattern.permute.xlu0 15
      %2050 = vperm.xlu0 %2049, %v1604
      %v2051 = vpop.permute.xlu0 %2050
      %2054 = vset.pattern.permute.xlu0 15
      %2055 = vperm.xlu0 %2054, %v1605
      %v2056 = vpop.permute.xlu0 %2055
      %2059 = vset.pattern.permute.xlu0 15
      %2060 = vperm.xlu0 %2059, %v1606
      %v2061 = vpop.permute.xlu0 %2060
      %2064 = vset.pattern.permute.xlu0 15
      %2065 = vperm.xlu0 %2064, %v1607
      %v2066 = vpop.permute.xlu0 %2065
      %2069 = vset.pattern.permute.xlu0 15
      %2070 = vperm.xlu0 %2069, %v1608
      %v2071 = vpop.permute.xlu0 %2070
      %2074 = vset.pattern.permute.xlu0 15
      %2075 = vperm.xlu0 %2074, %v1609
      %v2076 = vpop.permute.xlu0 %2075
      %2079 = vset.pattern.permute.xlu0 15
      %2080 = vperm.xlu0 %2079, %v1610
      %v2081 = vpop.permute.xlu0 %2080
      %2084 = vset.pattern.permute.xlu0 15
      %2085 = vperm.xlu0 %2084, %v1611
      %v2086 = vpop.permute.xlu0 %2085
      %2089 = vset.pattern.permute.xlu0 15
      %2090 = vperm.xlu0 %2089, %v1612
      %v2091 = vpop.permute.xlu0 %2090
      %2094 = vset.pattern.permute.xlu0 15
      %2095 = vperm.xlu0 %2094, %v1613
      %v2096 = vpop.permute.xlu0 %2095
      %2099 = vset.pattern.permute.xlu0 15
      %2100 = vperm.xlu0 %2099, %v1614
      %v2101 = vpop.permute.xlu0 %2100
      %2104 = vset.pattern.permute.xlu0 15
      %2105 = vperm.xlu0 %2104, %v1615
      %v2106 = vpop.permute.xlu0 %2105
      %2109 = vset.pattern.permute.xlu0 15
      %2110 = vperm.xlu0 %2109, %v1616
      %v2111 = vpop.permute.xlu0 %2110
      %2114 = vset.pattern.permute.xlu0 15
      %2115 = vperm.xlu0 %2114, %v1617
      %v2116 = vpop.permute.xlu0 %2115
      %2119 = vset.pattern.permute.xlu0 15
      %2120 = vperm.xlu0 %2119, %v1618
      %v2121 = vpop.permute.xlu0 %2120
      %2124 = vset.pattern.permute.xlu0 15
      %2125 = vperm.xlu0 %2124, %v1619
      %v2126 = vpop.permute.xlu0 %2125
      %2129 = vset.pattern.permute.xlu0 15
      %2130 = vperm.xlu0 %2129, %v1620
      %v2131 = vpop.permute.xlu0 %2130
      %2134 = vset.pattern.permute.xlu0 15
      %2135 = vperm.xlu0 %2134, %v1621
      %v2136 = vpop.permute.xlu0 %2135
      %2139 = vset.pattern.permute.xlu0 15
      %2140 = vperm.xlu0 %2139, %v1622
      %v2141 = vpop.permute.xlu0 %2140
      %2144 = vset.pattern.permute.xlu0 15
      %2145 = vperm.xlu0 %2144, %v1623
      %v2146 = vpop.permute.xlu0 %2145
      %2149 = vset.pattern.permute.xlu0 15
      %2150 = vperm.xlu0 %2149, %v1624
      %v2151 = vpop.permute.xlu0 %2150
      %2154 = vset.pattern.permute.xlu0 15
      %2155 = vperm.xlu0 %2154, %v1625
      %v2156 = vpop.permute.xlu0 %2155
      %2159 = vset.pattern.permute.xlu0 15
      %2160 = vperm.xlu0 %2159, %v1626
      %v2161 = vpop.permute.xlu0 %2160
      %2164 = vset.pattern.permute.xlu0 15
      %2165 = vperm.xlu0 %2164, %v1627
      %v2166 = vpop.permute.xlu0 %2165
      %2169 = vset.pattern.permute.xlu0 15
      %2170 = vperm.xlu0 %2169, %v1628
      %v2171 = vpop.permute.xlu0 %2170
      %2174 = vset.pattern.permute.xlu0 15
      %2175 = vperm.xlu0 %2174, %v1629
      %v2176 = vpop.permute.xlu0 %2175
      %2179 = vset.pattern.permute.xlu0 15
      %2180 = vperm.xlu0 %2179, %v1630
      %v2181 = vpop.permute.xlu0 %2180
      %2184 = vset.pattern.permute.xlu0 15
      %2185 = vperm.xlu0 %2184, %v1631
      %v2186 = vpop.permute.xlu0 %2185
      %2189 = vset.pattern.permute.xlu0 15
      %2190 = vperm.xlu0 %2189, %v1632
      %v2191 = vpop.permute.xlu0 %2190
      %2194 = vset.pattern.permute.xlu0 15
      %2195 = vperm.xlu0 %2194, %v1633
      %v2196 = vpop.permute.xlu0 %2195
      %2199 = vset.pattern.permute.xlu0 15
      %2200 = vperm.xlu0 %2199, %v1634
      %v2201 = vpop.permute.xlu0 %2200
      %2204 = vset.pattern.permute.xlu0 15
      %2205 = vperm.xlu0 %2204, %v1635
      %v2206 = vpop.permute.xlu0 %2205
      %2209 = vset.pattern.permute.xlu0 15
      %2210 = vperm.xlu0 %2209, %v1636
      %v2211 = vpop.permute.xlu0 %2210
      %2214 = vset.pattern.permute.xlu0 15
      %2215 = vperm.xlu0 %2214, %v1637
      %v2216 = vpop.permute.xlu0 %2215
      %2219 = vset.pattern.permute.xlu0 15
      %2220 = vperm.xlu0 %2219, %v1638
      %v2221 = vpop.permute.xlu0 %2220
      %2224 = vset.pattern.permute.xlu0 15
      %2225 = vperm.xlu0 %2224, %v1639
      %v2226 = vpop.permute.xlu0 %2225
      %2229 = vset.pattern.permute.xlu0 15
      %2230 = vperm.xlu0 %2229, %v1640
      %v2231 = vpop.permute.xlu0 %2230
      %2234 = vset.pattern.permute.xlu0 15
      %2235 = vperm.xlu0 %2234, %v1641
      %v2236 = vpop.permute.xlu0 %2235
      %2239 = vset.pattern.permute.xlu0 15
      %2240 = vperm.xlu0 %2239, %v1642
      %v2241 = vpop.permute.xlu0 %2240
      %2244 = vset.pattern.permute.xlu0 15
      %2245 = vperm.xlu0 %2244, %v1643
      %v2246 = vpop.permute.xlu0 %2245
      %2249 = vset.pattern.permute.xlu0 15
      %2250 = vperm.xlu0 %2249, %v1644
      %v2251 = vpop.permute.xlu0 %2250
      %2254 = vset.pattern.permute.xlu0 15
      %2255 = vperm.xlu0 %2254, %v1645
      %v2256 = vpop.permute.xlu0 %2255
      %2259 = vset.pattern.permute.xlu0 15
      %2260 = vperm.xlu0 %2259, %v1646
      %v2261 = vpop.permute.xlu0 %2260
      %2264 = vset.pattern.permute.xlu0 15
      %2265 = vperm.xlu0 %2264, %v1647
      %v2266 = vpop.permute.xlu0 %2265
      %2269 = vset.pattern.permute.xlu0 15
      %2270 = vperm.xlu0 %2269, %v1648
      %v2271 = vpop.permute.xlu0 %2270
      %2274 = vset.pattern.permute.xlu0 15
      %2275 = vperm.xlu0 %2274, %v1649
      %v2276 = vpop.permute.xlu0 %2275
      %2279 = vset.pattern.permute.xlu0 15
      %2280 = vperm.xlu0 %2279, %v1650
      %v2281 = vpop.permute.xlu0 %2280
      %2284 = vset.pattern.permute.xlu0 15
      %2285 = vperm.xlu0 %2284, %v1651
      %v2286 = vpop.permute.xlu0 %2285
      %2289 = vset.pattern.permute.xlu0 15
      %2290 = vperm.xlu0 %2289, %v1652
      %v2291 = vpop.permute.xlu0 %2290
      %v2293 = vmul.f32 %v283, %v1656
      %v2294 = vmul.f32 %v284, %v1661
      %v2295 = vmul.f32 %v285, %v1666
      %v2296 = vmul.f32 %v286, %v1671
      %v2297 = vmul.f32 %v287, %v1676
      %v2298 = vmul.f32 %v288, %v1681
      %v2299 = vmul.f32 %v289, %v1686
      %v2300 = vmul.f32 %v290, %v1691
      %v2301 = vmul.f32 %v291, %v1696
      %v2302 = vmul.f32 %v292, %v1701
      %v2303 = vmul.f32 %v293, %v1706
      %v2304 = vmul.f32 %v294, %v1711
      %v2305 = vmul.f32 %v295, %v1716
      %v2306 = vmul.f32 %v296, %v1721
      %v2307 = vmul.f32 %v297, %v1726
      %v2308 = vmul.f32 %v298, %v1731
      %v2309 = vmul.f32 %v299, %v1736
      %v2310 = vmul.f32 %v300, %v1741
      %v2311 = vmul.f32 %v301, %v1746
      %v2312 = vmul.f32 %v302, %v1751
      %v2313 = vmul.f32 %v303, %v1756
      %v2314 = vmul.f32 %v304, %v1761
      %v2315 = vmul.f32 %v305, %v1766
      %v2316 = vmul.f32 %v306, %v1771
      %v2317 = vmul.f32 %v307, %v1776
      %v2318 = vmul.f32 %v308, %v1781
      %v2319 = vmul.f32 %v309, %v1786
      %v2320 = vmul.f32 %v310, %v1791
      %v2321 = vmul.f32 %v311, %v1796
      %v2322 = vmul.f32 %v312, %v1801
      %v2323 = vmul.f32 %v313, %v1806
      %v2324 = vmul.f32 %v314, %v1811
      %v2325 = vmul.f32 %v315, %v1816
      %v2326 = vmul.f32 %v316, %v1821
      %v2327 = vmul.f32 %v317, %v1826
      %v2328 = vmul.f32 %v318, %v1831
      %v2329 = vmul.f32 %v319, %v1836
      %v2330 = vmul.f32 %v320, %v1841
      %v2331 = vmul.f32 %v321, %v1846
      %v2332 = vmul.f32 %v322, %v1851
      %v2333 = vmul.f32 %v323, %v1856
      %v2334 = vmul.f32 %v324, %v1861
      %v2335 = vmul.f32 %v325, %v1866
      %v2336 = vmul.f32 %v326, %v1871
      %v2337 = vmul.f32 %v327, %v1876
      %v2338 = vmul.f32 %v328, %v1881
      %v2339 = vmul.f32 %v329, %v1886
      %v2340 = vmul.f32 %v330, %v1891
      %v2341 = vmul.f32 %v331, %v1896
      %v2342 = vmul.f32 %v332, %v1901
      %v2343 = vmul.f32 %v333, %v1906
      %v2344 = vmul.f32 %v334, %v1911
      %v2345 = vmul.f32 %v335, %v1916
      %v2346 = vmul.f32 %v336, %v1921
      %v2347 = vmul.f32 %v337, %v1926
      %v2348 = vmul.f32 %v338, %v1931
      %v2349 = vmul.f32 %v339, %v1936
      %v2350 = vmul.f32 %v340, %v1941
      %v2351 = vmul.f32 %v341, %v1946
      %v2352 = vmul.f32 %v342, %v1951
      %v2353 = vmul.f32 %v343, %v1956
      %v2354 = vmul.f32 %v344, %v1961
      %v2355 = vmul.f32 %v345, %v1966
      %v2356 = vmul.f32 %v346, %v1971
      %v2357 = vmul.f32 %v347, %v1976
      %v2358 = vmul.f32 %v348, %v1981
      %v2359 = vmul.f32 %v349, %v1986
      %v2360 = vmul.f32 %v350, %v1991
      %v2361 = vmul.f32 %v351, %v1996
      %v2362 = vmul.f32 %v352, %v2001
      %v2363 = vmul.f32 %v353, %v2006
      %v2364 = vmul.f32 %v354, %v2011
      %v2365 = vmul.f32 %v355, %v2016
      %v2366 = vmul.f32 %v356, %v2021
      %v2367 = vmul.f32 %v357, %v2026
      %v2368 = vmul.f32 %v358, %v2031
      %v2369 = vmul.f32 %v359, %v2036
      %v2370 = vmul.f32 %v360, %v2041
      %v2371 = vmul.f32 %v361, %v2046
      %v2372 = vmul.f32 %v362, %v2051
      %v2373 = vmul.f32 %v363, %v2056
      %v2374 = vmul.f32 %v364, %v2061
      %v2375 = vmul.f32 %v365, %v2066
      %v2376 = vmul.f32 %v366, %v2071
      %v2377 = vmul.f32 %v367, %v2076
      %v2378 = vmul.f32 %v368, %v2081
      %v2379 = vmul.f32 %v369, %v2086
      %v2380 = vmul.f32 %v370, %v2091
      %v2381 = vmul.f32 %v371, %v2096
      %v2382 = vmul.f32 %v372, %v2101
      %v2383 = vmul.f32 %v373, %v2106
      %v2384 = vmul.f32 %v374, %v2111
      %v2385 = vmul.f32 %v375, %v2116
      %v2386 = vmul.f32 %v376, %v2121
      %v2387 = vmul.f32 %v377, %v2126
      %v2388 = vmul.f32 %v378, %v2131
      %v2389 = vmul.f32 %v379, %v2136
      %v2390 = vmul.f32 %v380, %v2141
      %v2391 = vmul.f32 %v381, %v2146
      %v2392 = vmul.f32 %v382, %v2151
      %v2393 = vmul.f32 %v383, %v2156
      %v2394 = vmul.f32 %v384, %v2161
      %v2395 = vmul.f32 %v385, %v2166
      %v2396 = vmul.f32 %v386, %v2171
      %v2397 = vmul.f32 %v387, %v2176
      %v2398 = vmul.f32 %v388, %v2181
      %v2399 = vmul.f32 %v389, %v2186
      %v2400 = vmul.f32 %v390, %v2191
      %v2401 = vmul.f32 %v391, %v2196
      %v2402 = vmul.f32 %v392, %v2201
      %v2403 = vmul.f32 %v393, %v2206
      %v2404 = vmul.f32 %v394, %v2211
      %v2405 = vmul.f32 %v395, %v2216
      %v2406 = vmul.f32 %v396, %v2221
      %v2407 = vmul.f32 %v397, %v2226
      %v2408 = vmul.f32 %v398, %v2231
      %v2409 = vmul.f32 %v399, %v2236
      %v2410 = vmul.f32 %v400, %v2241
      %v2411 = vmul.f32 %v401, %v2246
      %v2412 = vmul.f32 %v402, %v2251
      %v2413 = vmul.f32 %v403, %v2256
      %v2414 = vmul.f32 %v404, %v2261
      %v2415 = vmul.f32 %v405, %v2266
      %v2416 = vmul.f32 %v406, %v2271
      %v2417 = vmul.f32 %v407, %v2276
      %v2418 = vmul.f32 %v408, %v2281
      %v2419 = vmul.f32 %v409, %v2286
      %v2420 = vmul.f32 %v410, %v2291
      %vm2421 = vcmask 130048
      %v2422 = vsel %vm2421, %v2293, 0.0
      %v2423 = vrot.slane %v2422, 4
      %v2424 = vadd.f32 %v2422, %v2423
      %v2425 = vrot.slane %v2424, 2
      %v2426 = vadd.f32 %v2424, %v2425
      %v2427 = vrot.slane %v2426, 1
      %v2428 = vadd.f32 %v2426, %v2427
      %v2429 = vsel %vm2421, %v2294, 0.0
      %v2430 = vrot.slane %v2429, 4
      %v2431 = vadd.f32 %v2429, %v2430
      %v2432 = vrot.slane %v2431, 2
      %v2433 = vadd.f32 %v2431, %v2432
      %v2434 = vrot.slane %v2433, 1
      %v2435 = vadd.f32 %v2433, %v2434
      %v2436 = vsel %vm2421, %v2295, 0.0
      %v2437 = vrot.slane %v2436, 4
      %v2438 = vadd.f32 %v2436, %v2437
      %v2439 = vrot.slane %v2438, 2
      %v2440 = vadd.f32 %v2438, %v2439
      %v2441 = vrot.slane %v2440, 1
      %v2442 = vadd.f32 %v2440, %v2441
      %v2443 = vsel %vm2421, %v2296, 0.0
      %v2444 = vrot.slane %v2443, 4
      %v2445 = vadd.f32 %v2443, %v2444
      %v2446 = vrot.slane %v2445, 2
      %v2447 = vadd.f32 %v2445, %v2446
      %v2448 = vrot.slane %v2447, 1
      %v2449 = vadd.f32 %v2447, %v2448
      %v2450 = vsel %vm2421, %v2297, 0.0
      %v2451 = vrot.slane %v2450, 4
      %v2452 = vadd.f32 %v2450, %v2451
      %v2453 = vrot.slane %v2452, 2
      %v2454 = vadd.f32 %v2452, %v2453
      %v2455 = vrot.slane %v2454, 1
      %v2456 = vadd.f32 %v2454, %v2455
      %v2457 = vsel %vm2421, %v2298, 0.0
      %v2458 = vrot.slane %v2457, 4
      %v2459 = vadd.f32 %v2457, %v2458
      %v2460 = vrot.slane %v2459, 2
      %v2461 = vadd.f32 %v2459, %v2460
      %v2462 = vrot.slane %v2461, 1
      %v2463 = vadd.f32 %v2461, %v2462
      %v2464 = vsel %vm2421, %v2299, 0.0
      %v2465 = vrot.slane %v2464, 4
      %v2466 = vadd.f32 %v2464, %v2465
      %v2467 = vrot.slane %v2466, 2
      %v2468 = vadd.f32 %v2466, %v2467
      %v2469 = vrot.slane %v2468, 1
      %v2470 = vadd.f32 %v2468, %v2469
      %v2471 = vsel %vm2421, %v2300, 0.0
      %v2472 = vrot.slane %v2471, 4
      %v2473 = vadd.f32 %v2471, %v2472
      %v2474 = vrot.slane %v2473, 2
      %v2475 = vadd.f32 %v2473, %v2474
      %v2476 = vrot.slane %v2475, 1
      %v2477 = vadd.f32 %v2475, %v2476
      %v2478 = vsel %vm2421, %v2301, 0.0
      %v2479 = vrot.slane %v2478, 4
      %v2480 = vadd.f32 %v2478, %v2479
      %v2481 = vrot.slane %v2480, 2
      %v2482 = vadd.f32 %v2480, %v2481
      %v2483 = vrot.slane %v2482, 1
      %v2484 = vadd.f32 %v2482, %v2483
      %v2485 = vsel %vm2421, %v2302, 0.0
      %v2486 = vrot.slane %v2485, 4
      %v2487 = vadd.f32 %v2485, %v2486
      %v2488 = vrot.slane %v2487, 2
      %v2489 = vadd.f32 %v2487, %v2488
      %v2490 = vrot.slane %v2489, 1
      %v2491 = vadd.f32 %v2489, %v2490
      %v2492 = vsel %vm2421, %v2303, 0.0
      %v2493 = vrot.slane %v2492, 4
      %v2494 = vadd.f32 %v2492, %v2493
      %v2495 = vrot.slane %v2494, 2
      %v2496 = vadd.f32 %v2494, %v2495
      %v2497 = vrot.slane %v2496, 1
      %v2498 = vadd.f32 %v2496, %v2497
      %v2499 = vsel %vm2421, %v2304, 0.0
      %v2500 = vrot.slane %v2499, 4
      %v2501 = vadd.f32 %v2499, %v2500
      %v2502 = vrot.slane %v2501, 2
      %v2503 = vadd.f32 %v2501, %v2502
      %v2504 = vrot.slane %v2503, 1
      %v2505 = vadd.f32 %v2503, %v2504
      %v2506 = vsel %vm2421, %v2305, 0.0
      %v2507 = vrot.slane %v2506, 4
      %v2508 = vadd.f32 %v2506, %v2507
      %v2509 = vrot.slane %v2508, 2
      %v2510 = vadd.f32 %v2508, %v2509
      %v2511 = vrot.slane %v2510, 1
      %v2512 = vadd.f32 %v2510, %v2511
      %v2513 = vsel %vm2421, %v2306, 0.0
      %v2514 = vrot.slane %v2513, 4
      %v2515 = vadd.f32 %v2513, %v2514
      %v2516 = vrot.slane %v2515, 2
      %v2517 = vadd.f32 %v2515, %v2516
      %v2518 = vrot.slane %v2517, 1
      %v2519 = vadd.f32 %v2517, %v2518
      %v2520 = vsel %vm2421, %v2307, 0.0
      %v2521 = vrot.slane %v2520, 4
      %v2522 = vadd.f32 %v2520, %v2521
      %v2523 = vrot.slane %v2522, 2
      %v2524 = vadd.f32 %v2522, %v2523
      %v2525 = vrot.slane %v2524, 1
      %v2526 = vadd.f32 %v2524, %v2525
      %v2527 = vsel %vm2421, %v2308, 0.0
      %v2528 = vrot.slane %v2527, 4
      %v2529 = vadd.f32 %v2527, %v2528
      %v2530 = vrot.slane %v2529, 2
      %v2531 = vadd.f32 %v2529, %v2530
      %v2532 = vrot.slane %v2531, 1
      %v2533 = vadd.f32 %v2531, %v2532
      %v2534 = vsel %vm2421, %v2309, 0.0
      %v2535 = vrot.slane %v2534, 4
      %v2536 = vadd.f32 %v2534, %v2535
      %v2537 = vrot.slane %v2536, 2
      %v2538 = vadd.f32 %v2536, %v2537
      %v2539 = vrot.slane %v2538, 1
      %v2540 = vadd.f32 %v2538, %v2539
      %v2541 = vsel %vm2421, %v2310, 0.0
      %v2542 = vrot.slane %v2541, 4
      %v2543 = vadd.f32 %v2541, %v2542
      %v2544 = vrot.slane %v2543, 2
      %v2545 = vadd.f32 %v2543, %v2544
      %v2546 = vrot.slane %v2545, 1
      %v2547 = vadd.f32 %v2545, %v2546
      %v2548 = vsel %vm2421, %v2311, 0.0
      %v2549 = vrot.slane %v2548, 4
      %v2550 = vadd.f32 %v2548, %v2549
      %v2551 = vrot.slane %v2550, 2
      %v2552 = vadd.f32 %v2550, %v2551
      %v2553 = vrot.slane %v2552, 1
      %v2554 = vadd.f32 %v2552, %v2553
      %v2555 = vsel %vm2421, %v2312, 0.0
      %v2556 = vrot.slane %v2555, 4
      %v2557 = vadd.f32 %v2555, %v2556
      %v2558 = vrot.slane %v2557, 2
      %v2559 = vadd.f32 %v2557, %v2558
      %v2560 = vrot.slane %v2559, 1
      %v2561 = vadd.f32 %v2559, %v2560
      %v2562 = vsel %vm2421, %v2313, 0.0
      %v2563 = vrot.slane %v2562, 4
      %v2564 = vadd.f32 %v2562, %v2563
      %v2565 = vrot.slane %v2564, 2
      %v2566 = vadd.f32 %v2564, %v2565
      %v2567 = vrot.slane %v2566, 1
      %v2568 = vadd.f32 %v2566, %v2567
      %v2569 = vsel %vm2421, %v2314, 0.0
      %v2570 = vrot.slane %v2569, 4
      %v2571 = vadd.f32 %v2569, %v2570
      %v2572 = vrot.slane %v2571, 2
      %v2573 = vadd.f32 %v2571, %v2572
      %v2574 = vrot.slane %v2573, 1
      %v2575 = vadd.f32 %v2573, %v2574
      %v2576 = vsel %vm2421, %v2315, 0.0
      %v2577 = vrot.slane %v2576, 4
      %v2578 = vadd.f32 %v2576, %v2577
      %v2579 = vrot.slane %v2578, 2
      %v2580 = vadd.f32 %v2578, %v2579
      %v2581 = vrot.slane %v2580, 1
      %v2582 = vadd.f32 %v2580, %v2581
      %v2583 = vsel %vm2421, %v2316, 0.0
      %v2584 = vrot.slane %v2583, 4
      %v2585 = vadd.f32 %v2583, %v2584
      %v2586 = vrot.slane %v2585, 2
      %v2587 = vadd.f32 %v2585, %v2586
      %v2588 = vrot.slane %v2587, 1
      %v2589 = vadd.f32 %v2587, %v2588
      %v2590 = vsel %vm2421, %v2317, 0.0
      %v2591 = vrot.slane %v2590, 4
      %v2592 = vadd.f32 %v2590, %v2591
      %v2593 = vrot.slane %v2592, 2
      %v2594 = vadd.f32 %v2592, %v2593
      %v2595 = vrot.slane %v2594, 1
      %v2596 = vadd.f32 %v2594, %v2595
      %v2597 = vsel %vm2421, %v2318, 0.0
      %v2598 = vrot.slane %v2597, 4
      %v2599 = vadd.f32 %v2597, %v2598
      %v2600 = vrot.slane %v2599, 2
      %v2601 = vadd.f32 %v2599, %v2600
      %v2602 = vrot.slane %v2601, 1
      %v2603 = vadd.f32 %v2601, %v2602
      %v2604 = vsel %vm2421, %v2319, 0.0
      %v2605 = vrot.slane %v2604, 4
      %v2606 = vadd.f32 %v2604, %v2605
      %v2607 = vrot.slane %v2606, 2
      %v2608 = vadd.f32 %v2606, %v2607
      %v2609 = vrot.slane %v2608, 1
      %v2610 = vadd.f32 %v2608, %v2609
      %v2611 = vsel %vm2421, %v2320, 0.0
      %v2612 = vrot.slane %v2611, 4
      %v2613 = vadd.f32 %v2611, %v2612
      %v2614 = vrot.slane %v2613, 2
      %v2615 = vadd.f32 %v2613, %v2614
      %v2616 = vrot.slane %v2615, 1
      %v2617 = vadd.f32 %v2615, %v2616
      %v2618 = vsel %vm2421, %v2321, 0.0
      %v2619 = vrot.slane %v2618, 4
      %v2620 = vadd.f32 %v2618, %v2619
      %v2621 = vrot.slane %v2620, 2
      %v2622 = vadd.f32 %v2620, %v2621
      %v2623 = vrot.slane %v2622, 1
      %v2624 = vadd.f32 %v2622, %v2623
      %v2625 = vsel %vm2421, %v2322, 0.0
      %v2626 = vrot.slane %v2625, 4
      %v2627 = vadd.f32 %v2625, %v2626
      %v2628 = vrot.slane %v2627, 2
      %v2629 = vadd.f32 %v2627, %v2628
      %v2630 = vrot.slane %v2629, 1
      %v2631 = vadd.f32 %v2629, %v2630
      %v2632 = vsel %vm2421, %v2323, 0.0
      %v2633 = vrot.slane %v2632, 4
      %v2634 = vadd.f32 %v2632, %v2633
      %v2635 = vrot.slane %v2634, 2
      %v2636 = vadd.f32 %v2634, %v2635
      %v2637 = vrot.slane %v2636, 1
      %v2638 = vadd.f32 %v2636, %v2637
      %v2639 = vsel %vm2421, %v2324, 0.0
      %v2640 = vrot.slane %v2639, 4
      %v2641 = vadd.f32 %v2639, %v2640
      %v2642 = vrot.slane %v2641, 2
      %v2643 = vadd.f32 %v2641, %v2642
      %v2644 = vrot.slane %v2643, 1
      %v2645 = vadd.f32 %v2643, %v2644
      %v2646 = vsel %vm2421, %v2325, 0.0
      %v2647 = vrot.slane %v2646, 4
      %v2648 = vadd.f32 %v2646, %v2647
      %v2649 = vrot.slane %v2648, 2
      %v2650 = vadd.f32 %v2648, %v2649
      %v2651 = vrot.slane %v2650, 1
      %v2652 = vadd.f32 %v2650, %v2651
      %v2653 = vsel %vm2421, %v2326, 0.0
      %v2654 = vrot.slane %v2653, 4
      %v2655 = vadd.f32 %v2653, %v2654
      %v2656 = vrot.slane %v2655, 2
      %v2657 = vadd.f32 %v2655, %v2656
      %v2658 = vrot.slane %v2657, 1
      %v2659 = vadd.f32 %v2657, %v2658
      %v2660 = vsel %vm2421, %v2327, 0.0
      %v2661 = vrot.slane %v2660, 4
      %v2662 = vadd.f32 %v2660, %v2661
      %v2663 = vrot.slane %v2662, 2
      %v2664 = vadd.f32 %v2662, %v2663
      %v2665 = vrot.slane %v2664, 1
      %v2666 = vadd.f32 %v2664, %v2665
      %v2667 = vsel %vm2421, %v2328, 0.0
      %v2668 = vrot.slane %v2667, 4
      %v2669 = vadd.f32 %v2667, %v2668
      %v2670 = vrot.slane %v2669, 2
      %v2671 = vadd.f32 %v2669, %v2670
      %v2672 = vrot.slane %v2671, 1
      %v2673 = vadd.f32 %v2671, %v2672
      %v2674 = vsel %vm2421, %v2329, 0.0
      %v2675 = vrot.slane %v2674, 4
      %v2676 = vadd.f32 %v2674, %v2675
      %v2677 = vrot.slane %v2676, 2
      %v2678 = vadd.f32 %v2676, %v2677
      %v2679 = vrot.slane %v2678, 1
      %v2680 = vadd.f32 %v2678, %v2679
      %v2681 = vsel %vm2421, %v2330, 0.0
      %v2682 = vrot.slane %v2681, 4
      %v2683 = vadd.f32 %v2681, %v2682
      %v2684 = vrot.slane %v2683, 2
      %v2685 = vadd.f32 %v2683, %v2684
      %v2686 = vrot.slane %v2685, 1
      %v2687 = vadd.f32 %v2685, %v2686
      %v2688 = vsel %vm2421, %v2331, 0.0
      %v2689 = vrot.slane %v2688, 4
      %v2690 = vadd.f32 %v2688, %v2689
      %v2691 = vrot.slane %v2690, 2
      %v2692 = vadd.f32 %v2690, %v2691
      %v2693 = vrot.slane %v2692, 1
      %v2694 = vadd.f32 %v2692, %v2693
      %v2695 = vsel %vm2421, %v2332, 0.0
      %v2696 = vrot.slane %v2695, 4
      %v2697 = vadd.f32 %v2695, %v2696
      %v2698 = vrot.slane %v2697, 2
      %v2699 = vadd.f32 %v2697, %v2698
      %v2700 = vrot.slane %v2699, 1
      %v2701 = vadd.f32 %v2699, %v2700
      %v2702 = vsel %vm2421, %v2333, 0.0
      %v2703 = vrot.slane %v2702, 4
      %v2704 = vadd.f32 %v2702, %v2703
      %v2705 = vrot.slane %v2704, 2
      %v2706 = vadd.f32 %v2704, %v2705
      %v2707 = vrot.slane %v2706, 1
      %v2708 = vadd.f32 %v2706, %v2707
      %v2709 = vsel %vm2421, %v2334, 0.0
      %v2710 = vrot.slane %v2709, 4
      %v2711 = vadd.f32 %v2709, %v2710
      %v2712 = vrot.slane %v2711, 2
      %v2713 = vadd.f32 %v2711, %v2712
      %v2714 = vrot.slane %v2713, 1
      %v2715 = vadd.f32 %v2713, %v2714
      %v2716 = vsel %vm2421, %v2335, 0.0
      %v2717 = vrot.slane %v2716, 4
      %v2718 = vadd.f32 %v2716, %v2717
      %v2719 = vrot.slane %v2718, 2
      %v2720 = vadd.f32 %v2718, %v2719
      %v2721 = vrot.slane %v2720, 1
      %v2722 = vadd.f32 %v2720, %v2721
      %v2723 = vsel %vm2421, %v2336, 0.0
      %v2724 = vrot.slane %v2723, 4
      %v2725 = vadd.f32 %v2723, %v2724
      %v2726 = vrot.slane %v2725, 2
      %v2727 = vadd.f32 %v2725, %v2726
      %v2728 = vrot.slane %v2727, 1
      %v2729 = vadd.f32 %v2727, %v2728
      %v2730 = vsel %vm2421, %v2337, 0.0
      %v2731 = vrot.slane %v2730, 4
      %v2732 = vadd.f32 %v2730, %v2731
      %v2733 = vrot.slane %v2732, 2
      %v2734 = vadd.f32 %v2732, %v2733
      %v2735 = vrot.slane %v2734, 1
      %v2736 = vadd.f32 %v2734, %v2735
      %v2737 = vsel %vm2421, %v2338, 0.0
      %v2738 = vrot.slane %v2737, 4
      %v2739 = vadd.f32 %v2737, %v2738
      %v2740 = vrot.slane %v2739, 2
      %v2741 = vadd.f32 %v2739, %v2740
      %v2742 = vrot.slane %v2741, 1
      %v2743 = vadd.f32 %v2741, %v2742
      %v2744 = vsel %vm2421, %v2339, 0.0
      %v2745 = vrot.slane %v2744, 4
      %v2746 = vadd.f32 %v2744, %v2745
      %v2747 = vrot.slane %v2746, 2
      %v2748 = vadd.f32 %v2746, %v2747
      %v2749 = vrot.slane %v2748, 1
      %v2750 = vadd.f32 %v2748, %v2749
      %v2751 = vsel %vm2421, %v2340, 0.0
      %v2752 = vrot.slane %v2751, 4
      %v2753 = vadd.f32 %v2751, %v2752
      %v2754 = vrot.slane %v2753, 2
      %v2755 = vadd.f32 %v2753, %v2754
      %v2756 = vrot.slane %v2755, 1
      %v2757 = vadd.f32 %v2755, %v2756
      %v2758 = vsel %vm2421, %v2341, 0.0
      %v2759 = vrot.slane %v2758, 4
      %v2760 = vadd.f32 %v2758, %v2759
      %v2761 = vrot.slane %v2760, 2
      %v2762 = vadd.f32 %v2760, %v2761
      %v2763 = vrot.slane %v2762, 1
      %v2764 = vadd.f32 %v2762, %v2763
      %v2765 = vsel %vm2421, %v2342, 0.0
      %v2766 = vrot.slane %v2765, 4
      %v2767 = vadd.f32 %v2765, %v2766
      %v2768 = vrot.slane %v2767, 2
      %v2769 = vadd.f32 %v2767, %v2768
      %v2770 = vrot.slane %v2769, 1
      %v2771 = vadd.f32 %v2769, %v2770
      %v2772 = vsel %vm2421, %v2343, 0.0
      %v2773 = vrot.slane %v2772, 4
      %v2774 = vadd.f32 %v2772, %v2773
      %v2775 = vrot.slane %v2774, 2
      %v2776 = vadd.f32 %v2774, %v2775
      %v2777 = vrot.slane %v2776, 1
      %v2778 = vadd.f32 %v2776, %v2777
      %v2779 = vsel %vm2421, %v2344, 0.0
      %v2780 = vrot.slane %v2779, 4
      %v2781 = vadd.f32 %v2779, %v2780
      %v2782 = vrot.slane %v2781, 2
      %v2783 = vadd.f32 %v2781, %v2782
      %v2784 = vrot.slane %v2783, 1
      %v2785 = vadd.f32 %v2783, %v2784
      %v2786 = vsel %vm2421, %v2345, 0.0
      %v2787 = vrot.slane %v2786, 4
      %v2788 = vadd.f32 %v2786, %v2787
      %v2789 = vrot.slane %v2788, 2
      %v2790 = vadd.f32 %v2788, %v2789
      %v2791 = vrot.slane %v2790, 1
      %v2792 = vadd.f32 %v2790, %v2791
      %v2793 = vsel %vm2421, %v2346, 0.0
      %v2794 = vrot.slane %v2793, 4
      %v2795 = vadd.f32 %v2793, %v2794
      %v2796 = vrot.slane %v2795, 2
      %v2797 = vadd.f32 %v2795, %v2796
      %v2798 = vrot.slane %v2797, 1
      %v2799 = vadd.f32 %v2797, %v2798
      %v2800 = vsel %vm2421, %v2347, 0.0
      %v2801 = vrot.slane %v2800, 4
      %v2802 = vadd.f32 %v2800, %v2801
      %v2803 = vrot.slane %v2802, 2
      %v2804 = vadd.f32 %v2802, %v2803
      %v2805 = vrot.slane %v2804, 1
      %v2806 = vadd.f32 %v2804, %v2805
      %v2807 = vsel %vm2421, %v2348, 0.0
      %v2808 = vrot.slane %v2807, 4
      %v2809 = vadd.f32 %v2807, %v2808
      %v2810 = vrot.slane %v2809, 2
      %v2811 = vadd.f32 %v2809, %v2810
      %v2812 = vrot.slane %v2811, 1
      %v2813 = vadd.f32 %v2811, %v2812
      %v2814 = vsel %vm2421, %v2349, 0.0
      %v2815 = vrot.slane %v2814, 4
      %v2816 = vadd.f32 %v2814, %v2815
      %v2817 = vrot.slane %v2816, 2
      %v2818 = vadd.f32 %v2816, %v2817
      %v2819 = vrot.slane %v2818, 1
      %v2820 = vadd.f32 %v2818, %v2819
      %v2821 = vsel %vm2421, %v2350, 0.0
      %v2822 = vrot.slane %v2821, 4
      %v2823 = vadd.f32 %v2821, %v2822
      %v2824 = vrot.slane %v2823, 2
      %v2825 = vadd.f32 %v2823, %v2824
      %v2826 = vrot.slane %v2825, 1
      %v2827 = vadd.f32 %v2825, %v2826
      %v2828 = vsel %vm2421, %v2351, 0.0
      %v2829 = vrot.slane %v2828, 4
      %v2830 = vadd.f32 %v2828, %v2829
      %v2831 = vrot.slane %v2830, 2
      %v2832 = vadd.f32 %v2830, %v2831
      %v2833 = vrot.slane %v2832, 1
      %v2834 = vadd.f32 %v2832, %v2833
      %v2835 = vsel %vm2421, %v2352, 0.0
      %v2836 = vrot.slane %v2835, 4
      %v2837 = vadd.f32 %v2835, %v2836
      %v2838 = vrot.slane %v2837, 2
      %v2839 = vadd.f32 %v2837, %v2838
      %v2840 = vrot.slane %v2839, 1
      %v2841 = vadd.f32 %v2839, %v2840
      %v2842 = vsel %vm2421, %v2353, 0.0
      %v2843 = vrot.slane %v2842, 4
      %v2844 = vadd.f32 %v2842, %v2843
      %v2845 = vrot.slane %v2844, 2
      %v2846 = vadd.f32 %v2844, %v2845
      %v2847 = vrot.slane %v2846, 1
      %v2848 = vadd.f32 %v2846, %v2847
      %v2849 = vsel %vm2421, %v2354, 0.0
      %v2850 = vrot.slane %v2849, 4
      %v2851 = vadd.f32 %v2849, %v2850
      %v2852 = vrot.slane %v2851, 2
      %v2853 = vadd.f32 %v2851, %v2852
      %v2854 = vrot.slane %v2853, 1
      %v2855 = vadd.f32 %v2853, %v2854
      %v2856 = vsel %vm2421, %v2355, 0.0
      %v2857 = vrot.slane %v2856, 4
      %v2858 = vadd.f32 %v2856, %v2857
      %v2859 = vrot.slane %v2858, 2
      %v2860 = vadd.f32 %v2858, %v2859
      %v2861 = vrot.slane %v2860, 1
      %v2862 = vadd.f32 %v2860, %v2861
      %v2863 = vsel %vm2421, %v2356, 0.0
      %v2864 = vrot.slane %v2863, 4
      %v2865 = vadd.f32 %v2863, %v2864
      %v2866 = vrot.slane %v2865, 2
      %v2867 = vadd.f32 %v2865, %v2866
      %v2868 = vrot.slane %v2867, 1
      %v2869 = vadd.f32 %v2867, %v2868
      %v2870 = vsel %vm2421, %v2357, 0.0
      %v2871 = vrot.slane %v2870, 4
      %v2872 = vadd.f32 %v2870, %v2871
      %v2873 = vrot.slane %v2872, 2
      %v2874 = vadd.f32 %v2872, %v2873
      %v2875 = vrot.slane %v2874, 1
      %v2876 = vadd.f32 %v2874, %v2875
      %v2877 = vsel %vm2421, %v2358, 0.0
      %v2878 = vrot.slane %v2877, 4
      %v2879 = vadd.f32 %v2877, %v2878
      %v2880 = vrot.slane %v2879, 2
      %v2881 = vadd.f32 %v2879, %v2880
      %v2882 = vrot.slane %v2881, 1
      %v2883 = vadd.f32 %v2881, %v2882
      %v2884 = vsel %vm2421, %v2359, 0.0
      %v2885 = vrot.slane %v2884, 4
      %v2886 = vadd.f32 %v2884, %v2885
      %v2887 = vrot.slane %v2886, 2
      %v2888 = vadd.f32 %v2886, %v2887
      %v2889 = vrot.slane %v2888, 1
      %v2890 = vadd.f32 %v2888, %v2889
      %v2891 = vsel %vm2421, %v2360, 0.0
      %v2892 = vrot.slane %v2891, 4
      %v2893 = vadd.f32 %v2891, %v2892
      %v2894 = vrot.slane %v2893, 2
      %v2895 = vadd.f32 %v2893, %v2894
      %v2896 = vrot.slane %v2895, 1
      %v2897 = vadd.f32 %v2895, %v2896
      %v2898 = vsel %vm2421, %v2361, 0.0
      %v2899 = vrot.slane %v2898, 4
      %v2900 = vadd.f32 %v2898, %v2899
      %v2901 = vrot.slane %v2900, 2
      %v2902 = vadd.f32 %v2900, %v2901
      %v2903 = vrot.slane %v2902, 1
      %v2904 = vadd.f32 %v2902, %v2903
      %v2905 = vsel %vm2421, %v2362, 0.0
      %v2906 = vrot.slane %v2905, 4
      %v2907 = vadd.f32 %v2905, %v2906
      %v2908 = vrot.slane %v2907, 2
      %v2909 = vadd.f32 %v2907, %v2908
      %v2910 = vrot.slane %v2909, 1
      %v2911 = vadd.f32 %v2909, %v2910
      %v2912 = vsel %vm2421, %v2363, 0.0
      %v2913 = vrot.slane %v2912, 4
      %v2914 = vadd.f32 %v2912, %v2913
      %v2915 = vrot.slane %v2914, 2
      %v2916 = vadd.f32 %v2914, %v2915
      %v2917 = vrot.slane %v2916, 1
      %v2918 = vadd.f32 %v2916, %v2917
      %v2919 = vsel %vm2421, %v2364, 0.0
      %v2920 = vrot.slane %v2919, 4
      %v2921 = vadd.f32 %v2919, %v2920
      %v2922 = vrot.slane %v2921, 2
      %v2923 = vadd.f32 %v2921, %v2922
      %v2924 = vrot.slane %v2923, 1
      %v2925 = vadd.f32 %v2923, %v2924
      %v2926 = vsel %vm2421, %v2365, 0.0
      %v2927 = vrot.slane %v2926, 4
      %v2928 = vadd.f32 %v2926, %v2927
      %v2929 = vrot.slane %v2928, 2
      %v2930 = vadd.f32 %v2928, %v2929
      %v2931 = vrot.slane %v2930, 1
      %v2932 = vadd.f32 %v2930, %v2931
      %v2933 = vsel %vm2421, %v2366, 0.0
      %v2934 = vrot.slane %v2933, 4
      %v2935 = vadd.f32 %v2933, %v2934
      %v2936 = vrot.slane %v2935, 2
      %v2937 = vadd.f32 %v2935, %v2936
      %v2938 = vrot.slane %v2937, 1
      %v2939 = vadd.f32 %v2937, %v2938
      %v2940 = vsel %vm2421, %v2367, 0.0
      %v2941 = vrot.slane %v2940, 4
      %v2942 = vadd.f32 %v2940, %v2941
      %v2943 = vrot.slane %v2942, 2
      %v2944 = vadd.f32 %v2942, %v2943
      %v2945 = vrot.slane %v2944, 1
      %v2946 = vadd.f32 %v2944, %v2945
      %v2947 = vsel %vm2421, %v2368, 0.0
      %v2948 = vrot.slane %v2947, 4
      %v2949 = vadd.f32 %v2947, %v2948
      %v2950 = vrot.slane %v2949, 2
      %v2951 = vadd.f32 %v2949, %v2950
      %v2952 = vrot.slane %v2951, 1
      %v2953 = vadd.f32 %v2951, %v2952
      %v2954 = vsel %vm2421, %v2369, 0.0
      %v2955 = vrot.slane %v2954, 4
      %v2956 = vadd.f32 %v2954, %v2955
      %v2957 = vrot.slane %v2956, 2
      %v2958 = vadd.f32 %v2956, %v2957
      %v2959 = vrot.slane %v2958, 1
      %v2960 = vadd.f32 %v2958, %v2959
      %v2961 = vsel %vm2421, %v2370, 0.0
      %v2962 = vrot.slane %v2961, 4
      %v2963 = vadd.f32 %v2961, %v2962
      %v2964 = vrot.slane %v2963, 2
      %v2965 = vadd.f32 %v2963, %v2964
      %v2966 = vrot.slane %v2965, 1
      %v2967 = vadd.f32 %v2965, %v2966
      %v2968 = vsel %vm2421, %v2371, 0.0
      %v2969 = vrot.slane %v2968, 4
      %v2970 = vadd.f32 %v2968, %v2969
      %v2971 = vrot.slane %v2970, 2
      %v2972 = vadd.f32 %v2970, %v2971
      %v2973 = vrot.slane %v2972, 1
      %v2974 = vadd.f32 %v2972, %v2973
      %v2975 = vsel %vm2421, %v2372, 0.0
      %v2976 = vrot.slane %v2975, 4
      %v2977 = vadd.f32 %v2975, %v2976
      %v2978 = vrot.slane %v2977, 2
      %v2979 = vadd.f32 %v2977, %v2978
      %v2980 = vrot.slane %v2979, 1
      %v2981 = vadd.f32 %v2979, %v2980
      %v2982 = vsel %vm2421, %v2373, 0.0
      %v2983 = vrot.slane %v2982, 4
      %v2984 = vadd.f32 %v2982, %v2983
      %v2985 = vrot.slane %v2984, 2
      %v2986 = vadd.f32 %v2984, %v2985
      %v2987 = vrot.slane %v2986, 1
      %v2988 = vadd.f32 %v2986, %v2987
      %v2989 = vsel %vm2421, %v2374, 0.0
      %v2990 = vrot.slane %v2989, 4
      %v2991 = vadd.f32 %v2989, %v2990
      %v2992 = vrot.slane %v2991, 2
      %v2993 = vadd.f32 %v2991, %v2992
      %v2994 = vrot.slane %v2993, 1
      %v2995 = vadd.f32 %v2993, %v2994
      %v2996 = vsel %vm2421, %v2375, 0.0
      %v2997 = vrot.slane %v2996, 4
      %v2998 = vadd.f32 %v2996, %v2997
      %v2999 = vrot.slane %v2998, 2
      %v3000 = vadd.f32 %v2998, %v2999
      %v3001 = vrot.slane %v3000, 1
      %v3002 = vadd.f32 %v3000, %v3001
      %v3003 = vsel %vm2421, %v2376, 0.0
      %v3004 = vrot.slane %v3003, 4
      %v3005 = vadd.f32 %v3003, %v3004
      %v3006 = vrot.slane %v3005, 2
      %v3007 = vadd.f32 %v3005, %v3006
      %v3008 = vrot.slane %v3007, 1
      %v3009 = vadd.f32 %v3007, %v3008
      %v3010 = vsel %vm2421, %v2377, 0.0
      %v3011 = vrot.slane %v3010, 4
      %v3012 = vadd.f32 %v3010, %v3011
      %v3013 = vrot.slane %v3012, 2
      %v3014 = vadd.f32 %v3012, %v3013
      %v3015 = vrot.slane %v3014, 1
      %v3016 = vadd.f32 %v3014, %v3015
      %v3017 = vsel %vm2421, %v2378, 0.0
      %v3018 = vrot.slane %v3017, 4
      %v3019 = vadd.f32 %v3017, %v3018
      %v3020 = vrot.slane %v3019, 2
      %v3021 = vadd.f32 %v3019, %v3020
      %v3022 = vrot.slane %v3021, 1
      %v3023 = vadd.f32 %v3021, %v3022
      %v3024 = vsel %vm2421, %v2379, 0.0
      %v3025 = vrot.slane %v3024, 4
      %v3026 = vadd.f32 %v3024, %v3025
      %v3027 = vrot.slane %v3026, 2
      %v3028 = vadd.f32 %v3026, %v3027
      %v3029 = vrot.slane %v3028, 1
      %v3030 = vadd.f32 %v3028, %v3029
      %v3031 = vsel %vm2421, %v2380, 0.0
      %v3032 = vrot.slane %v3031, 4
      %v3033 = vadd.f32 %v3031, %v3032
      %v3034 = vrot.slane %v3033, 2
      %v3035 = vadd.f32 %v3033, %v3034
      %v3036 = vrot.slane %v3035, 1
      %v3037 = vadd.f32 %v3035, %v3036
      %v3038 = vsel %vm2421, %v2381, 0.0
      %v3039 = vrot.slane %v3038, 4
      %v3040 = vadd.f32 %v3038, %v3039
      %v3041 = vrot.slane %v3040, 2
      %v3042 = vadd.f32 %v3040, %v3041
      %v3043 = vrot.slane %v3042, 1
      %v3044 = vadd.f32 %v3042, %v3043
      %v3045 = vsel %vm2421, %v2382, 0.0
      %v3046 = vrot.slane %v3045, 4
      %v3047 = vadd.f32 %v3045, %v3046
      %v3048 = vrot.slane %v3047, 2
      %v3049 = vadd.f32 %v3047, %v3048
      %v3050 = vrot.slane %v3049, 1
      %v3051 = vadd.f32 %v3049, %v3050
      %v3052 = vsel %vm2421, %v2383, 0.0
      %v3053 = vrot.slane %v3052, 4
      %v3054 = vadd.f32 %v3052, %v3053
      %v3055 = vrot.slane %v3054, 2
      %v3056 = vadd.f32 %v3054, %v3055
      %v3057 = vrot.slane %v3056, 1
      %v3058 = vadd.f32 %v3056, %v3057
      %v3059 = vsel %vm2421, %v2384, 0.0
      %v3060 = vrot.slane %v3059, 4
      %v3061 = vadd.f32 %v3059, %v3060
      %v3062 = vrot.slane %v3061, 2
      %v3063 = vadd.f32 %v3061, %v3062
      %v3064 = vrot.slane %v3063, 1
      %v3065 = vadd.f32 %v3063, %v3064
      %v3066 = vsel %vm2421, %v2385, 0.0
      %v3067 = vrot.slane %v3066, 4
      %v3068 = vadd.f32 %v3066, %v3067
      %v3069 = vrot.slane %v3068, 2
      %v3070 = vadd.f32 %v3068, %v3069
      %v3071 = vrot.slane %v3070, 1
      %v3072 = vadd.f32 %v3070, %v3071
      %v3073 = vsel %vm2421, %v2386, 0.0
      %v3074 = vrot.slane %v3073, 4
      %v3075 = vadd.f32 %v3073, %v3074
      %v3076 = vrot.slane %v3075, 2
      %v3077 = vadd.f32 %v3075, %v3076
      %v3078 = vrot.slane %v3077, 1
      %v3079 = vadd.f32 %v3077, %v3078
      %v3080 = vsel %vm2421, %v2387, 0.0
      %v3081 = vrot.slane %v3080, 4
      %v3082 = vadd.f32 %v3080, %v3081
      %v3083 = vrot.slane %v3082, 2
      %v3084 = vadd.f32 %v3082, %v3083
      %v3085 = vrot.slane %v3084, 1
      %v3086 = vadd.f32 %v3084, %v3085
      %v3087 = vsel %vm2421, %v2388, 0.0
      %v3088 = vrot.slane %v3087, 4
      %v3089 = vadd.f32 %v3087, %v3088
      %v3090 = vrot.slane %v3089, 2
      %v3091 = vadd.f32 %v3089, %v3090
      %v3092 = vrot.slane %v3091, 1
      %v3093 = vadd.f32 %v3091, %v3092
      %v3094 = vsel %vm2421, %v2389, 0.0
      %v3095 = vrot.slane %v3094, 4
      %v3096 = vadd.f32 %v3094, %v3095
      %v3097 = vrot.slane %v3096, 2
      %v3098 = vadd.f32 %v3096, %v3097
      %v3099 = vrot.slane %v3098, 1
      %v3100 = vadd.f32 %v3098, %v3099
      %v3101 = vsel %vm2421, %v2390, 0.0
      %v3102 = vrot.slane %v3101, 4
      %v3103 = vadd.f32 %v3101, %v3102
      %v3104 = vrot.slane %v3103, 2
      %v3105 = vadd.f32 %v3103, %v3104
      %v3106 = vrot.slane %v3105, 1
      %v3107 = vadd.f32 %v3105, %v3106
      %v3108 = vsel %vm2421, %v2391, 0.0
      %v3109 = vrot.slane %v3108, 4
      %v3110 = vadd.f32 %v3108, %v3109
      %v3111 = vrot.slane %v3110, 2
      %v3112 = vadd.f32 %v3110, %v3111
      %v3113 = vrot.slane %v3112, 1
      %v3114 = vadd.f32 %v3112, %v3113
      %v3115 = vsel %vm2421, %v2392, 0.0
      %v3116 = vrot.slane %v3115, 4
      %v3117 = vadd.f32 %v3115, %v3116
      %v3118 = vrot.slane %v3117, 2
      %v3119 = vadd.f32 %v3117, %v3118
      %v3120 = vrot.slane %v3119, 1
      %v3121 = vadd.f32 %v3119, %v3120
      %v3122 = vsel %vm2421, %v2393, 0.0
      %v3123 = vrot.slane %v3122, 4
      %v3124 = vadd.f32 %v3122, %v3123
      %v3125 = vrot.slane %v3124, 2
      %v3126 = vadd.f32 %v3124, %v3125
      %v3127 = vrot.slane %v3126, 1
      %v3128 = vadd.f32 %v3126, %v3127
      %v3129 = vsel %vm2421, %v2394, 0.0
      %v3130 = vrot.slane %v3129, 4
      %v3131 = vadd.f32 %v3129, %v3130
      %v3132 = vrot.slane %v3131, 2
      %v3133 = vadd.f32 %v3131, %v3132
      %v3134 = vrot.slane %v3133, 1
      %v3135 = vadd.f32 %v3133, %v3134
      %v3136 = vsel %vm2421, %v2395, 0.0
      %v3137 = vrot.slane %v3136, 4
      %v3138 = vadd.f32 %v3136, %v3137
      %v3139 = vrot.slane %v3138, 2
      %v3140 = vadd.f32 %v3138, %v3139
      %v3141 = vrot.slane %v3140, 1
      %v3142 = vadd.f32 %v3140, %v3141
      %v3143 = vsel %vm2421, %v2396, 0.0
      %v3144 = vrot.slane %v3143, 4
      %v3145 = vadd.f32 %v3143, %v3144
      %v3146 = vrot.slane %v3145, 2
      %v3147 = vadd.f32 %v3145, %v3146
      %v3148 = vrot.slane %v3147, 1
      %v3149 = vadd.f32 %v3147, %v3148
      %v3150 = vsel %vm2421, %v2397, 0.0
      %v3151 = vrot.slane %v3150, 4
      %v3152 = vadd.f32 %v3150, %v3151
      %v3153 = vrot.slane %v3152, 2
      %v3154 = vadd.f32 %v3152, %v3153
      %v3155 = vrot.slane %v3154, 1
      %v3156 = vadd.f32 %v3154, %v3155
      %v3157 = vsel %vm2421, %v2398, 0.0
      %v3158 = vrot.slane %v3157, 4
      %v3159 = vadd.f32 %v3157, %v3158
      %v3160 = vrot.slane %v3159, 2
      %v3161 = vadd.f32 %v3159, %v3160
      %v3162 = vrot.slane %v3161, 1
      %v3163 = vadd.f32 %v3161, %v3162
      %v3164 = vsel %vm2421, %v2399, 0.0
      %v3165 = vrot.slane %v3164, 4
      %v3166 = vadd.f32 %v3164, %v3165
      %v3167 = vrot.slane %v3166, 2
      %v3168 = vadd.f32 %v3166, %v3167
      %v3169 = vrot.slane %v3168, 1
      %v3170 = vadd.f32 %v3168, %v3169
      %v3171 = vsel %vm2421, %v2400, 0.0
      %v3172 = vrot.slane %v3171, 4
      %v3173 = vadd.f32 %v3171, %v3172
      %v3174 = vrot.slane %v3173, 2
      %v3175 = vadd.f32 %v3173, %v3174
      %v3176 = vrot.slane %v3175, 1
      %v3177 = vadd.f32 %v3175, %v3176
      %v3178 = vsel %vm2421, %v2401, 0.0
      %v3179 = vrot.slane %v3178, 4
      %v3180 = vadd.f32 %v3178, %v3179
      %v3181 = vrot.slane %v3180, 2
      %v3182 = vadd.f32 %v3180, %v3181
      %v3183 = vrot.slane %v3182, 1
      %v3184 = vadd.f32 %v3182, %v3183
      %v3185 = vsel %vm2421, %v2402, 0.0
      %v3186 = vrot.slane %v3185, 4
      %v3187 = vadd.f32 %v3185, %v3186
      %v3188 = vrot.slane %v3187, 2
      %v3189 = vadd.f32 %v3187, %v3188
      %v3190 = vrot.slane %v3189, 1
      %v3191 = vadd.f32 %v3189, %v3190
      %v3192 = vsel %vm2421, %v2403, 0.0
      %v3193 = vrot.slane %v3192, 4
      %v3194 = vadd.f32 %v3192, %v3193
      %v3195 = vrot.slane %v3194, 2
      %v3196 = vadd.f32 %v3194, %v3195
      %v3197 = vrot.slane %v3196, 1
      %v3198 = vadd.f32 %v3196, %v3197
      %v3199 = vsel %vm2421, %v2404, 0.0
      %v3200 = vrot.slane %v3199, 4
      %v3201 = vadd.f32 %v3199, %v3200
      %v3202 = vrot.slane %v3201, 2
      %v3203 = vadd.f32 %v3201, %v3202
      %v3204 = vrot.slane %v3203, 1
      %v3205 = vadd.f32 %v3203, %v3204
      %v3206 = vsel %vm2421, %v2405, 0.0
      %v3207 = vrot.slane %v3206, 4
      %v3208 = vadd.f32 %v3206, %v3207
      %v3209 = vrot.slane %v3208, 2
      %v3210 = vadd.f32 %v3208, %v3209
      %v3211 = vrot.slane %v3210, 1
      %v3212 = vadd.f32 %v3210, %v3211
      %v3213 = vsel %vm2421, %v2406, 0.0
      %v3214 = vrot.slane %v3213, 4
      %v3215 = vadd.f32 %v3213, %v3214
      %v3216 = vrot.slane %v3215, 2
      %v3217 = vadd.f32 %v3215, %v3216
      %v3218 = vrot.slane %v3217, 1
      %v3219 = vadd.f32 %v3217, %v3218
      %v3220 = vsel %vm2421, %v2407, 0.0
      %v3221 = vrot.slane %v3220, 4
      %v3222 = vadd.f32 %v3220, %v3221
      %v3223 = vrot.slane %v3222, 2
      %v3224 = vadd.f32 %v3222, %v3223
      %v3225 = vrot.slane %v3224, 1
      %v3226 = vadd.f32 %v3224, %v3225
      %v3227 = vsel %vm2421, %v2408, 0.0
      %v3228 = vrot.slane %v3227, 4
      %v3229 = vadd.f32 %v3227, %v3228
      %v3230 = vrot.slane %v3229, 2
      %v3231 = vadd.f32 %v3229, %v3230
      %v3232 = vrot.slane %v3231, 1
      %v3233 = vadd.f32 %v3231, %v3232
      %v3234 = vsel %vm2421, %v2409, 0.0
      %v3235 = vrot.slane %v3234, 4
      %v3236 = vadd.f32 %v3234, %v3235
      %v3237 = vrot.slane %v3236, 2
      %v3238 = vadd.f32 %v3236, %v3237
      %v3239 = vrot.slane %v3238, 1
      %v3240 = vadd.f32 %v3238, %v3239
      %v3241 = vsel %vm2421, %v2410, 0.0
      %v3242 = vrot.slane %v3241, 4
      %v3243 = vadd.f32 %v3241, %v3242
      %v3244 = vrot.slane %v3243, 2
      %v3245 = vadd.f32 %v3243, %v3244
      %v3246 = vrot.slane %v3245, 1
      %v3247 = vadd.f32 %v3245, %v3246
      %v3248 = vsel %vm2421, %v2411, 0.0
      %v3249 = vrot.slane %v3248, 4
      %v3250 = vadd.f32 %v3248, %v3249
      %v3251 = vrot.slane %v3250, 2
      %v3252 = vadd.f32 %v3250, %v3251
      %v3253 = vrot.slane %v3252, 1
      %v3254 = vadd.f32 %v3252, %v3253
      %v3255 = vsel %vm2421, %v2412, 0.0
      %v3256 = vrot.slane %v3255, 4
      %v3257 = vadd.f32 %v3255, %v3256
      %v3258 = vrot.slane %v3257, 2
      %v3259 = vadd.f32 %v3257, %v3258
      %v3260 = vrot.slane %v3259, 1
      %v3261 = vadd.f32 %v3259, %v3260
      %v3262 = vsel %vm2421, %v2413, 0.0
      %v3263 = vrot.slane %v3262, 4
      %v3264 = vadd.f32 %v3262, %v3263
      %v3265 = vrot.slane %v3264, 2
      %v3266 = vadd.f32 %v3264, %v3265
      %v3267 = vrot.slane %v3266, 1
      %v3268 = vadd.f32 %v3266, %v3267
      %v3269 = vsel %vm2421, %v2414, 0.0
      %v3270 = vrot.slane %v3269, 4
      %v3271 = vadd.f32 %v3269, %v3270
      %v3272 = vrot.slane %v3271, 2
      %v3273 = vadd.f32 %v3271, %v3272
      %v3274 = vrot.slane %v3273, 1
      %v3275 = vadd.f32 %v3273, %v3274
      %v3276 = vsel %vm2421, %v2415, 0.0
      %v3277 = vrot.slane %v3276, 4
      %v3278 = vadd.f32 %v3276, %v3277
      %v3279 = vrot.slane %v3278, 2
      %v3280 = vadd.f32 %v3278, %v3279
      %v3281 = vrot.slane %v3280, 1
      %v3282 = vadd.f32 %v3280, %v3281
      %v3283 = vsel %vm2421, %v2416, 0.0
      %v3284 = vrot.slane %v3283, 4
      %v3285 = vadd.f32 %v3283, %v3284
      %v3286 = vrot.slane %v3285, 2
      %v3287 = vadd.f32 %v3285, %v3286
      %v3288 = vrot.slane %v3287, 1
      %v3289 = vadd.f32 %v3287, %v3288
      %v3290 = vsel %vm2421, %v2417, 0.0
      %v3291 = vrot.slane %v3290, 4
      %v3292 = vadd.f32 %v3290, %v3291
      %v3293 = vrot.slane %v3292, 2
      %v3294 = vadd.f32 %v3292, %v3293
      %v3295 = vrot.slane %v3294, 1
      %v3296 = vadd.f32 %v3294, %v3295
      %v3297 = vsel %vm2421, %v2418, 0.0
      %v3298 = vrot.slane %v3297, 4
      %v3299 = vadd.f32 %v3297, %v3298
      %v3300 = vrot.slane %v3299, 2
      %v3301 = vadd.f32 %v3299, %v3300
      %v3302 = vrot.slane %v3301, 1
      %v3303 = vadd.f32 %v3301, %v3302
      %v3304 = vsel %vm2421, %v2419, 0.0
      %v3305 = vrot.slane %v3304, 4
      %v3306 = vadd.f32 %v3304, %v3305
      %v3307 = vrot.slane %v3306, 2
      %v3308 = vadd.f32 %v3306, %v3307
      %v3309 = vrot.slane %v3308, 1
      %v3310 = vadd.f32 %v3308, %v3309
      %v3311 = vsel %vm2421, %v2420, 0.0
      %v3312 = vrot.slane %v3311, 4
      %v3313 = vadd.f32 %v3311, %v3312
      %v3314 = vrot.slane %v3313, 2
      %v3315 = vadd.f32 %v3313, %v3314
      %v3316 = vrot.slane %v3315, 1
      %v3317 = vadd.f32 %v3315, %v3316
      %v3318 = vld [vmem:[%s1] sm:$0xf]
      %v3319 = vld [vmem:[%s1 + $0x4] sm:$0xf]
      %v3320 = vld [vmem:[%s2] sm:$0x1]
      %v3321 = vpack.c.bf16 %v2428, %v2428
      %v3322 = vpack.c.bf16 %v2435, %v2435
      %v3323 = vpack.c.bf16 %v2442, %v2442
      %v3324 = vpack.c.bf16 %v2449, %v2449
      %v3325 = vpack.c.bf16 %v2456, %v2456
      %v3326 = vpack.c.bf16 %v2463, %v2463
      %v3327 = vpack.c.bf16 %v2470, %v2470
      %v3328 = vpack.c.bf16 %v2477, %v2477
      %v3329 = vpack.c.bf16 %v2484, %v2484
      %v3330 = vpack.c.bf16 %v2491, %v2491
      %v3331 = vpack.c.bf16 %v2498, %v2498
      %v3332 = vpack.c.bf16 %v2505, %v2505
      %v3333 = vpack.c.bf16 %v2512, %v2512
      %v3334 = vpack.c.bf16 %v2519, %v2519
      %v3335 = vpack.c.bf16 %v2526, %v2526
      %v3336 = vpack.c.bf16 %v2533, %v2533
      %v3337 = vpack.c.bf16 %v2540, %v2540
      %v3338 = vpack.c.bf16 %v2547, %v2547
      %v3339 = vpack.c.bf16 %v2554, %v2554
      %v3340 = vpack.c.bf16 %v2561, %v2561
      %v3341 = vpack.c.bf16 %v2568, %v2568
      %v3342 = vpack.c.bf16 %v2575, %v2575
      %v3343 = vpack.c.bf16 %v2582, %v2582
      %v3344 = vpack.c.bf16 %v2589, %v2589
      %v3345 = vpack.c.bf16 %v2596, %v2596
      %v3346 = vpack.c.bf16 %v2603, %v2603
      %v3347 = vpack.c.bf16 %v2610, %v2610
      %v3348 = vpack.c.bf16 %v2617, %v2617
      %v3349 = vpack.c.bf16 %v2624, %v2624
      %v3350 = vpack.c.bf16 %v2631, %v2631
      %v3351 = vpack.c.bf16 %v2638, %v2638
      %v3352 = vpack.c.bf16 %v2645, %v2645
      %v3353 = vpack.c.bf16 %v2652, %v2652
      %v3354 = vpack.c.bf16 %v2659, %v2659
      %v3355 = vpack.c.bf16 %v2666, %v2666
      %v3356 = vpack.c.bf16 %v2673, %v2673
      %v3357 = vpack.c.bf16 %v2680, %v2680
      %v3358 = vpack.c.bf16 %v2687, %v2687
      %v3359 = vpack.c.bf16 %v2694, %v2694
      %v3360 = vpack.c.bf16 %v2701, %v2701
      %v3361 = vpack.c.bf16 %v2708, %v2708
      %v3362 = vpack.c.bf16 %v2715, %v2715
      %v3363 = vpack.c.bf16 %v2722, %v2722
      %v3364 = vpack.c.bf16 %v2729, %v2729
      %v3365 = vpack.c.bf16 %v2736, %v2736
      %v3366 = vpack.c.bf16 %v2743, %v2743
      %v3367 = vpack.c.bf16 %v2750, %v2750
      %v3368 = vpack.c.bf16 %v2757, %v2757
      %v3369 = vpack.c.bf16 %v2764, %v2764
      %v3370 = vpack.c.bf16 %v2771, %v2771
      %v3371 = vpack.c.bf16 %v2778, %v2778
      %v3372 = vpack.c.bf16 %v2785, %v2785
      %v3373 = vpack.c.bf16 %v2792, %v2792
      %v3374 = vpack.c.bf16 %v2799, %v2799
      %v3375 = vpack.c.bf16 %v2806, %v2806
      %v3376 = vpack.c.bf16 %v2813, %v2813
      %v3377 = vpack.c.bf16 %v2820, %v2820
      %v3378 = vpack.c.bf16 %v2827, %v2827
      %v3379 = vpack.c.bf16 %v2834, %v2834
      %v3380 = vpack.c.bf16 %v2841, %v2841
      %v3381 = vpack.c.bf16 %v2848, %v2848
      %v3382 = vpack.c.bf16 %v2855, %v2855
      %v3383 = vpack.c.bf16 %v2862, %v2862
      %v3384 = vpack.c.bf16 %v2869, %v2869
      %v3385 = vpack.c.bf16 %v2876, %v2876
      %v3386 = vpack.c.bf16 %v2883, %v2883
      %v3387 = vpack.c.bf16 %v2890, %v2890
      %v3388 = vpack.c.bf16 %v2897, %v2897
      %v3389 = vpack.c.bf16 %v2904, %v2904
      %v3390 = vpack.c.bf16 %v2911, %v2911
      %v3391 = vpack.c.bf16 %v2918, %v2918
      %v3392 = vpack.c.bf16 %v2925, %v2925
      %v3393 = vpack.c.bf16 %v2932, %v2932
      %v3394 = vpack.c.bf16 %v2939, %v2939
      %v3395 = vpack.c.bf16 %v2946, %v2946
      %v3396 = vpack.c.bf16 %v2953, %v2953
      %v3397 = vpack.c.bf16 %v2960, %v2960
      %v3398 = vpack.c.bf16 %v2967, %v2967
      %v3399 = vpack.c.bf16 %v2974, %v2974
      %v3400 = vpack.c.bf16 %v2981, %v2981
      %v3401 = vpack.c.bf16 %v2988, %v2988
      %v3402 = vpack.c.bf16 %v2995, %v2995
      %v3403 = vpack.c.bf16 %v3002, %v3002
      %v3404 = vpack.c.bf16 %v3009, %v3009
      %v3405 = vpack.c.bf16 %v3016, %v3016
      %v3406 = vpack.c.bf16 %v3023, %v3023
      %v3407 = vpack.c.bf16 %v3030, %v3030
      %v3408 = vpack.c.bf16 %v3037, %v3037
      %v3409 = vpack.c.bf16 %v3044, %v3044
      %v3410 = vpack.c.bf16 %v3051, %v3051
      %v3411 = vpack.c.bf16 %v3058, %v3058
      %v3412 = vpack.c.bf16 %v3065, %v3065
      %v3413 = vpack.c.bf16 %v3072, %v3072
      %v3414 = vpack.c.bf16 %v3079, %v3079
      %v3415 = vpack.c.bf16 %v3086, %v3086
      %v3416 = vpack.c.bf16 %v3093, %v3093
      %v3417 = vpack.c.bf16 %v3100, %v3100
      %v3418 = vpack.c.bf16 %v3107, %v3107
      %v3419 = vpack.c.bf16 %v3114, %v3114
      %v3420 = vpack.c.bf16 %v3121, %v3121
      %v3421 = vpack.c.bf16 %v3128, %v3128
      %v3422 = vpack.c.bf16 %v3135, %v3135
      %v3423 = vpack.c.bf16 %v3142, %v3142
      %v3424 = vpack.c.bf16 %v3149, %v3149
      %v3425 = vpack.c.bf16 %v3156, %v3156
      %v3426 = vpack.c.bf16 %v3163, %v3163
      %v3427 = vpack.c.bf16 %v3170, %v3170
      %v3428 = vpack.c.bf16 %v3177, %v3177
      %v3429 = vpack.c.bf16 %v3184, %v3184
      %v3430 = vpack.c.bf16 %v3191, %v3191
      %v3431 = vpack.c.bf16 %v3198, %v3198
      %v3432 = vpack.c.bf16 %v3205, %v3205
      %v3433 = vpack.c.bf16 %v3212, %v3212
      %v3434 = vpack.c.bf16 %v3219, %v3219
      %v3435 = vpack.c.bf16 %v3226, %v3226
      %v3436 = vpack.c.bf16 %v3233, %v3233
      %v3437 = vpack.c.bf16 %v3240, %v3240
      %v3438 = vpack.c.bf16 %v3247, %v3247
      %v3439 = vpack.c.bf16 %v3254, %v3254
      %v3440 = vpack.c.bf16 %v3261, %v3261
      %v3441 = vpack.c.bf16 %v3268, %v3268
      %v3442 = vpack.c.bf16 %v3275, %v3275
      %v3443 = vpack.c.bf16 %v3282, %v3282
      %v3444 = vpack.c.bf16 %v3289, %v3289
      %v3445 = vpack.c.bf16 %v3296, %v3296
      %v3446 = vpack.c.bf16 %v3303, %v3303
      %v3447 = vpack.c.bf16 %v3310, %v3310
      %v3448 = vpack.c.bf16 %v3317, %v3317
      %v3449 = vunpack.c.l.bf16 %v3320
      %v3450 = vperm.slane %v3449, 0
      %v3579 = vunpack.c.l.b16 %v3321
      %v3580 = vunpack.c.l.b16 %v3322
      %v3581 = vunpack.c.l.b16 %v3323
      %v3582 = vunpack.c.l.b16 %v3324
      %v3583 = vunpack.c.l.b16 %v3325
      %v3584 = vunpack.c.l.b16 %v3326
      %v3585 = vunpack.c.l.b16 %v3327
      %v3586 = vunpack.c.l.b16 %v3328
      %v3587 = vunpack.c.l.b16 %v3329
      %v3588 = vunpack.c.l.b16 %v3330
      %v3589 = vunpack.c.l.b16 %v3331
      %v3590 = vunpack.c.l.b16 %v3332
      %v3591 = vunpack.c.l.b16 %v3333
      %v3592 = vunpack.c.l.b16 %v3334
      %v3593 = vunpack.c.l.b16 %v3335
      %v3594 = vunpack.c.l.b16 %v3336
      %v3595 = vunpack.c.l.b16 %v3337
      %v3596 = vunpack.c.l.b16 %v3338
      %v3597 = vunpack.c.l.b16 %v3339
      %v3598 = vunpack.c.l.b16 %v3340
      %v3599 = vunpack.c.l.b16 %v3341
      %v3600 = vunpack.c.l.b16 %v3342
      %v3601 = vunpack.c.l.b16 %v3343
      %v3602 = vunpack.c.l.b16 %v3344
      %v3603 = vunpack.c.l.b16 %v3345
      %v3604 = vunpack.c.l.b16 %v3346
      %v3605 = vunpack.c.l.b16 %v3347
      %v3606 = vunpack.c.l.b16 %v3348
      %v3607 = vunpack.c.l.b16 %v3349
      %v3608 = vunpack.c.l.b16 %v3350
      %v3609 = vunpack.c.l.b16 %v3351
      %v3610 = vunpack.c.l.b16 %v3352
      %v3611 = vunpack.c.l.b16 %v3353
      %v3612 = vunpack.c.l.b16 %v3354
      %v3613 = vunpack.c.l.b16 %v3355
      %v3614 = vunpack.c.l.b16 %v3356
      %v3615 = vunpack.c.l.b16 %v3357
      %v3616 = vunpack.c.l.b16 %v3358
      %v3617 = vunpack.c.l.b16 %v3359
      %v3618 = vunpack.c.l.b16 %v3360
      %v3619 = vunpack.c.l.b16 %v3361
      %v3620 = vunpack.c.l.b16 %v3362
      %v3621 = vunpack.c.l.b16 %v3363
      %v3622 = vunpack.c.l.b16 %v3364
      %v3623 = vunpack.c.l.b16 %v3365
      %v3624 = vunpack.c.l.b16 %v3366
      %v3625 = vunpack.c.l.b16 %v3367
      %v3626 = vunpack.c.l.b16 %v3368
      %v3627 = vunpack.c.l.b16 %v3369
      %v3628 = vunpack.c.l.b16 %v3370
      %v3629 = vunpack.c.l.b16 %v3371
      %v3630 = vunpack.c.l.b16 %v3372
      %v3631 = vunpack.c.l.b16 %v3373
      %v3632 = vunpack.c.l.b16 %v3374
      %v3633 = vunpack.c.l.b16 %v3375
      %v3634 = vunpack.c.l.b16 %v3376
      %v3635 = vunpack.c.l.b16 %v3377
      %v3636 = vunpack.c.l.b16 %v3378
      %v3637 = vunpack.c.l.b16 %v3379
      %v3638 = vunpack.c.l.b16 %v3380
      %v3639 = vunpack.c.l.b16 %v3381
      %v3640 = vunpack.c.l.b16 %v3382
      %v3641 = vunpack.c.l.b16 %v3383
      %v3642 = vunpack.c.l.b16 %v3384
      %v3643 = vunpack.c.l.b16 %v3385
      %v3644 = vunpack.c.l.b16 %v3386
      %v3645 = vunpack.c.l.b16 %v3387
      %v3646 = vunpack.c.l.b16 %v3388
      %v3647 = vunpack.c.l.b16 %v3389
      %v3648 = vunpack.c.l.b16 %v3390
      %v3649 = vunpack.c.l.b16 %v3391
      %v3650 = vunpack.c.l.b16 %v3392
      %v3651 = vunpack.c.l.b16 %v3393
      %v3652 = vunpack.c.l.b16 %v3394
      %v3653 = vunpack.c.l.b16 %v3395
      %v3654 = vunpack.c.l.b16 %v3396
      %v3655 = vunpack.c.l.b16 %v3397
      %v3656 = vunpack.c.l.b16 %v3398
      %v3657 = vunpack.c.l.b16 %v3399
      %v3658 = vunpack.c.l.b16 %v3400
      %v3659 = vunpack.c.l.b16 %v3401
      %v3660 = vunpack.c.l.b16 %v3402
      %v3661 = vunpack.c.l.b16 %v3403
      %v3662 = vunpack.c.l.b16 %v3404
      %v3663 = vunpack.c.l.b16 %v3405
      %v3664 = vunpack.c.l.b16 %v3406
      %v3665 = vunpack.c.l.b16 %v3407
      %v3666 = vunpack.c.l.b16 %v3408
      %v3667 = vunpack.c.l.b16 %v3409
      %v3668 = vunpack.c.l.b16 %v3410
      %v3669 = vunpack.c.l.b16 %v3411
      %v3670 = vunpack.c.l.b16 %v3412
      %v3671 = vunpack.c.l.b16 %v3413
      %v3672 = vunpack.c.l.b16 %v3414
      %v3673 = vunpack.c.l.b16 %v3415
      %v3674 = vunpack.c.l.b16 %v3416
      %v3675 = vunpack.c.l.b16 %v3417
      %v3676 = vunpack.c.l.b16 %v3418
      %v3677 = vunpack.c.l.b16 %v3419
      %v3678 = vunpack.c.l.b16 %v3420
      %v3679 = vunpack.c.l.b16 %v3421
      %v3680 = vunpack.c.l.b16 %v3422
      %v3681 = vunpack.c.l.b16 %v3423
      %v3682 = vunpack.c.l.b16 %v3424
      %v3683 = vunpack.c.l.b16 %v3425
      %v3684 = vunpack.c.l.b16 %v3426
      %v3685 = vunpack.c.l.b16 %v3427
      %v3686 = vunpack.c.l.b16 %v3428
      %v3687 = vunpack.c.l.b16 %v3429
      %v3688 = vunpack.c.l.b16 %v3430
      %v3689 = vunpack.c.l.b16 %v3431
      %v3690 = vunpack.c.l.b16 %v3432
      %v3691 = vunpack.c.l.b16 %v3433
      %v3692 = vunpack.c.l.b16 %v3434
      %v3693 = vunpack.c.l.b16 %v3435
      %v3694 = vunpack.c.l.b16 %v3436
      %v3695 = vunpack.c.l.b16 %v3437
      %v3696 = vunpack.c.l.b16 %v3438
      %v3697 = vunpack.c.l.b16 %v3439
      %v3698 = vunpack.c.l.b16 %v3440
      %v3699 = vunpack.c.l.b16 %v3441
      %v3700 = vunpack.c.l.b16 %v3442
      %v3701 = vunpack.c.l.b16 %v3443
      %v3702 = vunpack.c.l.b16 %v3444
      %v3703 = vunpack.c.l.b16 %v3445
      %v3704 = vunpack.c.l.b16 %v3446
      %v3705 = vunpack.c.l.b16 %v3447
      %v3706 = vunpack.c.l.b16 %v3448
      %v3707 = vsel %vm1053, %v3580, %v3579
      %v3708 = vsel %vm1055, %v3581, %v3707
      %v3709 = vsel %vm1057, %v3582, %v3708
      %v3710 = vsel %vm1059, %v3583, %v3709
      %v3711 = vsel %vm1061, %v3584, %v3710
      %v3712 = vsel %vm1063, %v3585, %v3711
      %v3713 = vsel %vm1065, %v3586, %v3712
      %v3714 = vsel %vm1053, %v3588, %v3587
      %v3715 = vsel %vm1055, %v3589, %v3714
      %v3716 = vsel %vm1057, %v3590, %v3715
      %v3717 = vsel %vm1059, %v3591, %v3716
      %v3718 = vsel %vm1061, %v3592, %v3717
      %v3719 = vsel %vm1063, %v3593, %v3718
      %v3720 = vsel %vm1065, %v3594, %v3719
      %v3721 = vsel %vm1053, %v3596, %v3595
      %v3722 = vsel %vm1055, %v3597, %v3721
      %v3723 = vsel %vm1057, %v3598, %v3722
      %v3724 = vsel %vm1059, %v3599, %v3723
      %v3725 = vsel %vm1061, %v3600, %v3724
      %v3726 = vsel %vm1063, %v3601, %v3725
      %v3727 = vsel %vm1065, %v3602, %v3726
      %v3728 = vsel %vm1053, %v3604, %v3603
      %v3729 = vsel %vm1055, %v3605, %v3728
      %v3730 = vsel %vm1057, %v3606, %v3729
      %v3731 = vsel %vm1059, %v3607, %v3730
      %v3732 = vsel %vm1061, %v3608, %v3731
      %v3733 = vsel %vm1063, %v3609, %v3732
      %v3734 = vsel %vm1065, %v3610, %v3733
      %v3735 = vsel %vm1053, %v3612, %v3611
      %v3736 = vsel %vm1055, %v3613, %v3735
      %v3737 = vsel %vm1057, %v3614, %v3736
      %v3738 = vsel %vm1059, %v3615, %v3737
      %v3739 = vsel %vm1061, %v3616, %v3738
      %v3740 = vsel %vm1063, %v3617, %v3739
      %v3741 = vsel %vm1065, %v3618, %v3740
      %v3742 = vsel %vm1053, %v3620, %v3619
      %v3743 = vsel %vm1055, %v3621, %v3742
      %v3744 = vsel %vm1057, %v3622, %v3743
      %v3745 = vsel %vm1059, %v3623, %v3744
      %v3746 = vsel %vm1061, %v3624, %v3745
      %v3747 = vsel %vm1063, %v3625, %v3746
      %v3748 = vsel %vm1065, %v3626, %v3747
      %v3749 = vsel %vm1053, %v3628, %v3627
      %v3750 = vsel %vm1055, %v3629, %v3749
      %v3751 = vsel %vm1057, %v3630, %v3750
      %v3752 = vsel %vm1059, %v3631, %v3751
      %v3753 = vsel %vm1061, %v3632, %v3752
      %v3754 = vsel %vm1063, %v3633, %v3753
      %v3755 = vsel %vm1065, %v3634, %v3754
      %v3756 = vsel %vm1053, %v3636, %v3635
      %v3757 = vsel %vm1055, %v3637, %v3756
      %v3758 = vsel %vm1057, %v3638, %v3757
      %v3759 = vsel %vm1059, %v3639, %v3758
      %v3760 = vsel %vm1061, %v3640, %v3759
      %v3761 = vsel %vm1063, %v3641, %v3760
      %v3762 = vsel %vm1065, %v3642, %v3761
      %v3763 = vsel %vm1053, %v3644, %v3643
      %v3764 = vsel %vm1055, %v3645, %v3763
      %v3765 = vsel %vm1057, %v3646, %v3764
      %v3766 = vsel %vm1059, %v3647, %v3765
      %v3767 = vsel %vm1061, %v3648, %v3766
      %v3768 = vsel %vm1063, %v3649, %v3767
      %v3769 = vsel %vm1065, %v3650, %v3768
      %v3770 = vsel %vm1053, %v3652, %v3651
      %v3771 = vsel %vm1055, %v3653, %v3770
      %v3772 = vsel %vm1057, %v3654, %v3771
      %v3773 = vsel %vm1059, %v3655, %v3772
      %v3774 = vsel %vm1061, %v3656, %v3773
      %v3775 = vsel %vm1063, %v3657, %v3774
      %v3776 = vsel %vm1065, %v3658, %v3775
      %v3777 = vsel %vm1053, %v3660, %v3659
      %v3778 = vsel %vm1055, %v3661, %v3777
      %v3779 = vsel %vm1057, %v3662, %v3778
      %v3780 = vsel %vm1059, %v3663, %v3779
      %v3781 = vsel %vm1061, %v3664, %v3780
      %v3782 = vsel %vm1063, %v3665, %v3781
      %v3783 = vsel %vm1065, %v3666, %v3782
      %v3784 = vsel %vm1053, %v3668, %v3667
      %v3785 = vsel %vm1055, %v3669, %v3784
      %v3786 = vsel %vm1057, %v3670, %v3785
      %v3787 = vsel %vm1059, %v3671, %v3786
      %v3788 = vsel %vm1061, %v3672, %v3787
      %v3789 = vsel %vm1063, %v3673, %v3788
      %v3790 = vsel %vm1065, %v3674, %v3789
      %v3791 = vsel %vm1053, %v3676, %v3675
      %v3792 = vsel %vm1055, %v3677, %v3791
      %v3793 = vsel %vm1057, %v3678, %v3792
      %v3794 = vsel %vm1059, %v3679, %v3793
      %v3795 = vsel %vm1061, %v3680, %v3794
      %v3796 = vsel %vm1063, %v3681, %v3795
      %v3797 = vsel %vm1065, %v3682, %v3796
      %v3798 = vsel %vm1053, %v3684, %v3683
      %v3799 = vsel %vm1055, %v3685, %v3798
      %v3800 = vsel %vm1057, %v3686, %v3799
      %v3801 = vsel %vm1059, %v3687, %v3800
      %v3802 = vsel %vm1061, %v3688, %v3801
      %v3803 = vsel %vm1063, %v3689, %v3802
      %v3804 = vsel %vm1065, %v3690, %v3803
      %v3805 = vsel %vm1053, %v3692, %v3691
      %v3806 = vsel %vm1055, %v3693, %v3805
      %v3807 = vsel %vm1057, %v3694, %v3806
      %v3808 = vsel %vm1059, %v3695, %v3807
      %v3809 = vsel %vm1061, %v3696, %v3808
      %v3810 = vsel %vm1063, %v3697, %v3809
      %v3811 = vsel %vm1065, %v3698, %v3810
      %v3812 = vsel %vm1053, %v3700, %v3699
      %v3813 = vsel %vm1055, %v3701, %v3812
      %v3814 = vsel %vm1057, %v3702, %v3813
      %v3815 = vsel %vm1059, %v3703, %v3814
      %v3816 = vsel %vm1061, %v3704, %v3815
      %v3817 = vsel %vm1063, %v3705, %v3816
      %v3818 = vsel %vm1065, %v3706, %v3817
      %v3819 = vpack.c.b16 %v3720, %v3713
      %v3820 = vpack.c.b16 %v3734, %v3727
      %v3821 = vpack.c.b16 %v3748, %v3741
      %v3822 = vpack.c.b16 %v3762, %v3755
      %v3823 = vpack.c.b16 %v3776, %v3769
      %v3824 = vpack.c.b16 %v3790, %v3783
      %v3825 = vpack.c.b16 %v3804, %v3797
      %v3826 = vpack.c.b16 %v3818, %v3811
      %v3829 = vunpack.c.l.b16 %v3318
      %v3830 = vunpack.c.l.b16 %v3319
      %v3831 = vpack.c.b16 %v3830, %v3829
      %v3834 = vsel %vm2421, %v3819, 0
      %v3837 = vsel %vm2421, %v3820, 0
      %v3840 = vsel %vm2421, %v3821, 0
      %v3843 = vsel %vm2421, %v3822, 0
      %v3846 = vsel %vm2421, %v3823, 0
      %v3849 = vsel %vm2421, %v3824, 0
      %v3852 = vsel %vm2421, %v3825, 0
      %v3855 = vsel %vm2421, %v3826, 0
      %3857 = vmatpush.bf16.msra.mxu0 0
      %3858 = vmatpush.bf16.msra.mxu0 0
      %3859 = vmatpush.bf16.msra.mxu0 0
      %3860 = vmatpush.bf16.msra.mxu0 0
      %3861 = vmatpush.bf16.msra.mxu0 0
      %3862 = vmatpush.bf16.msra.mxu0 0
      %3863 = vmatpush.bf16.msra.mxu0 0
      %3864 = vmatpush.bf16.msra.mxu0 %v3831
      %3865 = vmatmul.bf16.gmra.mxu0 %v3834
      %v3866 = vpop.f32.mrf.mxu0
      %v3867 = vadd.f32 %v3450, %v3866
      %v3868 = vpop.f32.mrf.mxu0
      %v3869 = vadd.f32 %v3450, %v3868
      %3870 = vmatmul.bf16.gmra.mxu0 %v3837
      %v3871 = vpop.f32.mrf.mxu0
      %v3872 = vadd.f32 %v3450, %v3871
      %v3873 = vpop.f32.mrf.mxu0
      %v3874 = vadd.f32 %v3450, %v3873
      %3875 = vmatmul.bf16.gmra.mxu0 %v3840
      %v3876 = vpop.f32.mrf.mxu0
      %v3877 = vadd.f32 %v3450, %v3876
      %v3878 = vpop.f32.mrf.mxu0
      %v3879 = vadd.f32 %v3450, %v3878
      %3880 = vmatmul.bf16.gmra.mxu0 %v3843
      %v3881 = vpop.f32.mrf.mxu0
      %v3882 = vadd.f32 %v3450, %v3881
      %v3883 = vpop.f32.mrf.mxu0
      %v3884 = vadd.f32 %v3450, %v3883
      %3885 = vmatmul.bf16.gmra.mxu0 %v3846
      %v3886 = vpop.f32.mrf.mxu0
      %v3887 = vadd.f32 %v3450, %v3886
      %v3888 = vpop.f32.mrf.mxu0
      %v3889 = vadd.f32 %v3450, %v3888
      %3890 = vmatmul.bf16.gmra.mxu0 %v3849
      %v3891 = vpop.f32.mrf.mxu0
      %v3892 = vadd.f32 %v3450, %v3891
      %v3893 = vpop.f32.mrf.mxu0
      %v3894 = vadd.f32 %v3450, %v3893
      %3895 = vmatmul.bf16.gmra.mxu0 %v3852
      %v3896 = vpop.f32.mrf.mxu0
      %v3897 = vadd.f32 %v3450, %v3896
      %v3898 = vpop.f32.mrf.mxu0
      %v3899 = vadd.f32 %v3450, %v3898
      %3900 = vmatmul.bf16.gmra.mxu0 %v3855
      %v3901 = vpop.f32.mrf.mxu0
      %v3902 = vadd.f32 %v3450, %v3901
      %v3903 = vpop.f32.mrf.mxu0
      %v3904 = vadd.f32 %v3450, %v3903
      %3905 = vdwg.mxu0
      %v3906 = vmax.f32 %v3867, 0.0
      %v3907 = vmax.f32 %v3869, 0.0
      %v3908 = vmax.f32 %v3872, 0.0
      %v3909 = vmax.f32 %v3874, 0.0
      %v3910 = vmax.f32 %v3877, 0.0
      %v3911 = vmax.f32 %v3879, 0.0
      %v3912 = vmax.f32 %v3882, 0.0
      %v3913 = vmax.f32 %v3884, 0.0
      %v3914 = vmax.f32 %v3887, 0.0
      %v3915 = vmax.f32 %v3889, 0.0
      %v3916 = vmax.f32 %v3892, 0.0
      %v3917 = vmax.f32 %v3894, 0.0
      %v3918 = vmax.f32 %v3897, 0.0
      %v3919 = vmax.f32 %v3899, 0.0
      %v3920 = vmax.f32 %v3902, 0.0
      %v3921 = vmax.f32 %v3904, 0.0
      %v3922 = vld [vmem:[%s3] sm:$0xf]
      %v3923 = vld [vmem:[%s3 + $0x4] sm:$0xf]
      %v3924 = vld [vmem:[%s3 + $0x8] sm:$0xf]
      %v3925 = vld [vmem:[%s3 + $0xc] sm:$0xf]
      %v3926 = vld [vmem:[%s4] sm:$0x1]
      %v3927 = vpack.c.bf16 %v3907, %v3906
      %v3928 = vpack.c.bf16 %v3909, %v3908
      %v3929 = vpack.c.bf16 %v3911, %v3910
      %v3930 = vpack.c.bf16 %v3913, %v3912
      %v3931 = vpack.c.bf16 %v3915, %v3914
      %v3932 = vpack.c.bf16 %v3917, %v3916
      %v3933 = vpack.c.bf16 %v3919, %v3918
      %v3934 = vpack.c.bf16 %v3921, %v3920
      %v3935 = vunpack.c.l.bf16 %v3926
      %v3936 = vperm.slane %v3935, 0
      %v3941 = vunpack.c.l.b16 %v3922
      %v3942 = vunpack.c.l.b16 %v3923
      %v3943 = vunpack.c.l.b16 %v3924
      %v3944 = vunpack.c.l.b16 %v3925
      %v3945 = vpack.c.b16 %v3942, %v3941
      %v3946 = vpack.c.b16 %v3944, %v3943
      %vm3949 = vcmask 261120
      %v3951 = vsel %vm3949, %v3927, 0
      %v3954 = vsel %vm3949, %v3928, 0
      %v3957 = vsel %vm3949, %v3929, 0
      %v3960 = vsel %vm3949, %v3930, 0
      %v3963 = vsel %vm3949, %v3931, 0
      %v3966 = vsel %vm3949, %v3932, 0
      %v3969 = vsel %vm3949, %v3933, 0
      %v3972 = vsel %vm3949, %v3934, 0
      %3974 = vmatpush.bf16.msra.mxu0 0
      %3975 = vmatpush.bf16.msra.mxu0 0
      %3976 = vmatpush.bf16.msra.mxu0 0
      %3977 = vmatpush.bf16.msra.mxu0 0
      %3978 = vmatpush.bf16.msra.mxu0 0
      %3979 = vmatpush.bf16.msra.mxu0 0
      %3980 = vmatpush.bf16.msra.mxu0 %v3946
      %3981 = vmatpush.bf16.msra.mxu0 %v3945
      %3982 = vmatmul.bf16.gmra.mxu0 %v3951
      %v3983 = vpop.f32.mrf.mxu0
      %v3984 = vadd.f32 %v3936, %v3983
      %v3985 = vpop.f32.mrf.mxu0
      %v3986 = vadd.f32 %v3936, %v3985
      %3987 = vmatmul.bf16.gmra.mxu0 %v3954
      %v3988 = vpop.f32.mrf.mxu0
      %v3989 = vadd.f32 %v3936, %v3988
      %v3990 = vpop.f32.mrf.mxu0
      %v3991 = vadd.f32 %v3936, %v3990
      %3992 = vmatmul.bf16.gmra.mxu0 %v3957
      %v3993 = vpop.f32.mrf.mxu0
      %v3994 = vadd.f32 %v3936, %v3993
      %v3995 = vpop.f32.mrf.mxu0
      %v3996 = vadd.f32 %v3936, %v3995
      %3997 = vmatmul.bf16.gmra.mxu0 %v3960
      %v3998 = vpop.f32.mrf.mxu0
      %v3999 = vadd.f32 %v3936, %v3998
      %v4000 = vpop.f32.mrf.mxu0
      %v4001 = vadd.f32 %v3936, %v4000
      %4002 = vmatmul.bf16.gmra.mxu0 %v3963
      %v4003 = vpop.f32.mrf.mxu0
      %v4004 = vadd.f32 %v3936, %v4003
      %v4005 = vpop.f32.mrf.mxu0
      %v4006 = vadd.f32 %v3936, %v4005
      %4007 = vmatmul.bf16.gmra.mxu0 %v3966
      %v4008 = vpop.f32.mrf.mxu0
      %v4009 = vadd.f32 %v3936, %v4008
      %v4010 = vpop.f32.mrf.mxu0
      %v4011 = vadd.f32 %v3936, %v4010
      %4012 = vmatmul.bf16.gmra.mxu0 %v3969
      %v4013 = vpop.f32.mrf.mxu0
      %v4014 = vadd.f32 %v3936, %v4013
      %v4015 = vpop.f32.mrf.mxu0
      %v4016 = vadd.f32 %v3936, %v4015
      %4017 = vmatmul.bf16.gmra.mxu0 %v3972
      %v4018 = vpop.f32.mrf.mxu0
      %v4019 = vadd.f32 %v3936, %v4018
      %v4020 = vpop.f32.mrf.mxu0
      %v4021 = vadd.f32 %v3936, %v4020
      %4022 = vdwg.mxu0
      %v4023 = vmax.f32 %v3984, 0.0
      %v4024 = vmax.f32 %v3986, 0.0
      %v4025 = vmax.f32 %v3989, 0.0
      %v4026 = vmax.f32 %v3991, 0.0
      %v4027 = vmax.f32 %v3994, 0.0
      %v4028 = vmax.f32 %v3996, 0.0
      %v4029 = vmax.f32 %v3999, 0.0
      %v4030 = vmax.f32 %v4001, 0.0
      %v4031 = vmax.f32 %v4004, 0.0
      %v4032 = vmax.f32 %v4006, 0.0
      %v4033 = vmax.f32 %v4009, 0.0
      %v4034 = vmax.f32 %v4011, 0.0
      %v4035 = vmax.f32 %v4014, 0.0
      %v4036 = vmax.f32 %v4016, 0.0
      %v4037 = vmax.f32 %v4019, 0.0
      %v4038 = vmax.f32 %v4021, 0.0
      %v4039 = vld [vmem:[%s5] sm:$0xf]
      %v4040 = vld [vmem:[%s5 + $0x4] sm:$0xf]
      %v4041 = vld [vmem:[%s5 + $0x8] sm:$0xf]
      %v4042 = vld [vmem:[%s5 + $0xc] sm:$0xf]
      %v4043 = vld [vmem:[%s6] sm:$0x1]
      %v4044 = vpack.c.bf16 %v4024, %v4023
      %v4045 = vpack.c.bf16 %v4026, %v4025
      %v4046 = vpack.c.bf16 %v4028, %v4027
      %v4047 = vpack.c.bf16 %v4030, %v4029
      %v4048 = vpack.c.bf16 %v4032, %v4031
      %v4049 = vpack.c.bf16 %v4034, %v4033
      %v4050 = vpack.c.bf16 %v4036, %v4035
      %v4051 = vpack.c.bf16 %v4038, %v4037
      %v4052 = vunpack.c.l.bf16 %v4043
      %v4053 = vperm.slane %v4052, 0
      %v4058 = vunpack.c.l.b16 %v4039
      %v4059 = vunpack.c.l.b16 %v4040
      %v4060 = vunpack.c.l.b16 %v4041
      %v4061 = vunpack.c.l.b16 %v4042
      %v4062 = vpack.c.b16 %v4059, %v4058
      %v4063 = vpack.c.b16 %v4061, %v4060
      %v4067 = vsel %vm3949, %v4044, 0
      %v4070 = vsel %vm3949, %v4045, 0
      %v4073 = vsel %vm3949, %v4046, 0
      %v4076 = vsel %vm3949, %v4047, 0
      %v4079 = vsel %vm3949, %v4048, 0
      %v4082 = vsel %vm3949, %v4049, 0
      %v4085 = vsel %vm3949, %v4050, 0
      %v4088 = vsel %vm3949, %v4051, 0
      %4090 = vmatpush.bf16.msra.mxu0 0
      %4091 = vmatpush.bf16.msra.mxu0 0
      %4092 = vmatpush.bf16.msra.mxu0 0
      %4093 = vmatpush.bf16.msra.mxu0 0
      %4094 = vmatpush.bf16.msra.mxu0 0
      %4095 = vmatpush.bf16.msra.mxu0 0
      %4096 = vmatpush.bf16.msra.mxu0 %v4063
      %4097 = vmatpush.bf16.msra.mxu0 %v4062
      %4098 = vmatmul.bf16.gmra.mxu0 %v4067
      %v4099 = vpop.f32.mrf.mxu0
      %v4100 = vadd.f32 %v4053, %v4099
      %v4101 = vpop.f32.mrf.mxu0
      %v4102 = vadd.f32 %v4053, %v4101
      %4103 = vmatmul.bf16.gmra.mxu0 %v4070
      %v4104 = vpop.f32.mrf.mxu0
      %v4105 = vadd.f32 %v4053, %v4104
      %v4106 = vpop.f32.mrf.mxu0
      %v4107 = vadd.f32 %v4053, %v4106
      %4108 = vmatmul.bf16.gmra.mxu0 %v4073
      %v4109 = vpop.f32.mrf.mxu0
      %v4110 = vadd.f32 %v4053, %v4109
      %v4111 = vpop.f32.mrf.mxu0
      %v4112 = vadd.f32 %v4053, %v4111
      %4113 = vmatmul.bf16.gmra.mxu0 %v4076
      %v4114 = vpop.f32.mrf.mxu0
      %v4115 = vadd.f32 %v4053, %v4114
      %v4116 = vpop.f32.mrf.mxu0
      %v4117 = vadd.f32 %v4053, %v4116
      %4118 = vmatmul.bf16.gmra.mxu0 %v4079
      %v4119 = vpop.f32.mrf.mxu0
      %v4120 = vadd.f32 %v4053, %v4119
      %v4121 = vpop.f32.mrf.mxu0
      %v4122 = vadd.f32 %v4053, %v4121
      %4123 = vmatmul.bf16.gmra.mxu0 %v4082
      %v4124 = vpop.f32.mrf.mxu0
      %v4125 = vadd.f32 %v4053, %v4124
      %v4126 = vpop.f32.mrf.mxu0
      %v4127 = vadd.f32 %v4053, %v4126
      %4128 = vmatmul.bf16.gmra.mxu0 %v4085
      %v4129 = vpop.f32.mrf.mxu0
      %v4130 = vadd.f32 %v4053, %v4129
      %v4131 = vpop.f32.mrf.mxu0
      %v4132 = vadd.f32 %v4053, %v4131
      %4133 = vmatmul.bf16.gmra.mxu0 %v4088
      %v4134 = vpop.f32.mrf.mxu0
      %v4135 = vadd.f32 %v4053, %v4134
      %v4136 = vpop.f32.mrf.mxu0
      %v4137 = vadd.f32 %v4053, %v4136
      %4138 = vdwg.mxu0
      %4139 = vst [vmem:[%s280] sm:$0xff] %v4100
      %4140 = vst [vmem:[%s280 + $0x8] sm:$0xff] %v4102
      %4141 = vst [vmem:[%s280 + $0x10] sm:$0xff] %v4105
      %4142 = vst [vmem:[%s280 + $0x18] sm:$0xff] %v4107
      %4143 = vst [vmem:[%s280 + $0x20] sm:$0xff] %v4110
      %4144 = vst [vmem:[%s280 + $0x28] sm:$0xff] %v4112
      %4145 = vst [vmem:[%s280 + $0x30] sm:$0xff] %v4115
      %4146 = vst [vmem:[%s280 + $0x38] sm:$0xff] %v4117
      %4147 = vst [vmem:[%s280 + $0x40] sm:$0xff] %v4120
      %4148 = vst [vmem:[%s280 + $0x48] sm:$0xff] %v4122
      %4149 = vst [vmem:[%s280 + $0x50] sm:$0xff] %v4125
      %4150 = vst [vmem:[%s280 + $0x58] sm:$0xff] %v4127
      %4151 = vst [vmem:[%s280 + $0x60] sm:$0xff] %v4130
      %4152 = vst [vmem:[%s280 + $0x68] sm:$0xff] %v4132
      %4153 = vst [vmem:[%s280 + $0x70] sm:$0xff] %v4135
      %4154 = vst [vmem:[%s280 + $0x78] sm:$0xff] %v4137
      %s4155 = smul.u32 16, %s18
      %p4156 = scmp.lt.s32.totalorder %s4155, 31
      %s4157 = scalar_select %p4156, %s4155, 31
      %s4158 = smul.addr %s4157, 8
      %s4159 = scalar_lea.vmem %s7, %s4158
      // Predicated region
      $region49: #{_lambda_.1} parent=47 // pred_check
        %p4160 = pneg %p188
      $region50: #{_lambda_.1} parent=47 // pred_check_branch
        %4162 = sbr.rel (%p4160) target = $region52
      $region51: #{_lambda_.1} parent=47 // pred_region
        %s4163 = smul.u32 16, %s18
      $region52: #{_lambda_.1} parent=47 // pred_fallthru
        _
    $region48: #{_lambda_.1} parent=5 // pred_fallthru
      _
    %p4164 = scmp.le.s32.totalorder 2, %s13
    // Predicated region
    $region53: #{_lambda_.1} parent=5 // pred_check
      %p4165 = pneg %p4164
    $region54: #{_lambda_.1} parent=5 // pred_check_branch
      %4167 = sbr.rel (%p4165) target = $region56
    $region55: #{_lambda_.1} parent=5 // pred_region
      %s4168 = ssub.s32 %s13, 2
      // Predicated region
      $region57: #{_lambda_.1} parent=55 // pred_check
        %p4169 = pneg %p194
      $region58: #{_lambda_.1} parent=55 // pred_check_branch
        %4171 = sbr.rel (%p4169) target = $region60
      $region59: #{_lambda_.1} parent=55 // pred_region
        %s4172 = smul.u32 16, %s19
        %p4173 = scmp.lt.s32.totalorder %s4172, 31
        %s4174 = scalar_select %p4173, %s4172, 31
        %s4175 = smul.addr %s4174, 8
        %s4176 = scalar_lea.vmem %s7, %s4175
      $region60: #{_lambda_.1} parent=55 // pred_fallthru
        _
    $region56: #{_lambda_.1} parent=5 // pred_fallthru
      _
  $region6: #{_lambda_.1} parent=0 // loop_footer
    %s17 = sadd.s32 1, %s13
  $region7: #{_lambda_.1} parent=0 // loop_footer_branch
    %12 = sbr.rel target = $region3
  $region8: #{_lambda_.1} parent=0 // loop_exit
    _

</llo_original>
